<compile_context>
chip_gen: v6e
topology: v6e:2x2x1
jax: 0.10.0
libtpu: 0.0.40
codegen_flags: <defaults>
</compile_context>

<pallas_src>
import functools
import math

import jax
import jax.numpy as jnp
from jax import lax
from jax.experimental import pallas as pl
from jax.experimental.pallas import tpu as pltpu


# -----------------------------------------------------------------------------
# Fused kernel: per example (grid axis b)
#   particle ensemble of relation-aware layers -> mean -> shared layer ->
#   memory/schema alignment softmaxes.
# -----------------------------------------------------------------------------
def _fused_encoder_kernel(num_particles, len_q, len_c, len_t,
                          x_ref, rel_ref, wqkv_ref, w1_ref, w2cat_ref,
                          eqkv_ref, ew1_ref, ew2_ref,
                          enc_out_ref, align_out_ref):
    S = x_ref.shape[-2]
    D = x_ref.shape[-1]
    P = num_particles

    x_bf = x_ref[0].astype(jnp.bfloat16)      # (S, D)
    rel = rel_ref[0].astype(jnp.float32)      # (S, S) additive relation bias

    def softmax_rows(s):
        m = jnp.max(s, axis=-1, keepdims=True)
        e = jnp.exp(s - m)
        return e * pl.reciprocal(jnp.sum(e, axis=-1, keepdims=True), approx=True)

    # --- particle ensemble ----------------------------------------------------
    # One big MXU matmul for every particle's Q/K/V projection of the shared x.
    # wqkv_ref packs per particle [wq*(1/sqrt(D)) | wk | wv] along lanes.
    qkv_all = jnp.dot(x_bf, wqkv_ref[...],
                      preferred_element_type=jnp.float32)      # (S, 3*P*D)

    ctx_sum = jnp.zeros((S, D), jnp.float32)
    h1_parts = []
    for p in range(P):                                          # static unroll
        off = p * 3 * D
        q = qkv_all[:, off:off + D]
        k = qkv_all[:, off + D:off + 2 * D]
        v = qkv_all[:, off + 2 * D:off + 3 * D]
        scores = jnp.dot(q.astype(jnp.bfloat16), k.T.astype(jnp.bfloat16),
                         preferred_element_type=jnp.float32) + rel
        attn = softmax_rows(scores)
        ctx = jnp.dot(attn.astype(jnp.bfloat16), v.astype(jnp.bfloat16),
                      preferred_element_type=jnp.float32)
        ctx_sum = ctx_sum + ctx
        h1 = jnp.maximum(
            jnp.dot(ctx.astype(jnp.bfloat16), w1_ref[p],
                    preferred_element_type=jnp.float32), 0.0)
        h1_parts.append(h1.astype(jnp.bfloat16))

    # sum_p (h1_p @ W2_p) as ONE matmul: concat h1 on lanes, row-stacked W2.
    h1_all = jnp.concatenate(h1_parts, axis=-1)                 # (S, P*F)
    ffn_sum = jnp.dot(h1_all, w2cat_ref[...],                   # (P*F, D)
                      preferred_element_type=jnp.float32)
    enc_new = (ctx_sum + ffn_sum) * jnp.float32(1.0 / P)        # mean(out_p)

    # --- shared follow-up encoder layer (fused; no second pallas_call) --------
    def rat_layer(h_bf, wqkv_bf, w1_bf, w2_bf):
        qkv = jnp.dot(h_bf, wqkv_bf, preferred_element_type=jnp.float32)
        q = qkv[:, :D]
        k = qkv[:, D:2 * D]
        v = qkv[:, 2 * D:]
        scores = jnp.dot(q.astype(jnp.bfloat16), k.T.astype(jnp.bfloat16),
                         preferred_element_type=jnp.float32) + rel
        attn = softmax_rows(scores)
        ctx = jnp.dot(attn.astype(jnp.bfloat16), v.astype(jnp.bfloat16),
                      preferred_element_type=jnp.float32)
        h1 = jnp.maximum(
            jnp.dot(ctx.astype(jnp.bfloat16), w1_bf,
                    preferred_element_type=jnp.float32), 0.0)
        return jnp.dot(h1.astype(jnp.bfloat16), w2_bf,
                       preferred_element_type=jnp.float32) + ctx   # residual

    enc2 = rat_layer(enc_new.astype(jnp.bfloat16),
                     eqkv_ref[...], ew1_ref[...], ew2_ref[...])

    # --- lane-dense 2*D-wide store: [enc_new | enc2] ---------------------------
    enc_out_ref[0] = jnp.concatenate([enc_new, enc2], axis=-1).astype(
        enc_out_ref.dtype)

    # --- aligner epilogue: memory (== enc2) vs schema slab (== enc2[len_q:]) ---
    schema = enc2[len_q:, :]                                    # (Lc+Lt, D)
    a_scores = jnp.dot(enc2.astype(jnp.bfloat16),
                       schema.T.astype(jnp.bfloat16),
                       preferred_element_type=jnp.float32)      # (S, Lc+Lt)
    m2c = softmax_rows(a_scores[:, :len_c])
    m2t = softmax_rows(a_scores[:, len_c:])
    pad = align_out_ref.shape[-1] - (len_c + len_t)
    pieces = [m2c, m2t]
    if pad > 0:
        pieces.append(jnp.zeros((S, pad), jnp.float32))
    align_out_ref[0] = jnp.concatenate(pieces, axis=-1).astype(
        align_out_ref.dtype)


def fused_encode(x, rel, wqkv_all, w1_p, w2cat, ewqkv, ew1, ew2,
                 *, len_q, len_c, len_t):
    """x: [B,S,D] f32; rel: [B,S,S] f32; weights bf16 (particle-packed)."""
    B, S, D = x.shape
    P, _, F = w1_p.shape
    L = len_c + len_t
    align_w = max(128, ((L + 127) // 128) * 128)   # lane-dense align slab
    kernel = functools.partial(_fused_encoder_kernel, P, len_q, len_c, len_t)
    enc_packed, align_packed = pl.pallas_call(
        kernel,
        out_shape=(jax.ShapeDtypeStruct((B, S, 2 * D), jnp.float32),
                   jax.ShapeDtypeStruct((B, S, align_w), jnp.float32)),
        grid_spec=pltpu.PrefetchScalarGridSpec(
            num_scalar_prefetch=0,
            grid=(B,),
            in_specs=[
                pl.BlockSpec((1, S, D), lambda b: (b, 0, 0)),          # x
                pl.BlockSpec((1, S, S), lambda b: (b, 0, 0)),          # relation
                pl.BlockSpec((D, 3 * P * D), lambda b: (0, 0)),        # all-particle QKV
                pl.BlockSpec((P, D, F), lambda b: (0, 0, 0)),          # particle W1
                pl.BlockSpec((P * F, D), lambda b: (0, 0)),            # row-stacked W2
                pl.BlockSpec((D, 3 * D), lambda b: (0, 0)),            # shared QKV
                pl.BlockSpec((D, F), lambda b: (0, 0)),                # shared W1
                pl.BlockSpec((F, D), lambda b: (0, 0)),                # shared W2
            ],
            out_specs=[
                pl.BlockSpec((1, S, 2 * D), lambda b: (b, 0, 0)),      # [enc_new|enc2]
                pl.BlockSpec((1, S, align_w), lambda b: (b, 0, 0)),    # [m2c|m2t|pad]
            ],
        ),
        compiler_params=pltpu.CompilerParams(
            dimension_semantics=("parallel",)),
    )(x, rel, wqkv_all, w1_p, w2cat, ewqkv, ew1, ew2)
    return enc_packed, align_packed


# -----------------------------------------------------------------------------
# Pure-JAX reference (f32) for correctness checks.
# -----------------------------------------------------------------------------
def _ref_rat_layer(x, rel, wq, wk, wv, w1, w2):
    d = x.shape[-1]
    q, k, v = x @ wq, x @ wk, x @ wv
    s = q @ k.T / jnp.sqrt(jnp.float32(d)) + rel
    a = jax.nn.softmax(s, axis=-1)
    ctx = a @ v
    return jnp.maximum(ctx @ w1, 0.0) @ w2 + ctx


def _ref_encode_one(x, rel, model):
    enc_new = jnp.mean(jnp.stack(
        [_ref_rat_layer(x, rel, model.wq[p], model.wk[p], model.wv[p],
                        model.w1[p], model.w2[p]) for p in range(model.P)],
        axis=0), axis=0)
    enc2 = _ref_rat_layer(enc_new, rel, model.ewq, model.ewk, model.ewv,
                          model.ew1, model.ew2)
    c = enc2[model.len_q: model.len_q + model.len_c]
    t = enc2[model.len_q + model.len_c:]
    m2c = jax.nn.softmax(enc2 @ c.T, axis=-1)
    m2t = jax.nn.softmax(enc2 @ t.T, axis=-1)
    return enc_new, enc2, m2c, m2t


# -----------------------------------------------------------------------------
# Model wrapper: mirrors BSemiBatchedEncDecModel._compute_enc_states — the
# whole batch is encoded in a single fused Pallas kernel, then per-example
# SpiderEncoderState-style dicts are built from views of the batched outputs.
# -----------------------------------------------------------------------------
class BSemiBatchedEncDec:
    def __init__(self, key, hidden=128, ffn=256, num_particles=5,
                 len_q=8, len_c=8, len_t=8):
        self.D, self.F, self.P = hidden, ffn, num_particles
        self.len_q, self.len_c, self.len_t = len_q, len_c, len_t
        ks = jax.random.split(key, 10)
        sc = 0.05
        D, F, P = hidden, ffn, num_particles
        # f32 master weights (match the PyTorch module's parameters)
        self.wq = jax.random.normal(ks[0], (P, D, D), jnp.float32) * sc
        self.wk = jax.random.normal(ks[1], (P, D, D), jnp.float32) * sc
        self.wv = jax.random.normal(ks[2], (P, D, D), jnp.float32) * sc
        self.w1 = jax.random.normal(ks[3], (P, D, F), jnp.float32) * sc
        self.w2 = jax.random.normal(ks[4], (P, F, D), jnp.float32) * sc
        self.ewq = jax.random.normal(ks[5], (D, D), jnp.float32) * sc
        self.ewk = jax.random.normal(ks[6], (D, D), jnp.float32) * sc
        self.ewv = jax.random.normal(ks[7], (D, D), jnp.float32) * sc
        self.ew1 = jax.random.normal(ks[8], (D, F), jnp.float32) * sc
        self.ew2 = jax.random.normal(ks[9], (F, D), jnp.float32) * sc
        # packed bf16 kernel weights; 1/sqrt(D) folded into the Q blocks.
        scale = 1.0 / math.sqrt(D)
        per_particle = jnp.concatenate(
            [self.wq * scale, self.wk, self.wv], axis=-1)        # (P, D, 3D)
        self.wqkv_all = jnp.transpose(per_particle, (1, 0, 2)).reshape(
            D, P * 3 * D).astype(jnp.bfloat16)                   # (D, 3*P*D)
        self.w1_p = self.w1.astype(jnp.bfloat16)                 # (P, D, F)
        self.w2cat = self.w2.reshape(P * F, D).astype(jnp.bfloat16)
        self.ewqkv = jnp.concatenate(
            [self.ewq * scale, self.ewk, self.ewv], axis=-1).astype(jnp.bfloat16)
        self.ew1_b = self.ew1.astype(jnp.bfloat16)
        self.ew2_b = self.ew2.astype(jnp.bfloat16)

    def forward(self, sample_embeds, relations, compute_loss=True):
        B, S, D = sample_embeds.shape
        enc_packed, align_packed = fused_encode(
            sample_embeds, relations,
            self.wqkv_all, self.w1_p, self.w2cat,
            self.ewqkv, self.ew1_b, self.ew2_b,
            len_q=self.len_q, len_c=self.len_c, len_t=self.len_t)

        enc_states = []
        for b in range(B):
            enc_new = enc_packed[b, :, :D]
            enc2 = enc_packed[b, :, D:]            # == memory (q;c;t contiguous)
            q_enc = enc2[: self.len_q]
            c_enc = enc2[self.len_q: self.len_q + self.len_c]
            t_enc = enc2[self.len_q + self.len_c:]
            m2c = align_packed[b, :, : self.len_c]
            m2t = align_packed[b, :, self.len_c: self.len_c + self.len_t]
            enc_states.append(dict(
                memory=enc2,
                question_memory=q_enc,
                schema_memory=enc2[self.len_q:],
                pointer_memories={'column': c_enc, 'table': t_enc},
                m2c_align_mat=m2c, m2t_align_mat=m2t,
                _enc_new=enc_new))
        ret = {'enc_states': enc_states}
        # TODO(synk): the grammar-based SQL decoder (and hence the training
        # loss) has no clean Pallas equivalent; decoder loss is not computed.
        return ret


if __name__ == "__main__":
    key = jax.random.PRNGKey(0)
    B, Lq, Lc, Lt, D, F, P = 2, 8, 8, 8, 128, 256, 5
    S = Lq + Lc + Lt  # 24

    k_embed, k_rel, k_model = jax.random.split(key, 3)
    # synthetic PLM ("bert_model") outputs and schema-linking relation biases
    sample_embeds = jax.random.normal(k_embed, (B, S, D), jnp.float32)
    relations = jax.random.normal(k_rel, (B, S, S), jnp.float32) * 0.1

    model = BSemiBatchedEncDec(k_model, hidden=D, ffn=F, num_particles=P,
                               len_q=Lq, len_c=Lc, len_t=Lt)

    out = model.forward(sample_embeds, relations)
    jax.block_until_ready(out)

    # correctness check of the fused Pallas kernel vs pure-JAX f32 reference
    # (bf16 matmul operands + approx reciprocal -> loose tolerance)
    for b in range(B):
        ref_enc_new, ref_enc2, ref_m2c, ref_m2t = _ref_encode_one(
            sample_embeds[b], relations[b], model)
        st = out['enc_states'][b]
        assert jnp.allclose(st['_enc_new'], ref_enc_new,
                            atol=3e-2, rtol=3e-2), "enc_new mismatch"
        assert jnp.allclose(st['memory'], ref_enc2,
                            atol=3e-2, rtol=3e-2), "enc2/memory mismatch"
        assert jnp.allclose(st['m2c_align_mat'], ref_m2c,
                            atol=2e-2), "m2c mismatch"
        assert jnp.allclose(st['m2t_align_mat'], ref_m2t,
                            atol=2e-2), "m2t mismatch"
        # sanity: alignment rows are probability distributions
        assert st['m2c_align_mat'].shape == (S, Lc)
        assert st['m2t_align_mat'].shape == (S, Lt)
        assert jnp.allclose(jnp.sum(st['m2c_align_mat'], axis=-1), 1.0,
                            atol=1e-2)
        assert jnp.allclose(jnp.sum(st['m2t_align_mat'], axis=-1), 1.0,
                            atol=1e-2)

    print("KERNEL_OK")
</pallas_src>

<mosaic_0001>
module attributes {stable_mosaic.version = 11 : i64} {
  func.func @_fused_encoder_kernel(%arg0: i32, %arg1: memref<1x24x128xf32, #tpu.memory_space<vmem>>, %arg2: memref<1x24x24xf32, #tpu.memory_space<vmem>>, %arg3: memref<128x1920xbf16, #tpu.memory_space<vmem>>, %arg4: memref<5x128x256xbf16, #tpu.memory_space<vmem>>, %arg5: memref<1280x128xbf16, #tpu.memory_space<vmem>>, %arg6: memref<128x384xbf16, #tpu.memory_space<vmem>>, %arg7: memref<128x256xbf16, #tpu.memory_space<vmem>>, %arg8: memref<256x128xbf16, #tpu.memory_space<vmem>>, %arg9: memref<1x24x256xf32, #tpu.memory_space<vmem>>, %arg10: memref<1x24x128xf32, #tpu.memory_space<vmem>>) attributes {dimension_semantics = [#tpu.dimension_semantics<parallel>], iteration_bounds = array<i64: 2>, scalar_prefetch = 0 : i64, scratch_operands = 0 : i64, tpu.core_type = #tpu.core_type<tc>, window_params = [{transform_indices = @transform_0, window_bounds = array<i64: 1, 24, 128>}, {transform_indices = @transform_1, window_bounds = array<i64: 1, 24, 24>}, {pipeline_mode = #tpu.pipeline_mode<synchronous>, transform_indices = @transform_2, window_bounds = array<i64: 128, 1920>}, {pipeline_mode = #tpu.pipeline_mode<synchronous>, transform_indices = @transform_3, window_bounds = array<i64: 5, 128, 256>}, {pipeline_mode = #tpu.pipeline_mode<synchronous>, transform_indices = @transform_4, window_bounds = array<i64: 1280, 128>}, {pipeline_mode = #tpu.pipeline_mode<synchronous>, transform_indices = @transform_5, window_bounds = array<i64: 128, 384>}, {pipeline_mode = #tpu.pipeline_mode<synchronous>, transform_indices = @transform_6, window_bounds = array<i64: 128, 256>}, {pipeline_mode = #tpu.pipeline_mode<synchronous>, transform_indices = @transform_7, window_bounds = array<i64: 256, 128>}, {transform_indices = @transform_8, window_bounds = array<i64: 1, 24, 256>}, {transform_indices = @transform_9, window_bounds = array<i64: 1, 24, 128>}]} {
    %c0 = arith.constant 0 : index
    %c0_0 = arith.constant 0 : index
    %c0_1 = arith.constant 0 : index
    %0 = vector.load %arg1[%c0, %c0_0, %c0_1] : memref<1x24x128xf32, #tpu.memory_space<vmem>>, vector<1x24x128xf32>
    %1 = vector.shape_cast %0 : vector<1x24x128xf32> to vector<24x128xf32>
    %2 = arith.truncf %1 : vector<24x128xf32> to vector<24x128xbf16>
    %c0_2 = arith.constant 0 : index
    %c0_3 = arith.constant 0 : index
    %c0_4 = arith.constant 0 : index
    %3 = vector.load %arg2[%c0_2, %c0_3, %c0_4] : memref<1x24x24xf32, #tpu.memory_space<vmem>>, vector<1x24x24xf32>
    %4 = vector.shape_cast %3 : vector<1x24x24xf32> to vector<24x24xf32>
    %c0_5 = arith.constant 0 : index
    %c0_6 = arith.constant 0 : index
    %5 = vector.load %arg3[%c0_5, %c0_6] : memref<128x1920xbf16, #tpu.memory_space<vmem>>, vector<128x1920xbf16>
    %cst = arith.constant dense<0.000000e+00> : vector<24x1920xf32>
    %6 = tpu.matmul %2, %5, %cst {dimension_numbers = #tpu.dot_dimension_numbers<[1], [0], [0], [1], [0, 0, 1, 1], [], []>} : vector<24x128xbf16>, vector<128x1920xbf16>, vector<24x1920xf32> -> vector<24x1920xf32>
    %cst_7 = arith.constant 0.000000e+00 : f32
    %7 = vector.broadcast %cst_7 : f32 to vector<24x128xf32>
    %8 = vector.extract_strided_slice %6 {offsets = [0, 0], sizes = [24, 128], strides = [1, 1]} : vector<24x1920xf32> to vector<24x128xf32>
    %9 = vector.extract_strided_slice %6 {offsets = [0, 128], sizes = [24, 128], strides = [1, 1]} : vector<24x1920xf32> to vector<24x128xf32>
    %10 = vector.extract_strided_slice %6 {offsets = [0, 256], sizes = [24, 128], strides = [1, 1]} : vector<24x1920xf32> to vector<24x128xf32>
    %11 = arith.truncf %8 : vector<24x128xf32> to vector<24x128xbf16>
    %12 = tpu.transpose %9, [1, 0] : vector<24x128xf32> -> vector<128x24xf32>
    %13 = arith.truncf %12 : vector<128x24xf32> to vector<128x24xbf16>
    %cst_8 = arith.constant dense<0.000000e+00> : vector<24x24xf32>
    %14 = tpu.matmul %11, %13, %cst_8 {dimension_numbers = #tpu.dot_dimension_numbers<[1], [0], [0], [1], [0, 0, 1, 1], [], []>} : vector<24x128xbf16>, vector<128x24xbf16>, vector<24x24xf32> -> vector<24x24xf32>
    %15 = arith.addf %14, %4 : vector<24x24xf32>
    %cst_9 = arith.constant dense<0xFF800000> : vector<24xf32>
    %16 = vector.multi_reduction <maximumf>, %15, %cst_9 [1] : vector<24x24xf32> to vector<24xf32>
    %17 = vector.shape_cast %16 : vector<24xf32> to vector<24x1xf32>
    %18 = vector.broadcast %17 : vector<24x1xf32> to vector<24x24xf32>
    %19 = arith.subf %15, %18 : vector<24x24xf32>
    %20 = math.exp %19 : vector<24x24xf32>
    %cst_10 = arith.constant dense<0.000000e+00> : vector<24xf32>
    %21 = vector.multi_reduction <add>, %20, %cst_10 [1] : vector<24x24xf32> to vector<24xf32>
    %22 = vector.shape_cast %21 : vector<24xf32> to vector<24x1xf32>
    %23 = tpu.reciprocal %22 {approx = true} : vector<24x1xf32> -> vector<24x1xf32>
    %24 = vector.broadcast %23 : vector<24x1xf32> to vector<24x24xf32>
    %25 = arith.mulf %20, %24 : vector<24x24xf32>
    %26 = arith.truncf %25 : vector<24x24xf32> to vector<24x24xbf16>
    %27 = arith.truncf %10 : vector<24x128xf32> to vector<24x128xbf16>
    %cst_11 = arith.constant dense<0.000000e+00> : vector<24x128xf32>
    %28 = tpu.matmul %26, %27, %cst_11 {dimension_numbers = #tpu.dot_dimension_numbers<[1], [0], [0], [1], [0, 0, 1, 1], [], []>} : vector<24x24xbf16>, vector<24x128xbf16>, vector<24x128xf32> -> vector<24x128xf32>
    %29 = arith.addf %7, %28 : vector<24x128xf32>
    %30 = arith.truncf %28 : vector<24x128xf32> to vector<24x128xbf16>
    %c0_12 = arith.constant 0 : index
    %c0_13 = arith.constant 0 : index
    %c0_14 = arith.constant 0 : index
    %31 = vector.load %arg4[%c0_12, %c0_13, %c0_14] : memref<5x128x256xbf16, #tpu.memory_space<vmem>>, vector<1x128x256xbf16>
    %32 = vector.shape_cast %31 : vector<1x128x256xbf16> to vector<128x256xbf16>
    %cst_15 = arith.constant dense<0.000000e+00> : vector<24x256xf32>
    %33 = tpu.matmul %30, %32, %cst_15 {dimension_numbers = #tpu.dot_dimension_numbers<[1], [0], [0], [1], [0, 0, 1, 1], [], []>} : vector<24x128xbf16>, vector<128x256xbf16>, vector<24x256xf32> -> vector<24x256xf32>
    %cst_16 = arith.constant 0.000000e+00 : f32
    %34 = vector.broadcast %cst_16 : f32 to vector<24x256xf32>
    %35 = arith.maximumf %33, %34 : vector<24x256xf32>
    %36 = arith.truncf %35 : vector<24x256xf32> to vector<24x256xbf16>
    %37 = vector.extract_strided_slice %6 {offsets = [0, 384], sizes = [24, 128], strides = [1, 1]} : vector<24x1920xf32> to vector<24x128xf32>
    %38 = vector.extract_strided_slice %6 {offsets = [0, 512], sizes = [24, 128], strides = [1, 1]} : vector<24x1920xf32> to vector<24x128xf32>
    %39 = vector.extract_strided_slice %6 {offsets = [0, 640], sizes = [24, 128], strides = [1, 1]} : vector<24x1920xf32> to vector<24x128xf32>
    %40 = arith.truncf %37 : vector<24x128xf32> to vector<24x128xbf16>
    %41 = tpu.transpose %38, [1, 0] : vector<24x128xf32> -> vector<128x24xf32>
    %42 = arith.truncf %41 : vector<128x24xf32> to vector<128x24xbf16>
    %cst_17 = arith.constant dense<0.000000e+00> : vector<24x24xf32>
    %43 = tpu.matmul %40, %42, %cst_17 {dimension_numbers = #tpu.dot_dimension_numbers<[1], [0], [0], [1], [0, 0, 1, 1], [], []>} : vector<24x128xbf16>, vector<128x24xbf16>, vector<24x24xf32> -> vector<24x24xf32>
    %44 = arith.addf %43, %4 : vector<24x24xf32>
    %cst_18 = arith.constant dense<0xFF800000> : vector<24xf32>
    %45 = vector.multi_reduction <maximumf>, %44, %cst_18 [1] : vector<24x24xf32> to vector<24xf32>
    %46 = vector.shape_cast %45 : vector<24xf32> to vector<24x1xf32>
    %47 = vector.broadcast %46 : vector<24x1xf32> to vector<24x24xf32>
    %48 = arith.subf %44, %47 : vector<24x24xf32>
    %49 = math.exp %48 : vector<24x24xf32>
    %cst_19 = arith.constant dense<0.000000e+00> : vector<24xf32>
    %50 = vector.multi_reduction <add>, %49, %cst_19 [1] : vector<24x24xf32> to vector<24xf32>
    %51 = vector.shape_cast %50 : vector<24xf32> to vector<24x1xf32>
    %52 = tpu.reciprocal %51 {approx = true} : vector<24x1xf32> -> vector<24x1xf32>
    %53 = vector.broadcast %52 : vector<24x1xf32> to vector<24x24xf32>
    %54 = arith.mulf %49, %53 : vector<24x24xf32>
    %55 = arith.truncf %54 : vector<24x24xf32> to vector<24x24xbf16>
    %56 = arith.truncf %39 : vector<24x128xf32> to vector<24x128xbf16>
    %cst_20 = arith.constant dense<0.000000e+00> : vector<24x128xf32>
    %57 = tpu.matmul %55, %56, %cst_20 {dimension_numbers = #tpu.dot_dimension_numbers<[1], [0], [0], [1], [0, 0, 1, 1], [], []>} : vector<24x24xbf16>, vector<24x128xbf16>, vector<24x128xf32> -> vector<24x128xf32>
    %58 = arith.addf %29, %57 : vector<24x128xf32>
    %59 = arith.truncf %57 : vector<24x128xf32> to vector<24x128xbf16>
    %c1 = arith.constant 1 : index
    %c0_21 = arith.constant 0 : index
    %c0_22 = arith.constant 0 : index
    %60 = vector.load %arg4[%c1, %c0_21, %c0_22] : memref<5x128x256xbf16, #tpu.memory_space<vmem>>, vector<1x128x256xbf16>
    %61 = vector.shape_cast %60 : vector<1x128x256xbf16> to vector<128x256xbf16>
    %cst_23 = arith.constant dense<0.000000e+00> : vector<24x256xf32>
    %62 = tpu.matmul %59, %61, %cst_23 {dimension_numbers = #tpu.dot_dimension_numbers<[1], [0], [0], [1], [0, 0, 1, 1], [], []>} : vector<24x128xbf16>, vector<128x256xbf16>, vector<24x256xf32> -> vector<24x256xf32>
    %cst_24 = arith.constant 0.000000e+00 : f32
    %63 = vector.broadcast %cst_24 : f32 to vector<24x256xf32>
    %64 = arith.maximumf %62, %63 : vector<24x256xf32>
    %65 = arith.truncf %64 : vector<24x256xf32> to vector<24x256xbf16>
    %66 = vector.extract_strided_slice %6 {offsets = [0, 768], sizes = [24, 128], strides = [1, 1]} : vector<24x1920xf32> to vector<24x128xf32>
    %67 = vector.extract_strided_slice %6 {offsets = [0, 896], sizes = [24, 128], strides = [1, 1]} : vector<24x1920xf32> to vector<24x128xf32>
    %68 = vector.extract_strided_slice %6 {offsets = [0, 1024], sizes = [24, 128], strides = [1, 1]} : vector<24x1920xf32> to vector<24x128xf32>
    %69 = arith.truncf %66 : vector<24x128xf32> to vector<24x128xbf16>
    %70 = tpu.transpose %67, [1, 0] : vector<24x128xf32> -> vector<128x24xf32>
    %71 = arith.truncf %70 : vector<128x24xf32> to vector<128x24xbf16>
    %cst_25 = arith.constant dense<0.000000e+00> : vector<24x24xf32>
    %72 = tpu.matmul %69, %71, %cst_25 {dimension_numbers = #tpu.dot_dimension_numbers<[1], [0], [0], [1], [0, 0, 1, 1], [], []>} : vector<24x128xbf16>, vector<128x24xbf16>, vector<24x24xf32> -> vector<24x24xf32>
    %73 = arith.addf %72, %4 : vector<24x24xf32>
    %cst_26 = arith.constant dense<0xFF800000> : vector<24xf32>
    %74 = vector.multi_reduction <maximumf>, %73, %cst_26 [1] : vector<24x24xf32> to vector<24xf32>
    %75 = vector.shape_cast %74 : vector<24xf32> to vector<24x1xf32>
    %76 = vector.broadcast %75 : vector<24x1xf32> to vector<24x24xf32>
    %77 = arith.subf %73, %76 : vector<24x24xf32>
    %78 = math.exp %77 : vector<24x24xf32>
    %cst_27 = arith.constant dense<0.000000e+00> : vector<24xf32>
    %79 = vector.multi_reduction <add>, %78, %cst_27 [1] : vector<24x24xf32> to vector<24xf32>
    %80 = vector.shape_cast %79 : vector<24xf32> to vector<24x1xf32>
    %81 = tpu.reciprocal %80 {approx = true} : vector<24x1xf32> -> vector<24x1xf32>
    %82 = vector.broadcast %81 : vector<24x1xf32> to vector<24x24xf32>
    %83 = arith.mulf %78, %82 : vector<24x24xf32>
    %84 = arith.truncf %83 : vector<24x24xf32> to vector<24x24xbf16>
    %85 = arith.truncf %68 : vector<24x128xf32> to vector<24x128xbf16>
    %cst_28 = arith.constant dense<0.000000e+00> : vector<24x128xf32>
    %86 = tpu.matmul %84, %85, %cst_28 {dimension_numbers = #tpu.dot_dimension_numbers<[1], [0], [0], [1], [0, 0, 1, 1], [], []>} : vector<24x24xbf16>, vector<24x128xbf16>, vector<24x128xf32> -> vector<24x128xf32>
    %87 = arith.addf %58, %86 : vector<24x128xf32>
    %88 = arith.truncf %86 : vector<24x128xf32> to vector<24x128xbf16>
    %c2 = arith.constant 2 : index
    %c0_29 = arith.constant 0 : index
    %c0_30 = arith.constant 0 : index
    %89 = vector.load %arg4[%c2, %c0_29, %c0_30] : memref<5x128x256xbf16, #tpu.memory_space<vmem>>, vector<1x128x256xbf16>
    %90 = vector.shape_cast %89 : vector<1x128x256xbf16> to vector<128x256xbf16>
    %cst_31 = arith.constant dense<0.000000e+00> : vector<24x256xf32>
    %91 = tpu.matmul %88, %90, %cst_31 {dimension_numbers = #tpu.dot_dimension_numbers<[1], [0], [0], [1], [0, 0, 1, 1], [], []>} : vector<24x128xbf16>, vector<128x256xbf16>, vector<24x256xf32> -> vector<24x256xf32>
    %cst_32 = arith.constant 0.000000e+00 : f32
    %92 = vector.broadcast %cst_32 : f32 to vector<24x256xf32>
    %93 = arith.maximumf %91, %92 : vector<24x256xf32>
    %94 = arith.truncf %93 : vector<24x256xf32> to vector<24x256xbf16>
    %95 = vector.extract_strided_slice %6 {offsets = [0, 1152], sizes = [24, 128], strides = [1, 1]} : vector<24x1920xf32> to vector<24x128xf32>
    %96 = vector.extract_strided_slice %6 {offsets = [0, 1280], sizes = [24, 128], strides = [1, 1]} : vector<24x1920xf32> to vector<24x128xf32>
    %97 = vector.extract_strided_slice %6 {offsets = [0, 1408], sizes = [24, 128], strides = [1, 1]} : vector<24x1920xf32> to vector<24x128xf32>
    %98 = arith.truncf %95 : vector<24x128xf32> to vector<24x128xbf16>
    %99 = tpu.transpose %96, [1, 0] : vector<24x128xf32> -> vector<128x24xf32>
    %100 = arith.truncf %99 : vector<128x24xf32> to vector<128x24xbf16>
    %cst_33 = arith.constant dense<0.000000e+00> : vector<24x24xf32>
    %101 = tpu.matmul %98, %100, %cst_33 {dimension_numbers = #tpu.dot_dimension_numbers<[1], [0], [0], [1], [0, 0, 1, 1], [], []>} : vector<24x128xbf16>, vector<128x24xbf16>, vector<24x24xf32> -> vector<24x24xf32>
    %102 = arith.addf %101, %4 : vector<24x24xf32>
    %cst_34 = arith.constant dense<0xFF800000> : vector<24xf32>
    %103 = vector.multi_reduction <maximumf>, %102, %cst_34 [1] : vector<24x24xf32> to vector<24xf32>
    %104 = vector.shape_cast %103 : vector<24xf32> to vector<24x1xf32>
    %105 = vector.broadcast %104 : vector<24x1xf32> to vector<24x24xf32>
    %106 = arith.subf %102, %105 : vector<24x24xf32>
    %107 = math.exp %106 : vector<24x24xf32>
    %cst_35 = arith.constant dense<0.000000e+00> : vector<24xf32>
    %108 = vector.multi_reduction <add>, %107, %cst_35 [1] : vector<24x24xf32> to vector<24xf32>
    %109 = vector.shape_cast %108 : vector<24xf32> to vector<24x1xf32>
    %110 = tpu.reciprocal %109 {approx = true} : vector<24x1xf32> -> vector<24x1xf32>
    %111 = vector.broadcast %110 : vector<24x1xf32> to vector<24x24xf32>
    %112 = arith.mulf %107, %111 : vector<24x24xf32>
    %113 = arith.truncf %112 : vector<24x24xf32> to vector<24x24xbf16>
    %114 = arith.truncf %97 : vector<24x128xf32> to vector<24x128xbf16>
    %cst_36 = arith.constant dense<0.000000e+00> : vector<24x128xf32>
    %115 = tpu.matmul %113, %114, %cst_36 {dimension_numbers = #tpu.dot_dimension_numbers<[1], [0], [0], [1], [0, 0, 1, 1], [], []>} : vector<24x24xbf16>, vector<24x128xbf16>, vector<24x128xf32> -> vector<24x128xf32>
    %116 = arith.addf %87, %115 : vector<24x128xf32>
    %117 = arith.truncf %115 : vector<24x128xf32> to vector<24x128xbf16>
    %c3 = arith.constant 3 : index
    %c0_37 = arith.constant 0 : index
    %c0_38 = arith.constant 0 : index
    %118 = vector.load %arg4[%c3, %c0_37, %c0_38] : memref<5x128x256xbf16, #tpu.memory_space<vmem>>, vector<1x128x256xbf16>
    %119 = vector.shape_cast %118 : vector<1x128x256xbf16> to vector<128x256xbf16>
    %cst_39 = arith.constant dense<0.000000e+00> : vector<24x256xf32>
    %120 = tpu.matmul %117, %119, %cst_39 {dimension_numbers = #tpu.dot_dimension_numbers<[1], [0], [0], [1], [0, 0, 1, 1], [], []>} : vector<24x128xbf16>, vector<128x256xbf16>, vector<24x256xf32> -> vector<24x256xf32>
    %cst_40 = arith.constant 0.000000e+00 : f32
    %121 = vector.broadcast %cst_40 : f32 to vector<24x256xf32>
    %122 = arith.maximumf %120, %121 : vector<24x256xf32>
    %123 = arith.truncf %122 : vector<24x256xf32> to vector<24x256xbf16>
    %124 = vector.extract_strided_slice %6 {offsets = [0, 1536], sizes = [24, 128], strides = [1, 1]} : vector<24x1920xf32> to vector<24x128xf32>
    %125 = vector.extract_strided_slice %6 {offsets = [0, 1664], sizes = [24, 128], strides = [1, 1]} : vector<24x1920xf32> to vector<24x128xf32>
    %126 = vector.extract_strided_slice %6 {offsets = [0, 1792], sizes = [24, 128], strides = [1, 1]} : vector<24x1920xf32> to vector<24x128xf32>
    %127 = arith.truncf %124 : vector<24x128xf32> to vector<24x128xbf16>
    %128 = tpu.transpose %125, [1, 0] : vector<24x128xf32> -> vector<128x24xf32>
    %129 = arith.truncf %128 : vector<128x24xf32> to vector<128x24xbf16>
    %cst_41 = arith.constant dense<0.000000e+00> : vector<24x24xf32>
    %130 = tpu.matmul %127, %129, %cst_41 {dimension_numbers = #tpu.dot_dimension_numbers<[1], [0], [0], [1], [0, 0, 1, 1], [], []>} : vector<24x128xbf16>, vector<128x24xbf16>, vector<24x24xf32> -> vector<24x24xf32>
    %131 = arith.addf %130, %4 : vector<24x24xf32>
    %cst_42 = arith.constant dense<0xFF800000> : vector<24xf32>
    %132 = vector.multi_reduction <maximumf>, %131, %cst_42 [1] : vector<24x24xf32> to vector<24xf32>
    %133 = vector.shape_cast %132 : vector<24xf32> to vector<24x1xf32>
    %134 = vector.broadcast %133 : vector<24x1xf32> to vector<24x24xf32>
    %135 = arith.subf %131, %134 : vector<24x24xf32>
    %136 = math.exp %135 : vector<24x24xf32>
    %cst_43 = arith.constant dense<0.000000e+00> : vector<24xf32>
    %137 = vector.multi_reduction <add>, %136, %cst_43 [1] : vector<24x24xf32> to vector<24xf32>
    %138 = vector.shape_cast %137 : vector<24xf32> to vector<24x1xf32>
    %139 = tpu.reciprocal %138 {approx = true} : vector<24x1xf32> -> vector<24x1xf32>
    %140 = vector.broadcast %139 : vector<24x1xf32> to vector<24x24xf32>
    %141 = arith.mulf %136, %140 : vector<24x24xf32>
    %142 = arith.truncf %141 : vector<24x24xf32> to vector<24x24xbf16>
    %143 = arith.truncf %126 : vector<24x128xf32> to vector<24x128xbf16>
    %cst_44 = arith.constant dense<0.000000e+00> : vector<24x128xf32>
    %144 = tpu.matmul %142, %143, %cst_44 {dimension_numbers = #tpu.dot_dimension_numbers<[1], [0], [0], [1], [0, 0, 1, 1], [], []>} : vector<24x24xbf16>, vector<24x128xbf16>, vector<24x128xf32> -> vector<24x128xf32>
    %145 = arith.addf %116, %144 : vector<24x128xf32>
    %146 = arith.truncf %144 : vector<24x128xf32> to vector<24x128xbf16>
    %c4 = arith.constant 4 : index
    %c0_45 = arith.constant 0 : index
    %c0_46 = arith.constant 0 : index
    %147 = vector.load %arg4[%c4, %c0_45, %c0_46] : memref<5x128x256xbf16, #tpu.memory_space<vmem>>, vector<1x128x256xbf16>
    %148 = vector.shape_cast %147 : vector<1x128x256xbf16> to vector<128x256xbf16>
    %cst_47 = arith.constant dense<0.000000e+00> : vector<24x256xf32>
    %149 = tpu.matmul %146, %148, %cst_47 {dimension_numbers = #tpu.dot_dimension_numbers<[1], [0], [0], [1], [0, 0, 1, 1], [], []>} : vector<24x128xbf16>, vector<128x256xbf16>, vector<24x256xf32> -> vector<24x256xf32>
    %cst_48 = arith.constant 0.000000e+00 : f32
    %150 = vector.broadcast %cst_48 : f32 to vector<24x256xf32>
    %151 = arith.maximumf %149, %150 : vector<24x256xf32>
    %152 = arith.truncf %151 : vector<24x256xf32> to vector<24x256xbf16>
    %153 = tpu.concatenate %36, %65, %94, %123, %152 in 1 : vector<24x256xbf16>, vector<24x256xbf16>, vector<24x256xbf16>, vector<24x256xbf16>, vector<24x256xbf16> -> vector<24x1280xbf16>
    %c0_49 = arith.constant 0 : index
    %c0_50 = arith.constant 0 : index
    %154 = vector.load %arg5[%c0_49, %c0_50] : memref<1280x128xbf16, #tpu.memory_space<vmem>>, vector<1280x128xbf16>
    %cst_51 = arith.constant dense<0.000000e+00> : vector<24x128xf32>
    %155 = tpu.matmul %153, %154, %cst_51 {dimension_numbers = #tpu.dot_dimension_numbers<[1], [0], [0], [1], [0, 0, 1, 1], [], []>} : vector<24x1280xbf16>, vector<1280x128xbf16>, vector<24x128xf32> -> vector<24x128xf32>
    %156 = arith.addf %145, %155 : vector<24x128xf32>
    %cst_52 = arith.constant 2.000000e-01 : f32
    %157 = vector.broadcast %cst_52 : f32 to vector<24x128xf32>
    %158 = arith.mulf %156, %157 : vector<24x128xf32>
    %159 = arith.truncf %158 : vector<24x128xf32> to vector<24x128xbf16>
    %c0_53 = arith.constant 0 : index
    %c0_54 = arith.constant 0 : index
    %160 = vector.load %arg6[%c0_53, %c0_54] : memref<128x384xbf16, #tpu.memory_space<vmem>>, vector<128x384xbf16>
    %c0_55 = arith.constant 0 : index
    %c0_56 = arith.constant 0 : index
    %161 = vector.load %arg7[%c0_55, %c0_56] : memref<128x256xbf16, #tpu.memory_space<vmem>>, vector<128x256xbf16>
    %c0_57 = arith.constant 0 : index
    %c0_58 = arith.constant 0 : index
    %162 = vector.load %arg8[%c0_57, %c0_58] : memref<256x128xbf16, #tpu.memory_space<vmem>>, vector<256x128xbf16>
    %cst_59 = arith.constant dense<0.000000e+00> : vector<24x384xf32>
    %163 = tpu.matmul %159, %160, %cst_59 {dimension_numbers = #tpu.dot_dimension_numbers<[1], [0], [0], [1], [0, 0, 1, 1], [], []>} : vector<24x128xbf16>, vector<128x384xbf16>, vector<24x384xf32> -> vector<24x384xf32>
    %164 = vector.extract_strided_slice %163 {offsets = [0, 0], sizes = [24, 128], strides = [1, 1]} : vector<24x384xf32> to vector<24x128xf32>
    %165 = vector.extract_strided_slice %163 {offsets = [0, 128], sizes = [24, 128], strides = [1, 1]} : vector<24x384xf32> to vector<24x128xf32>
    %166 = vector.extract_strided_slice %163 {offsets = [0, 256], sizes = [24, 128], strides = [1, 1]} : vector<24x384xf32> to vector<24x128xf32>
    %167 = arith.truncf %164 : vector<24x128xf32> to vector<24x128xbf16>
    %168 = tpu.transpose %165, [1, 0] : vector<24x128xf32> -> vector<128x24xf32>
    %169 = arith.truncf %168 : vector<128x24xf32> to vector<128x24xbf16>
    %cst_60 = arith.constant dense<0.000000e+00> : vector<24x24xf32>
    %170 = tpu.matmul %167, %169, %cst_60 {dimension_numbers = #tpu.dot_dimension_numbers<[1], [0], [0], [1], [0, 0, 1, 1], [], []>} : vector<24x128xbf16>, vector<128x24xbf16>, vector<24x24xf32> -> vector<24x24xf32>
    %171 = arith.addf %170, %4 : vector<24x24xf32>
    %cst_61 = arith.constant dense<0xFF800000> : vector<24xf32>
    %172 = vector.multi_reduction <maximumf>, %171, %cst_61 [1] : vector<24x24xf32> to vector<24xf32>
    %173 = vector.shape_cast %172 : vector<24xf32> to vector<24x1xf32>
    %174 = vector.broadcast %173 : vector<24x1xf32> to vector<24x24xf32>
    %175 = arith.subf %171, %174 : vector<24x24xf32>
    %176 = math.exp %175 : vector<24x24xf32>
    %cst_62 = arith.constant dense<0.000000e+00> : vector<24xf32>
    %177 = vector.multi_reduction <add>, %176, %cst_62 [1] : vector<24x24xf32> to vector<24xf32>
    %178 = vector.shape_cast %177 : vector<24xf32> to vector<24x1xf32>
    %179 = tpu.reciprocal %178 {approx = true} : vector<24x1xf32> -> vector<24x1xf32>
    %180 = vector.broadcast %179 : vector<24x1xf32> to vector<24x24xf32>
    %181 = arith.mulf %176, %180 : vector<24x24xf32>
    %182 = arith.truncf %181 : vector<24x24xf32> to vector<24x24xbf16>
    %183 = arith.truncf %166 : vector<24x128xf32> to vector<24x128xbf16>
    %cst_63 = arith.constant dense<0.000000e+00> : vector<24x128xf32>
    %184 = tpu.matmul %182, %183, %cst_63 {dimension_numbers = #tpu.dot_dimension_numbers<[1], [0], [0], [1], [0, 0, 1, 1], [], []>} : vector<24x24xbf16>, vector<24x128xbf16>, vector<24x128xf32> -> vector<24x128xf32>
    %185 = arith.truncf %184 : vector<24x128xf32> to vector<24x128xbf16>
    %cst_64 = arith.constant dense<0.000000e+00> : vector<24x256xf32>
    %186 = tpu.matmul %185, %161, %cst_64 {dimension_numbers = #tpu.dot_dimension_numbers<[1], [0], [0], [1], [0, 0, 1, 1], [], []>} : vector<24x128xbf16>, vector<128x256xbf16>, vector<24x256xf32> -> vector<24x256xf32>
    %cst_65 = arith.constant 0.000000e+00 : f32
    %187 = vector.broadcast %cst_65 : f32 to vector<24x256xf32>
    %188 = arith.maximumf %186, %187 : vector<24x256xf32>
    %189 = arith.truncf %188 : vector<24x256xf32> to vector<24x256xbf16>
    %cst_66 = arith.constant dense<0.000000e+00> : vector<24x128xf32>
    %190 = tpu.matmul %189, %162, %cst_66 {dimension_numbers = #tpu.dot_dimension_numbers<[1], [0], [0], [1], [0, 0, 1, 1], [], []>} : vector<24x256xbf16>, vector<256x128xbf16>, vector<24x128xf32> -> vector<24x128xf32>
    %191 = arith.addf %190, %184 : vector<24x128xf32>
    %192 = tpu.concatenate %158, %191 in 1 : vector<24x128xf32>, vector<24x128xf32> -> vector<24x256xf32>
    %c0_67 = arith.constant 0 : index
    %c0_68 = arith.constant 0 : index
    %c0_69 = arith.constant 0 : index
    %193 = vector.load %arg9[%c0_67, %c0_68, %c0_69] : memref<1x24x256xf32, #tpu.memory_space<vmem>>, vector<1x24x256xf32>
    %194 = vector.shape_cast %193 : vector<1x24x256xf32> to vector<24x256xf32>
    %195 = vector.shape_cast %192 : vector<24x256xf32> to vector<1x24x256xf32>
    tpu.vector_store %arg9[%c0_67, %c0_68, %c0_69], %195 {strides = array<i32>} : memref<1x24x256xf32, #tpu.memory_space<vmem>>, vector<1x24x256xf32>,
    %196 = vector.extract_strided_slice %191 {offsets = [8, 0], sizes = [16, 128], strides = [1, 1]} : vector<24x128xf32> to vector<16x128xf32>
    %197 = arith.truncf %191 : vector<24x128xf32> to vector<24x128xbf16>
    %198 = tpu.transpose %196, [1, 0] : vector<16x128xf32> -> vector<128x16xf32>
    %199 = arith.truncf %198 : vector<128x16xf32> to vector<128x16xbf16>
    %cst_70 = arith.constant dense<0.000000e+00> : vector<24x16xf32>
    %200 = tpu.matmul %197, %199, %cst_70 {dimension_numbers = #tpu.dot_dimension_numbers<[1], [0], [0], [1], [0, 0, 1, 1], [], []>} : vector<24x128xbf16>, vector<128x16xbf16>, vector<24x16xf32> -> vector<24x16xf32>
    %201 = vector.extract_strided_slice %200 {offsets = [0, 0], sizes = [24, 8], strides = [1, 1]} : vector<24x16xf32> to vector<24x8xf32>
    %cst_71 = arith.constant dense<0xFF800000> : vector<24xf32>
    %202 = vector.multi_reduction <maximumf>, %201, %cst_71 [1] : vector<24x8xf32> to vector<24xf32>
    %203 = vector.shape_cast %202 : vector<24xf32> to vector<24x1xf32>
    %204 = vector.broadcast %203 : vector<24x1xf32> to vector<24x8xf32>
    %205 = arith.subf %201, %204 : vector<24x8xf32>
    %206 = math.exp %205 : vector<24x8xf32>
    %cst_72 = arith.constant dense<0.000000e+00> : vector<24xf32>
    %207 = vector.multi_reduction <add>, %206, %cst_72 [1] : vector<24x8xf32> to vector<24xf32>
    %208 = vector.shape_cast %207 : vector<24xf32> to vector<24x1xf32>
    %209 = tpu.reciprocal %208 {approx = true} : vector<24x1xf32> -> vector<24x1xf32>
    %210 = vector.broadcast %209 : vector<24x1xf32> to vector<24x8xf32>
    %211 = arith.mulf %206, %210 : vector<24x8xf32>
    %212 = vector.extract_strided_slice %200 {offsets = [0, 8], sizes = [24, 8], strides = [1, 1]} : vector<24x16xf32> to vector<24x8xf32>
    %cst_73 = arith.constant dense<0xFF800000> : vector<24xf32>
    %213 = vector.multi_reduction <maximumf>, %212, %cst_73 [1] : vector<24x8xf32> to vector<24xf32>
    %214 = vector.shape_cast %213 : vector<24xf32> to vector<24x1xf32>
    %215 = vector.broadcast %214 : vector<24x1xf32> to vector<24x8xf32>
    %216 = arith.subf %212, %215 : vector<24x8xf32>
    %217 = math.exp %216 : vector<24x8xf32>
    %cst_74 = arith.constant dense<0.000000e+00> : vector<24xf32>
    %218 = vector.multi_reduction <add>, %217, %cst_74 [1] : vector<24x8xf32> to vector<24xf32>
    %219 = vector.shape_cast %218 : vector<24xf32> to vector<24x1xf32>
    %220 = tpu.reciprocal %219 {approx = true} : vector<24x1xf32> -> vector<24x1xf32>
    %221 = vector.broadcast %220 : vector<24x1xf32> to vector<24x8xf32>
    %222 = arith.mulf %217, %221 : vector<24x8xf32>
    %cst_75 = arith.constant 0.000000e+00 : f32
    %223 = vector.broadcast %cst_75 : f32 to vector<24x112xf32>
    %224 = tpu.concatenate %211, %222, %223 in 1 : vector<24x8xf32>, vector<24x8xf32>, vector<24x112xf32> -> vector<24x128xf32>
    %c0_76 = arith.constant 0 : index
    %c0_77 = arith.constant 0 : index
    %c0_78 = arith.constant 0 : index
    %225 = vector.load %arg10[%c0_76, %c0_77, %c0_78] : memref<1x24x128xf32, #tpu.memory_space<vmem>>, vector<1x24x128xf32>
    %226 = vector.shape_cast %225 : vector<1x24x128xf32> to vector<24x128xf32>
    %227 = vector.shape_cast %224 : vector<24x128xf32> to vector<1x24x128xf32>
    tpu.vector_store %arg10[%c0_76, %c0_77, %c0_78], %227 {strides = array<i32>} : memref<1x24x128xf32, #tpu.memory_space<vmem>>, vector<1x24x128xf32>,
    return
  }
  func.func @transform_0(%arg0: i32) -> (i32, i32, i32) {
    %c0_i32 = arith.constant 0 : i32
    %c0_i32_0 = arith.constant 0 : i32
    %c0_i32_1 = arith.constant 0 : i32
    return %arg0, %c0_i32, %c0_i32_0 : i32, i32, i32
  }
  func.func @transform_1(%arg0: i32) -> (i32, i32, i32) {
    %c0_i32 = arith.constant 0 : i32
    %c0_i32_0 = arith.constant 0 : i32
    %c0_i32_1 = arith.constant 0 : i32
    return %arg0, %c0_i32, %c0_i32_0 : i32, i32, i32
  }
  func.func @transform_2(%arg0: i32) -> (i32, i32) {
    %c0_i32 = arith.constant 0 : i32
    %c0_i32_0 = arith.constant 0 : i32
    %c0_i32_1 = arith.constant 0 : i32
    return %c0_i32, %c0_i32_0 : i32, i32
  }
  func.func @transform_3(%arg0: i32) -> (i32, i32, i32) {
    %c0_i32 = arith.constant 0 : i32
    %c0_i32_0 = arith.constant 0 : i32
    %c0_i32_1 = arith.constant 0 : i32
    %c0_i32_2 = arith.constant 0 : i32
    return %c0_i32, %c0_i32_0, %c0_i32_1 : i32, i32, i32
  }
  func.func @transform_4(%arg0: i32) -> (i32, i32) {
    %c0_i32 = arith.constant 0 : i32
    %c0_i32_0 = arith.constant 0 : i32
    %c0_i32_1 = arith.constant 0 : i32
    return %c0_i32, %c0_i32_0 : i32, i32
  }
  func.func @transform_5(%arg0: i32) -> (i32, i32) {
    %c0_i32 = arith.constant 0 : i32
    %c0_i32_0 = arith.constant 0 : i32
    %c0_i32_1 = arith.constant 0 : i32
    return %c0_i32, %c0_i32_0 : i32, i32
  }
  func.func @transform_6(%arg0: i32) -> (i32, i32) {
    %c0_i32 = arith.constant 0 : i32
    %c0_i32_0 = arith.constant 0 : i32
    %c0_i32_1 = arith.constant 0 : i32
    return %c0_i32, %c0_i32_0 : i32, i32
  }
  func.func @transform_7(%arg0: i32) -> (i32, i32) {
    %c0_i32 = arith.constant 0 : i32
    %c0_i32_0 = arith.constant 0 : i32
    %c0_i32_1 = arith.constant 0 : i32
    return %c0_i32, %c0_i32_0 : i32, i32
  }
  func.func @transform_8(%arg0: i32) -> (i32, i32, i32) {
    %c0_i32 = arith.constant 0 : i32
    %c0_i32_0 = arith.constant 0 : i32
    %c0_i32_1 = arith.constant 0 : i32
    return %arg0, %c0_i32, %c0_i32_0 : i32, i32, i32
  }
  func.func @transform_9(%arg0: i32) -> (i32, i32, i32) {
    %c0_i32 = arith.constant 0 : i32
    %c0_i32_0 = arith.constant 0 : i32
    %c0_i32_1 = arith.constant 0 : i32
    return %arg0, %c0_i32, %c0_i32_0 : i32, i32, i32
  }
}

</mosaic_0001>

<llo_original>
// kernel: tpu_custom_call.1
$region0: #{tpu_custom_call.1}
  #allocation0 [shape = 'u32[]', space=smem, size = 0x4, offset = 0x4, fixed_abs, tag = 'smem constant byte address 0x4 - core index']
  #allocation1 [shape = 'u32[144,128]{1,0:T(1,128)}', space=vmem, size = 0x12000, scoped, tag = 'internal scratch']
  %s0 = inlined_call_operand.hbm [shape: f32[2,24,128], index: 0, kind: input, shape index: {}]
  %s1 = inlined_call_operand.hbm [shape: f32[2,24,24], index: 1, kind: input, shape index: {}]
  %s2 = inlined_call_operand.hbm [shape: bf16[128,1920], index: 2, kind: input, shape index: {}]
  %s3 = inlined_call_operand.hbm [shape: bf16[5,128,256], index: 3, kind: input, shape index: {}]
  %s4 = inlined_call_operand.hbm [shape: bf16[1280,128], index: 4, kind: input, shape index: {}]
  %s5 = inlined_call_operand.hbm [shape: bf16[128,384], index: 5, kind: input, shape index: {}]
  %s6 = inlined_call_operand.hbm [shape: bf16[128,256], index: 6, kind: input, shape index: {}]
  %s7 = inlined_call_operand.hbm [shape: bf16[256,128], index: 7, kind: input, shape index: {}]
  %s8 = inlined_call_operand.hbm [shape: f32[2,24,256], index: 8, kind: output, shape index: {0}]
  %s9 = inlined_call_operand.hbm [shape: f32[2,24,128], index: 9, kind: output, shape index: {1}]
  %10 = xla_tuple %s8, %s9
  %s11 = sld [smem:[#allocation0]]
  $region105: #{tpu_custom_call.1} parent=0
    _
  %s13 = ssub.s32 1, %s11
  %s14 = scalar_select 0, %s13, %s11
  $region1: #{tpu_custom_call.1} parent=0
    #allocation2 [shape = 'u8[24576]{0}', space=vmem, size = 0x6000, scoped, tag = 'input window, operand 0']
    #allocation3 [shape = 's32[2]{0}', space=sflag, size = 0x8, scoped, tag = 'scoped memory for tpu_custom_call.1']
    #allocation4 [shape = 's32[2]{0}', space=sflag, size = 0x8, scoped, tag = 'scoped memory for tpu_custom_call.1']
    #allocation5 [shape = 'u8[24576]{0}', space=vmem, size = 0x6000, scoped, tag = 'input window, operand 1']
    #allocation6 [shape = 's32[2]{0}', space=sflag, size = 0x8, scoped, tag = 'scoped memory for tpu_custom_call.1']
    #allocation7 [shape = 'u8[491520]{0}', space=vmem, size = 0x78000, scoped, tag = 'input window, operand 2, single buffered']
    #allocation8 [shape = 'u8[327680]{0}', space=vmem, size = 0x50000, scoped, tag = 'input window, operand 3, single buffered']
    #allocation9 [shape = 's32[1]{0}', space=sflag, size = 0x4, scoped, tag = 'scoped memory for tpu_custom_call.1']
    #allocation10 [shape = 'u8[327680]{0}', space=vmem, size = 0x50000, scoped, tag = 'input window, operand 4, single buffered']
    #allocation11 [shape = 'u8[98304]{0}', space=vmem, size = 0x18000, scoped, tag = 'input window, operand 5, single buffered']
    #allocation12 [shape = 's32[1]{0}', space=sflag, size = 0x4, scoped, tag = 'scoped memory for tpu_custom_call.1']
    #allocation13 [shape = 'u8[65536]{0}', space=vmem, size = 0x10000, scoped, tag = 'input window, operand 6, single buffered']
    #allocation14 [shape = 'u8[65536]{0}', space=vmem, size = 0x10000, scoped, tag = 'input window, operand 7, single buffered']
    #allocation15 [shape = 's32[1]{0}', space=sflag, size = 0x4, scoped, tag = 'scoped memory for tpu_custom_call.1']
    #allocation16 [shape = 'u8[49152]{0}', space=vmem, size = 0xc000, scoped, tag = 'output window, operand 0']
    #allocation17 [shape = 'u8[24576]{0}', space=vmem, size = 0x6000, scoped, tag = 'output window, operand 1']
    #allocation18 [shape = 's32[2]{0}', space=sflag, size = 0x8, scoped, tag = 'scoped memory for tpu_custom_call.1']
    %15 = vsyncpa [#allocation3], 0
    %s16 = scalar_lea.sflag [#allocation3], 1
    %17 = vsyncpa %s16, 0
    %18 = vsyncpa [#allocation6], 0
    %s19 = scalar_lea.sflag [#allocation6], 1
    %20 = vsyncpa %s19, 0
    %21 = vsyncpa [#allocation9], 0
    %22 = vsyncpa [#allocation12], 0
    %23 = vsyncpa [#allocation15], 0
    %24 = vsyncpa [#allocation4], 0
    %s25 = scalar_lea.sflag [#allocation4], 1
    %26 = vsyncpa %s25, 0
    %27 = vsyncpa [#allocation18], 0
    %s28 = scalar_lea.sflag [#allocation18], 1
    %29 = vsyncpa %s28, 0
    loop: start=0, step=1, limit=4
    $region2: #{tpu_custom_call.1} parent=1 // loop_pre_header
      _
    $region3: #{tpu_custom_call.1} parent=1 // loop_header
      %s31 = sphi 0, %s35
      %p32 = scmp.ge.s32.totalorder %s31, 4
      %s41 = sphi 0, %s43
      %s44 = sphi 0, %s41
      %s45 = sphi 0, %s44
      %s61 = sphi 0, %s45
      %s67 = sphi 0, %s69
      %s70 = sphi 0, %s67
      %s71 = sphi 0, %s70
      %s87 = sphi 0, %s71
      %s91 = sphi 0, %s91
      %s93 = sphi 0, %s91
      %s94 = sphi 0, %s93
      %s108 = sphi 0, %s94
      %s112 = sphi 0, %s112
      %s114 = sphi 0, %s112
      %s115 = sphi 0, %s114
      %s129 = sphi 0, %s115
      %s133 = sphi 0, %s133
      %s135 = sphi 0, %s133
      %s136 = sphi 0, %s135
      %s150 = sphi 0, %s136
      %s154 = sphi 0, %s154
      %s156 = sphi 0, %s154
      %s157 = sphi 0, %s156
      %s171 = sphi 0, %s157
      %s175 = sphi 0, %s175
      %s177 = sphi 0, %s175
      %s178 = sphi 0, %s177
      %s192 = sphi 0, %s178
      %s196 = sphi 0, %s196
      %s198 = sphi 0, %s196
      %s199 = sphi 0, %s198
      %s213 = sphi 0, %s199
      %s219 = sphi 0, %s221
      %s222 = sphi 0, %s219
      %s223 = sphi 0, %s222
      %s239 = sphi 0, %s223
      %s245 = sphi 0, %s247
      %s248 = sphi 0, %s245
      %s249 = sphi 0, %s248
      %s265 = sphi 0, %s249
    $region4: #{tpu_custom_call.1} parent=1 // loop_header_branch
      %34 = sbr.rel (%p32) target = $region8
    $region5: #{tpu_custom_call.1} parent=1 // loop_body
      %s36 = ssub.s32 %s31, 1
      %s37 = ssub.s32 %s31, 2
      %s38 = sadd.s32 %s31, 1
      %s39 = ssub.s32 %s31, %s38
      %p40 = scmp.eq.s32.totalorder %s39, 0
      %s42 = sadd.s32 %s41, 1
      %s43 = scalar_select %p40, %s41, %s42
      %p46 = pneg %p40
      %p47 = scmp.eq.s32.totalorder %s31, 1
      %p48 = por %p46, %p47
      %p49 = scmp.ne.s32.totalorder %s41, %s44
      %p50 = scmp.eq.s32.totalorder %s31, 0
      %p51 = por %p49, %p50
      %p52 = scmp.ne.s32.totalorder %s41, %s44
      %p53 = scmp.eq.s32.totalorder %s36, 1
      %p54 = por %p52, %p53
      %p55 = scmp.ne.s32.totalorder %s44, %s45
      %p56 = scmp.eq.s32.totalorder %s36, 0
      %p57 = por %p55, %p56
      %p58 = scmp.ne.s32.totalorder %s44, %s45
      %p59 = scmp.eq.s32.totalorder %s37, 1
      %p60 = por %p58, %p59
      %p62 = scmp.ne.s32.totalorder %s45, %s61
      %p63 = scmp.eq.s32.totalorder %s37, 0
      %p64 = por %p62, %p63
      %s65 = ssub.s32 %s31, %s38
      %p66 = scmp.eq.s32.totalorder %s65, 0
      %s68 = sadd.s32 %s67, 1
      %s69 = scalar_select %p66, %s67, %s68
      %p72 = pneg %p66
      %p73 = scmp.eq.s32.totalorder %s31, 1
      %p74 = por %p72, %p73
      %p75 = scmp.ne.s32.totalorder %s67, %s70
      %p76 = scmp.eq.s32.totalorder %s31, 0
      %p77 = por %p75, %p76
      %p78 = scmp.ne.s32.totalorder %s67, %s70
      %p79 = scmp.eq.s32.totalorder %s36, 1
      %p80 = por %p78, %p79
      %p81 = scmp.ne.s32.totalorder %s70, %s71
      %p82 = scmp.eq.s32.totalorder %s36, 0
      %p83 = por %p81, %p82
      %p84 = scmp.ne.s32.totalorder %s70, %s71
      %p85 = scmp.eq.s32.totalorder %s37, 1
      %p86 = por %p84, %p85
      %p88 = scmp.ne.s32.totalorder %s71, %s87
      %p89 = scmp.eq.s32.totalorder %s37, 0
      %p90 = por %p88, %p89
      %s92 = sadd.s32 %s91, 1
      %p95 = scmp.eq.s32.totalorder %s31, 1
      %p96 = scmp.ne.s32.totalorder %s91, %s93
      %p97 = scmp.eq.s32.totalorder %s31, 0
      %p98 = por %p96, %p97
      %p99 = scmp.ne.s32.totalorder %s91, %s93
      %p100 = scmp.eq.s32.totalorder %s36, 1
      %p101 = por %p99, %p100
      %p102 = scmp.ne.s32.totalorder %s93, %s94
      %p103 = scmp.eq.s32.totalorder %s36, 0
      %p104 = por %p102, %p103
      %p105 = scmp.ne.s32.totalorder %s93, %s94
      %p106 = scmp.eq.s32.totalorder %s37, 1
      %p107 = por %p105, %p106
      %p109 = scmp.ne.s32.totalorder %s94, %s108
      %p110 = scmp.eq.s32.totalorder %s37, 0
      %p111 = por %p109, %p110
      %s113 = sadd.s32 %s112, 1
      %p116 = scmp.eq.s32.totalorder %s31, 1
      %p117 = scmp.ne.s32.totalorder %s112, %s114
      %p118 = scmp.eq.s32.totalorder %s31, 0
      %p119 = por %p117, %p118
      %p120 = scmp.ne.s32.totalorder %s112, %s114
      %p121 = scmp.eq.s32.totalorder %s36, 1
      %p122 = por %p120, %p121
      %p123 = scmp.ne.s32.totalorder %s114, %s115
      %p124 = scmp.eq.s32.totalorder %s36, 0
      %p125 = por %p123, %p124
      %p126 = scmp.ne.s32.totalorder %s114, %s115
      %p127 = scmp.eq.s32.totalorder %s37, 1
      %p128 = por %p126, %p127
      %p130 = scmp.ne.s32.totalorder %s115, %s129
      %p131 = scmp.eq.s32.totalorder %s37, 0
      %p132 = por %p130, %p131
      %s134 = sadd.s32 %s133, 1
      %p137 = scmp.eq.s32.totalorder %s31, 1
      %p138 = scmp.ne.s32.totalorder %s133, %s135
      %p139 = scmp.eq.s32.totalorder %s31, 0
      %p140 = por %p138, %p139
      %p141 = scmp.ne.s32.totalorder %s133, %s135
      %p142 = scmp.eq.s32.totalorder %s36, 1
      %p143 = por %p141, %p142
      %p144 = scmp.ne.s32.totalorder %s135, %s136
      %p145 = scmp.eq.s32.totalorder %s36, 0
      %p146 = por %p144, %p145
      %p147 = scmp.ne.s32.totalorder %s135, %s136
      %p148 = scmp.eq.s32.totalorder %s37, 1
      %p149 = por %p147, %p148
      %p151 = scmp.ne.s32.totalorder %s136, %s150
      %p152 = scmp.eq.s32.totalorder %s37, 0
      %p153 = por %p151, %p152
      %s155 = sadd.s32 %s154, 1
      %p158 = scmp.eq.s32.totalorder %s31, 1
      %p159 = scmp.ne.s32.totalorder %s154, %s156
      %p160 = scmp.eq.s32.totalorder %s31, 0
      %p161 = por %p159, %p160
      %p162 = scmp.ne.s32.totalorder %s154, %s156
      %p163 = scmp.eq.s32.totalorder %s36, 1
      %p164 = por %p162, %p163
      %p165 = scmp.ne.s32.totalorder %s156, %s157
      %p166 = scmp.eq.s32.totalorder %s36, 0
      %p167 = por %p165, %p166
      %p168 = scmp.ne.s32.totalorder %s156, %s157
      %p169 = scmp.eq.s32.totalorder %s37, 1
      %p170 = por %p168, %p169
      %p172 = scmp.ne.s32.totalorder %s157, %s171
      %p173 = scmp.eq.s32.totalorder %s37, 0
      %p174 = por %p172, %p173
      %s176 = sadd.s32 %s175, 1
      %p179 = scmp.eq.s32.totalorder %s31, 1
      %p180 = scmp.ne.s32.totalorder %s175, %s177
      %p181 = scmp.eq.s32.totalorder %s31, 0
      %p182 = por %p180, %p181
      %p183 = scmp.ne.s32.totalorder %s175, %s177
      %p184 = scmp.eq.s32.totalorder %s36, 1
      %p185 = por %p183, %p184
      %p186 = scmp.ne.s32.totalorder %s177, %s178
      %p187 = scmp.eq.s32.totalorder %s36, 0
      %p188 = por %p186, %p187
      %p189 = scmp.ne.s32.totalorder %s177, %s178
      %p190 = scmp.eq.s32.totalorder %s37, 1
      %p191 = por %p189, %p190
      %p193 = scmp.ne.s32.totalorder %s178, %s192
      %p194 = scmp.eq.s32.totalorder %s37, 0
      %p195 = por %p193, %p194
      %s197 = sadd.s32 %s196, 1
      %p200 = scmp.eq.s32.totalorder %s31, 1
      %p201 = scmp.ne.s32.totalorder %s196, %s198
      %p202 = scmp.eq.s32.totalorder %s31, 0
      %p203 = por %p201, %p202
      %p204 = scmp.ne.s32.totalorder %s196, %s198
      %p205 = scmp.eq.s32.totalorder %s36, 1
      %p206 = por %p204, %p205
      %p207 = scmp.ne.s32.totalorder %s198, %s199
      %p208 = scmp.eq.s32.totalorder %s36, 0
      %p209 = por %p207, %p208
      %p210 = scmp.ne.s32.totalorder %s198, %s199
      %p211 = scmp.eq.s32.totalorder %s37, 1
      %p212 = por %p210, %p211
      %p214 = scmp.ne.s32.totalorder %s199, %s213
      %p215 = scmp.eq.s32.totalorder %s37, 0
      %p216 = por %p214, %p215
      %s217 = ssub.s32 %s31, %s38
      %p218 = scmp.eq.s32.totalorder %s217, 0
      %s220 = sadd.s32 %s219, 1
      %s221 = scalar_select %p218, %s219, %s220
      %p224 = pneg %p218
      %p225 = scmp.eq.s32.totalorder %s31, 1
      %p226 = por %p224, %p225
      %p227 = scmp.ne.s32.totalorder %s219, %s222
      %p228 = scmp.eq.s32.totalorder %s31, 0
      %p229 = por %p227, %p228
      %p230 = scmp.ne.s32.totalorder %s219, %s222
      %p231 = scmp.eq.s32.totalorder %s36, 1
      %p232 = por %p230, %p231
      %p233 = scmp.ne.s32.totalorder %s222, %s223
      %p234 = scmp.eq.s32.totalorder %s36, 0
      %p235 = por %p233, %p234
      %p236 = scmp.ne.s32.totalorder %s222, %s223
      %p237 = scmp.eq.s32.totalorder %s37, 1
      %p238 = por %p236, %p237
      %p240 = scmp.ne.s32.totalorder %s223, %s239
      %p241 = scmp.eq.s32.totalorder %s37, 0
      %p242 = por %p240, %p241
      %s243 = ssub.s32 %s31, %s38
      %p244 = scmp.eq.s32.totalorder %s243, 0
      %s246 = sadd.s32 %s245, 1
      %s247 = scalar_select %p244, %s245, %s246
      %p250 = pneg %p244
      %p251 = scmp.eq.s32.totalorder %s31, 1
      %p252 = por %p250, %p251
      %p253 = scmp.ne.s32.totalorder %s245, %s248
      %p254 = scmp.eq.s32.totalorder %s31, 0
      %p255 = por %p253, %p254
      %p256 = scmp.ne.s32.totalorder %s245, %s248
      %p257 = scmp.eq.s32.totalorder %s36, 1
      %p258 = por %p256, %p257
      %p259 = scmp.ne.s32.totalorder %s248, %s249
      %p260 = scmp.eq.s32.totalorder %s36, 0
      %p261 = por %p259, %p260
      %p262 = scmp.ne.s32.totalorder %s248, %s249
      %p263 = scmp.eq.s32.totalorder %s37, 1
      %p264 = por %p262, %p263
      %p266 = scmp.ne.s32.totalorder %s249, %s265
      %p267 = scmp.eq.s32.totalorder %s37, 0
      %p268 = por %p266, %p267
      %p269 = scmp.le.s32.totalorder 1, %s31
      %p270 = scmp.lt.s32.totalorder %s31, 3
      %p271 = pnand %p269, %p270
      %p272 = pneg %p271
      // Predicated region
      $region9: #{tpu_custom_call.1} parent=5 // pred_check
        _
      $region10: #{tpu_custom_call.1} parent=5 // pred_check_branch
        %274 = sbr.rel (%p271) target = $region12
      $region11: #{tpu_custom_call.1} parent=5 // pred_region
        %s275 = ssub.s32 %s31, 1
        // Predicated region
        $region13: #{tpu_custom_call.1} parent=11 // pred_check
          %p276 = pneg %p104
        $region14: #{tpu_custom_call.1} parent=11 // pred_check_branch
          %278 = sbr.rel (%p276) target = $region16
        $region15: #{tpu_custom_call.1} parent=11 // pred_region
          %s280 = ssub.s32 15360, 15360
          %281 = vsyncadd [#allocation6], %s280
          %s282 = sshll.u32 [#allocation7], 4
          %s283 = int_to_ptr.vmem [resolvable:$true] %s282
          %288 = dma.hbm_to_vmem [thread:$0]  %s2, 15360, %s283, [#allocation6], 960, 960, 60
        $region16: #{tpu_custom_call.1} parent=11 // pred_fallthru
          _
        // Predicated region
        $region17: #{tpu_custom_call.1} parent=11 // pred_check
          %p289 = pneg %p125
        $region18: #{tpu_custom_call.1} parent=11 // pred_check_branch
          %291 = sbr.rel (%p289) target = $region20
        $region19: #{tpu_custom_call.1} parent=11 // pred_region
          %s293 = ssub.s32 10240, 10240
          %294 = vsyncadd [#allocation9], %s293
          %s295 = sshll.u32 [#allocation8], 4
          %s296 = int_to_ptr.vmem [resolvable:$true] %s295
          %301 = dma.hbm_to_vmem [thread:$0]  %s3, 10240, %s296, [#allocation9], 128, 128, 8
        $region20: #{tpu_custom_call.1} parent=11 // pred_fallthru
          _
        // Predicated region
        $region21: #{tpu_custom_call.1} parent=11 // pred_check
          %p302 = pneg %p146
        $region22: #{tpu_custom_call.1} parent=11 // pred_check_branch
          %304 = sbr.rel (%p302) target = $region24
        $region23: #{tpu_custom_call.1} parent=11 // pred_region
          %s306 = ssub.s32 10240, 10240
          %307 = vsyncadd [#allocation9], %s306
          %s308 = sshll.u32 [#allocation10], 4
          %s309 = int_to_ptr.vmem [resolvable:$true] %s308
          %314 = dma.hbm_to_vmem [thread:$0]  %s4, 10240, %s309, [#allocation9], 64, 64, 4
        $region24: #{tpu_custom_call.1} parent=11 // pred_fallthru
          _
        // Predicated region
        $region25: #{tpu_custom_call.1} parent=11 // pred_check
          %p315 = pneg %p167
        $region26: #{tpu_custom_call.1} parent=11 // pred_check_branch
          %317 = sbr.rel (%p315) target = $region28
        $region27: #{tpu_custom_call.1} parent=11 // pred_region
          %s319 = ssub.s32 3072, 3072
          %320 = vsyncadd [#allocation12], %s319
          %s321 = sshll.u32 [#allocation11], 4
          %s322 = int_to_ptr.vmem [resolvable:$true] %s321
          %327 = dma.hbm_to_vmem [thread:$0]  %s5, 3072, %s322, [#allocation12], 192, 192, 12
        $region28: #{tpu_custom_call.1} parent=11 // pred_fallthru
          _
        // Predicated region
        $region29: #{tpu_custom_call.1} parent=11 // pred_check
          %p328 = pneg %p188
        $region30: #{tpu_custom_call.1} parent=11 // pred_check_branch
          %330 = sbr.rel (%p328) target = $region32
        $region31: #{tpu_custom_call.1} parent=11 // pred_region
          %s332 = ssub.s32 2048, 2048
          %333 = vsyncadd [#allocation12], %s332
          %s334 = sshll.u32 [#allocation13], 4
          %s335 = int_to_ptr.vmem [resolvable:$true] %s334
          %340 = dma.hbm_to_vmem [thread:$0]  %s6, 2048, %s335, [#allocation12], 128, 128, 8
        $region32: #{tpu_custom_call.1} parent=11 // pred_fallthru
          _
        // Predicated region
        $region33: #{tpu_custom_call.1} parent=11 // pred_check
          %p341 = pneg %p209
        $region34: #{tpu_custom_call.1} parent=11 // pred_check_branch
          %343 = sbr.rel (%p341) target = $region36
        $region35: #{tpu_custom_call.1} parent=11 // pred_region
          %s345 = ssub.s32 2048, 2048
          %346 = vsyncadd [#allocation15], %s345
          %s347 = sshll.u32 [#allocation14], 4
          %s348 = int_to_ptr.vmem [resolvable:$true] %s347
          %353 = dma.hbm_to_vmem [thread:$0]  %s7, 2048, %s348, [#allocation15], 64, 64, 4
        $region36: #{tpu_custom_call.1} parent=11 // pred_fallthru
          _
      $region12: #{tpu_custom_call.1} parent=5 // pred_fallthru
        _
      %p354 = scmp.lt.s32.totalorder %s31, 2
      // Predicated region
      $region37: #{tpu_custom_call.1} parent=5 // pred_check
        %p355 = pneg %p354
      $region38: #{tpu_custom_call.1} parent=5 // pred_check_branch
        %357 = sbr.rel (%p355) target = $region40
      $region39: #{tpu_custom_call.1} parent=5 // pred_region
        // Predicated region
        $region41: #{tpu_custom_call.1} parent=39 // pred_check
          %p358 = pneg %p51
        $region42: #{tpu_custom_call.1} parent=39 // pred_check_branch
          %360 = sbr.rel (%p358) target = $region44
        $region43: #{tpu_custom_call.1} parent=39 // pred_region
          %s361 = sand.u32 %s41, 1
          %s362 = scalar_lea.sflag [#allocation3], %s361
          %s363 = sand.u32 %s41, 1
          %s364 = smul.addr %s363, 24
          %s365 = scalar_lea.vmem [#allocation2], %s364
          %s367 = ssub.s32 384, 384
          %368 = vsyncadd %s362, %s367
          %s369 = smul.addr %s31, 3
          %s370 = smul.addr %s369, 128
          %s371 = scalar_lea.hbm %s0, %s370
          %s372 = sshll.u32 %s365, 4
          %s373 = int_to_ptr.vmem [resolvable:$true] %s372
          %378 = dma.hbm_to_vmem [thread:$0]  %s371, 384, %s373, %s362, 128, 128, 8
        $region44: #{tpu_custom_call.1} parent=39 // pred_fallthru
          _
        // Predicated region
        $region45: #{tpu_custom_call.1} parent=39 // pred_check
          %p379 = pneg %p77
        $region46: #{tpu_custom_call.1} parent=39 // pred_check_branch
          %381 = sbr.rel (%p379) target = $region48
        $region47: #{tpu_custom_call.1} parent=39 // pred_region
          %s382 = sand.u32 %s31, 1
          %s383 = scalar_lea.sflag [#allocation6], %s382
          %s384 = sand.u32 %s67, 1
          %s385 = smul.addr %s384, 24
          %s386 = scalar_lea.vmem [#allocation5], %s385
          %s388 = ssub.s32 384, 384
          %389 = vsyncadd %s383, %s388
          %s390 = smul.addr %s31, 3
          %s391 = smul.addr %s390, 128
          %s392 = scalar_lea.hbm %s1, %s391
          %s393 = sshll.u32 %s386, 4
          %s394 = int_to_ptr.vmem [resolvable:$true] %s393
          %399 = dma.hbm_to_vmem [thread:$0]  %s392, 384, %s394, %s383, 128, 128, 8
        $region48: #{tpu_custom_call.1} parent=39 // pred_fallthru
          _
      $region40: #{tpu_custom_call.1} parent=5 // pred_fallthru
        _
      %p400 = scmp.le.s32.totalorder 1, %s31
      %p401 = scmp.lt.s32.totalorder %s31, 3
      %p402 = pnand %p400, %p401
      %p403 = pneg %p402
      // Predicated region
      $region49: #{tpu_custom_call.1} parent=5 // pred_check
        _
      $region50: #{tpu_custom_call.1} parent=5 // pred_check_branch
        %405 = sbr.rel (%p402) target = $region52
      $region51: #{tpu_custom_call.1} parent=5 // pred_region
        %s406 = ssub.s32 %s31, 1
        %s407 = sand.u32 %s44, 1
        %s408 = scalar_lea.sflag [#allocation3], %s407
        %s409 = sand.u32 %s44, 1
        %s410 = smul.addr %s409, 24
        %s411 = scalar_lea.vmem [#allocation2], %s410
        // Predicated region
        $region53: #{tpu_custom_call.1} parent=51 // pred_check
          %p412 = pneg %p57
        $region54: #{tpu_custom_call.1} parent=51 // pred_check_branch
          %414 = sbr.rel (%p412) target = $region56
        $region55: #{tpu_custom_call.1} parent=51 // pred_region
          %415 = dma.done %s408, 384
        $region56: #{tpu_custom_call.1} parent=51 // pred_fallthru
          _
        %s416 = sand.u32 %s36, 1
        %s417 = scalar_lea.sflag [#allocation6], %s416
        %s418 = sand.u32 %s70, 1
        %s419 = smul.addr %s418, 24
        %s420 = scalar_lea.vmem [#allocation5], %s419
        // Predicated region
        $region57: #{tpu_custom_call.1} parent=51 // pred_check
          %p421 = pneg %p83
        $region58: #{tpu_custom_call.1} parent=51 // pred_check_branch
          %423 = sbr.rel (%p421) target = $region60
        $region59: #{tpu_custom_call.1} parent=51 // pred_region
          %424 = dma.done %s417, 384
        $region60: #{tpu_custom_call.1} parent=51 // pred_fallthru
          _
        // Predicated region
        $region61: #{tpu_custom_call.1} parent=51 // pred_check
          %p425 = pneg %p104
        $region62: #{tpu_custom_call.1} parent=51 // pred_check_branch
          %427 = sbr.rel (%p425) target = $region64
        $region63: #{tpu_custom_call.1} parent=51 // pred_region
          %428 = dma.done [#allocation6], 15360
        $region64: #{tpu_custom_call.1} parent=51 // pred_fallthru
          _
        // Predicated region
        $region65: #{tpu_custom_call.1} parent=51 // pred_check
          %p429 = pneg %p125
        $region66: #{tpu_custom_call.1} parent=51 // pred_check_branch
          %431 = sbr.rel (%p429) target = $region68
        $region67: #{tpu_custom_call.1} parent=51 // pred_region
          %432 = dma.done [#allocation9], 10240
        $region68: #{tpu_custom_call.1} parent=51 // pred_fallthru
          _
        // Predicated region
        $region69: #{tpu_custom_call.1} parent=51 // pred_check
          %p433 = pneg %p146
        $region70: #{tpu_custom_call.1} parent=51 // pred_check_branch
          %435 = sbr.rel (%p433) target = $region72
        $region71: #{tpu_custom_call.1} parent=51 // pred_region
          %436 = dma.done [#allocation9], 10240
        $region72: #{tpu_custom_call.1} parent=51 // pred_fallthru
          _
        // Predicated region
        $region73: #{tpu_custom_call.1} parent=51 // pred_check
          %p437 = pneg %p167
        $region74: #{tpu_custom_call.1} parent=51 // pred_check_branch
          %439 = sbr.rel (%p437) target = $region76
        $region75: #{tpu_custom_call.1} parent=51 // pred_region
          %440 = dma.done [#allocation12], 3072
        $region76: #{tpu_custom_call.1} parent=51 // pred_fallthru
          _
        // Predicated region
        $region77: #{tpu_custom_call.1} parent=51 // pred_check
          %p441 = pneg %p188
        $region78: #{tpu_custom_call.1} parent=51 // pred_check_branch
          %443 = sbr.rel (%p441) target = $region80
        $region79: #{tpu_custom_call.1} parent=51 // pred_region
          %444 = dma.done [#allocation12], 2048
        $region80: #{tpu_custom_call.1} parent=51 // pred_fallthru
          _
        // Predicated region
        $region81: #{tpu_custom_call.1} parent=51 // pred_check
          %p445 = pneg %p209
        $region82: #{tpu_custom_call.1} parent=51 // pred_check_branch
          %447 = sbr.rel (%p445) target = $region84
        $region83: #{tpu_custom_call.1} parent=51 // pred_region
          %448 = dma.done [#allocation15], 2048
        $region84: #{tpu_custom_call.1} parent=51 // pred_fallthru
          _
        %s449 = sand.u32 %s44, 1
        %s450 = scalar_lea.sflag [#allocation3], %s449
        %s451 = sand.u32 %s44, 1
        %s452 = smul.addr %s451, 24
        %s453 = scalar_lea.vmem [#allocation2], %s452
        %p454 = pneg %p57
        %p455 = pneg %p54
        %s456 = sand.u32 %s36, 1
        %s457 = scalar_lea.sflag [#allocation6], %s456
        %s458 = sand.u32 %s70, 1
        %s459 = smul.addr %s458, 24
        %s460 = scalar_lea.vmem [#allocation5], %s459
        %p461 = pneg %p83
        %p462 = pneg %p80
        %p463 = pneg %p104
        %p464 = pneg %p101
        %p465 = pneg %p125
        %p466 = pneg %p122
        %p467 = pneg %p146
        %p468 = pneg %p143
        %p469 = pneg %p167
        %p470 = pneg %p164
        %p471 = pneg %p188
        %p472 = pneg %p185
        %p473 = pneg %p209
        %p474 = pneg %p206
        %p475 = pneg %p235
        %p476 = pneg %p232
        %s477 = sand.u32 %s222, 1
        %s478 = scalar_lea.sflag [#allocation4], %s477
        %s479 = sand.u32 %s222, 1
        %s480 = smul.addr %s479, 48
        %s481 = scalar_lea.vmem [#allocation16], %s480
        %p482 = pneg %p261
        %p483 = pneg %p258
        %s484 = sand.u32 %s248, 1
        %s485 = scalar_lea.sflag [#allocation18], %s484
        %s486 = sand.u32 %s248, 1
        %s487 = smul.addr %s486, 24
        %s488 = scalar_lea.vmem [#allocation17], %s487
        %v490 = vld [vmem:[%s411] sm:$0xff]
        %v491 = vld [vmem:[%s411 + $0x8] sm:$0xff]
        %v492 = vld [vmem:[%s411 + $0x10] sm:$0xff]
        %v493 = vpack.c.bf16 %v491, %v490
        %v494 = vpack.c.bf16 %v492, %v492
        %v495 = vld [vmem:[%s420] sm:$0xff]
        %v496 = vld [vmem:[%s420 + $0x8] sm:$0xff]
        %v497 = vld [vmem:[%s420 + $0x10] sm:$0xff]
        %v498 = vld [vmem:[#allocation7] sm:$0xff]
        %v499 = vld [vmem:[#allocation7 + $0x8] sm:$0xff]
        %v500 = vld [vmem:[#allocation7 + $0x10] sm:$0xff]
        %v501 = vld [vmem:[#allocation7 + $0x18] sm:$0xff]
        %v502 = vld [vmem:[#allocation7 + $0x20] sm:$0xff]
        %v503 = vld [vmem:[#allocation7 + $0x28] sm:$0xff]
        %v504 = vld [vmem:[#allocation7 + $0x30] sm:$0xff]
        %v505 = vld [vmem:[#allocation7 + $0x38] sm:$0xf]
        %v506 = vld [vmem:[#allocation7 + $0x3c] sm:$0xff]
        %v507 = vld [vmem:[#allocation7 + $0x44] sm:$0xff]
        %v508 = vld [vmem:[#allocation7 + $0x4c] sm:$0xff]
        %v509 = vld [vmem:[#allocation7 + $0x54] sm:$0xff]
        %v510 = vld [vmem:[#allocation7 + $0x5c] sm:$0xff]
        %v511 = vld [vmem:[#allocation7 + $0x64] sm:$0xff]
        %v512 = vld [vmem:[#allocation7 + $0x6c] sm:$0xff]
        %v513 = vld [vmem:[#allocation7 + $0x74] sm:$0xf]
        %v514 = vld [vmem:[#allocation7 + $0x78] sm:$0xff]
        %v515 = vld [vmem:[#allocation7 + $0x80] sm:$0xff]
        %v516 = vld [vmem:[#allocation7 + $0x88] sm:$0xff]
        %v517 = vld [vmem:[#allocation7 + $0x90] sm:$0xff]
        %v518 = vld [vmem:[#allocation7 + $0x98] sm:$0xff]
        %v519 = vld [vmem:[#allocation7 + $0xa0] sm:$0xff]
        %v520 = vld [vmem:[#allocation7 + $0xa8] sm:$0xff]
        %v521 = vld [vmem:[#allocation7 + $0xb0] sm:$0xf]
        %v522 = vld [vmem:[#allocation7 + $0xb4] sm:$0xff]
        %v523 = vld [vmem:[#allocation7 + $0xbc] sm:$0xff]
        %v524 = vld [vmem:[#allocation7 + $0xc4] sm:$0xff]
        %v525 = vld [vmem:[#allocation7 + $0xcc] sm:$0xff]
        %v526 = vld [vmem:[#allocation7 + $0xd4] sm:$0xff]
        %v527 = vld [vmem:[#allocation7 + $0xdc] sm:$0xff]
        %v528 = vld [vmem:[#allocation7 + $0xe4] sm:$0xff]
        %v529 = vld [vmem:[#allocation7 + $0xec] sm:$0xf]
        %v530 = vld [vmem:[#allocation7 + $0xf0] sm:$0xff]
        %v531 = vld [vmem:[#allocation7 + $0xf8] sm:$0xff]
        %v532 = vld [vmem:[#allocation7 + $0x100] sm:$0xff]
        %v533 = vld [vmem:[#allocation7 + $0x108] sm:$0xff]
        %v534 = vld [vmem:[#allocation7 + $0x110] sm:$0xff]
        %v535 = vld [vmem:[#allocation7 + $0x118] sm:$0xff]
        %v536 = vld [vmem:[#allocation7 + $0x120] sm:$0xff]
        %v537 = vld [vmem:[#allocation7 + $0x128] sm:$0xf]
        %v538 = vld [vmem:[#allocation7 + $0x12c] sm:$0xff]
        %v539 = vld [vmem:[#allocation7 + $0x134] sm:$0xff]
        %v540 = vld [vmem:[#allocation7 + $0x13c] sm:$0xff]
        %v541 = vld [vmem:[#allocation7 + $0x144] sm:$0xff]
        %v542 = vld [vmem:[#allocation7 + $0x14c] sm:$0xff]
        %v543 = vld [vmem:[#allocation7 + $0x154] sm:$0xff]
        %v544 = vld [vmem:[#allocation7 + $0x15c] sm:$0xff]
        %v545 = vld [vmem:[#allocation7 + $0x164] sm:$0xf]
        %v546 = vld [vmem:[#allocation7 + $0x168] sm:$0xff]
        %v547 = vld [vmem:[#allocation7 + $0x170] sm:$0xff]
        %v548 = vld [vmem:[#allocation7 + $0x178] sm:$0xff]
        %v549 = vld [vmem:[#allocation7 + $0x180] sm:$0xff]
        %v550 = vld [vmem:[#allocation7 + $0x188] sm:$0xff]
        %v551 = vld [vmem:[#allocation7 + $0x190] sm:$0xff]
        %v552 = vld [vmem:[#allocation7 + $0x198] sm:$0xff]
        %v553 = vld [vmem:[#allocation7 + $0x1a0] sm:$0xf]
        %v554 = vld [vmem:[#allocation7 + $0x1a4] sm:$0xff]
        %v555 = vld [vmem:[#allocation7 + $0x1ac] sm:$0xff]
        %v556 = vld [vmem:[#allocation7 + $0x1b4] sm:$0xff]
        %v557 = vld [vmem:[#allocation7 + $0x1bc] sm:$0xff]
        %v558 = vld [vmem:[#allocation7 + $0x1c4] sm:$0xff]
        %v559 = vld [vmem:[#allocation7 + $0x1cc] sm:$0xff]
        %v560 = vld [vmem:[#allocation7 + $0x1d4] sm:$0xff]
        %v561 = vld [vmem:[#allocation7 + $0x1dc] sm:$0xf]
        %v562 = vld [vmem:[#allocation7 + $0x1e0] sm:$0xff]
        %v563 = vld [vmem:[#allocation7 + $0x1e8] sm:$0xff]
        %v564 = vld [vmem:[#allocation7 + $0x1f0] sm:$0xff]
        %v565 = vld [vmem:[#allocation7 + $0x1f8] sm:$0xff]
        %v566 = vld [vmem:[#allocation7 + $0x200] sm:$0xff]
        %v567 = vld [vmem:[#allocation7 + $0x208] sm:$0xff]
        %v568 = vld [vmem:[#allocation7 + $0x210] sm:$0xff]
        %v569 = vld [vmem:[#allocation7 + $0x218] sm:$0xf]
        %v570 = vld [vmem:[#allocation7 + $0x21c] sm:$0xff]
        %v571 = vld [vmem:[#allocation7 + $0x224] sm:$0xff]
        %v572 = vld [vmem:[#allocation7 + $0x22c] sm:$0xff]
        %v573 = vld [vmem:[#allocation7 + $0x234] sm:$0xff]
        %v574 = vld [vmem:[#allocation7 + $0x23c] sm:$0xff]
        %v575 = vld [vmem:[#allocation7 + $0x244] sm:$0xff]
        %v576 = vld [vmem:[#allocation7 + $0x24c] sm:$0xff]
        %v577 = vld [vmem:[#allocation7 + $0x254] sm:$0xf]
        %v578 = vld [vmem:[#allocation7 + $0x258] sm:$0xff]
        %v579 = vld [vmem:[#allocation7 + $0x260] sm:$0xff]
        %v580 = vld [vmem:[#allocation7 + $0x268] sm:$0xff]
        %v581 = vld [vmem:[#allocation7 + $0x270] sm:$0xff]
        %v582 = vld [vmem:[#allocation7 + $0x278] sm:$0xff]
        %v583 = vld [vmem:[#allocation7 + $0x280] sm:$0xff]
        %v584 = vld [vmem:[#allocation7 + $0x288] sm:$0xff]
        %v585 = vld [vmem:[#allocation7 + $0x290] sm:$0xf]
        %v586 = vld [vmem:[#allocation7 + $0x294] sm:$0xff]
        %v587 = vld [vmem:[#allocation7 + $0x29c] sm:$0xff]
        %v588 = vld [vmem:[#allocation7 + $0x2a4] sm:$0xff]
        %v589 = vld [vmem:[#allocation7 + $0x2ac] sm:$0xff]
        %v590 = vld [vmem:[#allocation7 + $0x2b4] sm:$0xff]
        %v591 = vld [vmem:[#allocation7 + $0x2bc] sm:$0xff]
        %v592 = vld [vmem:[#allocation7 + $0x2c4] sm:$0xff]
        %v593 = vld [vmem:[#allocation7 + $0x2cc] sm:$0xf]
        %v594 = vld [vmem:[#allocation7 + $0x2d0] sm:$0xff]
        %v595 = vld [vmem:[#allocation7 + $0x2d8] sm:$0xff]
        %v596 = vld [vmem:[#allocation7 + $0x2e0] sm:$0xff]
        %v597 = vld [vmem:[#allocation7 + $0x2e8] sm:$0xff]
        %v598 = vld [vmem:[#allocation7 + $0x2f0] sm:$0xff]
        %v599 = vld [vmem:[#allocation7 + $0x2f8] sm:$0xff]
        %v600 = vld [vmem:[#allocation7 + $0x300] sm:$0xff]
        %v601 = vld [vmem:[#allocation7 + $0x308] sm:$0xf]
        %v602 = vld [vmem:[#allocation7 + $0x30c] sm:$0xff]
        %v603 = vld [vmem:[#allocation7 + $0x314] sm:$0xff]
        %v604 = vld [vmem:[#allocation7 + $0x31c] sm:$0xff]
        %v605 = vld [vmem:[#allocation7 + $0x324] sm:$0xff]
        %v606 = vld [vmem:[#allocation7 + $0x32c] sm:$0xff]
        %v607 = vld [vmem:[#allocation7 + $0x334] sm:$0xff]
        %v608 = vld [vmem:[#allocation7 + $0x33c] sm:$0xff]
        %v609 = vld [vmem:[#allocation7 + $0x344] sm:$0xf]
        %v610 = vld [vmem:[#allocation7 + $0x348] sm:$0xff]
        %v611 = vld [vmem:[#allocation7 + $0x350] sm:$0xff]
        %v612 = vld [vmem:[#allocation7 + $0x358] sm:$0xff]
        %v613 = vld [vmem:[#allocation7 + $0x360] sm:$0xff]
        %v614 = vld [vmem:[#allocation7 + $0x368] sm:$0xff]
        %v615 = vld [vmem:[#allocation7 + $0x370] sm:$0xff]
        %v616 = vld [vmem:[#allocation7 + $0x378] sm:$0xff]
        %v617 = vld [vmem:[#allocation7 + $0x380] sm:$0xf]
        %v618 = vld [vmem:[#allocation7 + $0x384] sm:$0xff]
        %v619 = vld [vmem:[#allocation7 + $0x38c] sm:$0xff]
        %v620 = vld [vmem:[#allocation7 + $0x394] sm:$0xff]
        %v621 = vld [vmem:[#allocation7 + $0x39c] sm:$0xff]
        %v622 = vld [vmem:[#allocation7 + $0x3a4] sm:$0xff]
        %v623 = vld [vmem:[#allocation7 + $0x3ac] sm:$0xff]
        %v624 = vld [vmem:[#allocation7 + $0x3b4] sm:$0xff]
        %v625 = vld [vmem:[#allocation7 + $0x3bc] sm:$0xf]
        %v754 = vunpack.c.l.b16 %v498
        %v755 = vunpack.c.h.b16 %v498
        %v756 = vunpack.c.l.b16 %v499
        %v757 = vunpack.c.h.b16 %v499
        %v758 = vunpack.c.l.b16 %v500
        %v759 = vunpack.c.h.b16 %v500
        %v760 = vunpack.c.l.b16 %v501
        %v761 = vunpack.c.h.b16 %v501
        %v762 = vunpack.c.l.b16 %v502
        %v763 = vunpack.c.h.b16 %v502
        %v764 = vunpack.c.l.b16 %v503
        %v765 = vunpack.c.h.b16 %v503
        %v766 = vunpack.c.l.b16 %v504
        %v767 = vunpack.c.h.b16 %v504
        %v768 = vunpack.c.l.b16 %v505
        %v769 = vunpack.c.l.b16 %v506
        %v770 = vunpack.c.h.b16 %v506
        %v771 = vunpack.c.l.b16 %v507
        %v772 = vunpack.c.h.b16 %v507
        %v773 = vunpack.c.l.b16 %v508
        %v774 = vunpack.c.h.b16 %v508
        %v775 = vunpack.c.l.b16 %v509
        %v776 = vunpack.c.h.b16 %v509
        %v777 = vunpack.c.l.b16 %v510
        %v778 = vunpack.c.h.b16 %v510
        %v779 = vunpack.c.l.b16 %v511
        %v780 = vunpack.c.h.b16 %v511
        %v781 = vunpack.c.l.b16 %v512
        %v782 = vunpack.c.h.b16 %v512
        %v783 = vunpack.c.l.b16 %v513
        %v784 = vunpack.c.l.b16 %v514
        %v785 = vunpack.c.h.b16 %v514
        %v786 = vunpack.c.l.b16 %v515
        %v787 = vunpack.c.h.b16 %v515
        %v788 = vunpack.c.l.b16 %v516
        %v789 = vunpack.c.h.b16 %v516
        %v790 = vunpack.c.l.b16 %v517
        %v791 = vunpack.c.h.b16 %v517
        %v792 = vunpack.c.l.b16 %v518
        %v793 = vunpack.c.h.b16 %v518
        %v794 = vunpack.c.l.b16 %v519
        %v795 = vunpack.c.h.b16 %v519
        %v796 = vunpack.c.l.b16 %v520
        %v797 = vunpack.c.h.b16 %v520
        %v798 = vunpack.c.l.b16 %v521
        %v799 = vunpack.c.l.b16 %v522
        %v800 = vunpack.c.h.b16 %v522
        %v801 = vunpack.c.l.b16 %v523
        %v802 = vunpack.c.h.b16 %v523
        %v803 = vunpack.c.l.b16 %v524
        %v804 = vunpack.c.h.b16 %v524
        %v805 = vunpack.c.l.b16 %v525
        %v806 = vunpack.c.h.b16 %v525
        %v807 = vunpack.c.l.b16 %v526
        %v808 = vunpack.c.h.b16 %v526
        %v809 = vunpack.c.l.b16 %v527
        %v810 = vunpack.c.h.b16 %v527
        %v811 = vunpack.c.l.b16 %v528
        %v812 = vunpack.c.h.b16 %v528
        %v813 = vunpack.c.l.b16 %v529
        %v814 = vunpack.c.l.b16 %v530
        %v815 = vunpack.c.h.b16 %v530
        %v816 = vunpack.c.l.b16 %v531
        %v817 = vunpack.c.h.b16 %v531
        %v818 = vunpack.c.l.b16 %v532
        %v819 = vunpack.c.h.b16 %v532
        %v820 = vunpack.c.l.b16 %v533
        %v821 = vunpack.c.h.b16 %v533
        %v822 = vunpack.c.l.b16 %v534
        %v823 = vunpack.c.h.b16 %v534
        %v824 = vunpack.c.l.b16 %v535
        %v825 = vunpack.c.h.b16 %v535
        %v826 = vunpack.c.l.b16 %v536
        %v827 = vunpack.c.h.b16 %v536
        %v828 = vunpack.c.l.b16 %v537
        %v829 = vunpack.c.l.b16 %v538
        %v830 = vunpack.c.h.b16 %v538
        %v831 = vunpack.c.l.b16 %v539
        %v832 = vunpack.c.h.b16 %v539
        %v833 = vunpack.c.l.b16 %v540
        %v834 = vunpack.c.h.b16 %v540
        %v835 = vunpack.c.l.b16 %v541
        %v836 = vunpack.c.h.b16 %v541
        %v837 = vunpack.c.l.b16 %v542
        %v838 = vunpack.c.h.b16 %v542
        %v839 = vunpack.c.l.b16 %v543
        %v840 = vunpack.c.h.b16 %v543
        %v841 = vunpack.c.l.b16 %v544
        %v842 = vunpack.c.h.b16 %v544
        %v843 = vunpack.c.l.b16 %v545
        %v844 = vunpack.c.l.b16 %v546
        %v845 = vunpack.c.h.b16 %v546
        %v846 = vunpack.c.l.b16 %v547
        %v847 = vunpack.c.h.b16 %v547
        %v848 = vunpack.c.l.b16 %v548
        %v849 = vunpack.c.h.b16 %v548
        %v850 = vunpack.c.l.b16 %v549
        %v851 = vunpack.c.h.b16 %v549
        %v852 = vunpack.c.l.b16 %v550
        %v853 = vunpack.c.h.b16 %v550
        %v854 = vunpack.c.l.b16 %v551
        %v855 = vunpack.c.h.b16 %v551
        %v856 = vunpack.c.l.b16 %v552
        %v857 = vunpack.c.h.b16 %v552
        %v858 = vunpack.c.l.b16 %v553
        %v859 = vunpack.c.l.b16 %v554
        %v860 = vunpack.c.h.b16 %v554
        %v861 = vunpack.c.l.b16 %v555
        %v862 = vunpack.c.h.b16 %v555
        %v863 = vunpack.c.l.b16 %v556
        %v864 = vunpack.c.h.b16 %v556
        %v865 = vunpack.c.l.b16 %v557
        %v866 = vunpack.c.h.b16 %v557
        %v867 = vunpack.c.l.b16 %v558
        %v868 = vunpack.c.h.b16 %v558
        %v869 = vunpack.c.l.b16 %v559
        %v870 = vunpack.c.h.b16 %v559
        %v871 = vunpack.c.l.b16 %v560
        %v872 = vunpack.c.h.b16 %v560
        %v873 = vunpack.c.l.b16 %v561
        %v874 = vunpack.c.l.b16 %v562
        %v875 = vunpack.c.h.b16 %v562
        %v876 = vunpack.c.l.b16 %v563
        %v877 = vunpack.c.h.b16 %v563
        %v878 = vunpack.c.l.b16 %v564
        %v879 = vunpack.c.h.b16 %v564
        %v880 = vunpack.c.l.b16 %v565
        %v881 = vunpack.c.h.b16 %v565
        %v882 = vunpack.c.l.b16 %v566
        %v883 = vunpack.c.h.b16 %v566
        %v884 = vunpack.c.l.b16 %v567
        %v885 = vunpack.c.h.b16 %v567
        %v886 = vunpack.c.l.b16 %v568
        %v887 = vunpack.c.h.b16 %v568
        %v888 = vunpack.c.l.b16 %v569
        %v889 = vunpack.c.l.b16 %v570
        %v890 = vunpack.c.h.b16 %v570
        %v891 = vunpack.c.l.b16 %v571
        %v892 = vunpack.c.h.b16 %v571
        %v893 = vunpack.c.l.b16 %v572
        %v894 = vunpack.c.h.b16 %v572
        %v895 = vunpack.c.l.b16 %v573
        %v896 = vunpack.c.h.b16 %v573
        %v897 = vunpack.c.l.b16 %v574
        %v898 = vunpack.c.h.b16 %v574
        %v899 = vunpack.c.l.b16 %v575
        %v900 = vunpack.c.h.b16 %v575
        %v901 = vunpack.c.l.b16 %v576
        %v902 = vunpack.c.h.b16 %v576
        %v903 = vunpack.c.l.b16 %v577
        %v904 = vunpack.c.l.b16 %v578
        %v905 = vunpack.c.h.b16 %v578
        %v906 = vunpack.c.l.b16 %v579
        %v907 = vunpack.c.h.b16 %v579
        %v908 = vunpack.c.l.b16 %v580
        %v909 = vunpack.c.h.b16 %v580
        %v910 = vunpack.c.l.b16 %v581
        %v911 = vunpack.c.h.b16 %v581
        %v912 = vunpack.c.l.b16 %v582
        %v913 = vunpack.c.h.b16 %v582
        %v914 = vunpack.c.l.b16 %v583
        %v915 = vunpack.c.h.b16 %v583
        %v916 = vunpack.c.l.b16 %v584
        %v917 = vunpack.c.h.b16 %v584
        %v918 = vunpack.c.l.b16 %v585
        %v919 = vunpack.c.l.b16 %v586
        %v920 = vunpack.c.h.b16 %v586
        %v921 = vunpack.c.l.b16 %v587
        %v922 = vunpack.c.h.b16 %v587
        %v923 = vunpack.c.l.b16 %v588
        %v924 = vunpack.c.h.b16 %v588
        %v925 = vunpack.c.l.b16 %v589
        %v926 = vunpack.c.h.b16 %v589
        %v927 = vunpack.c.l.b16 %v590
        %v928 = vunpack.c.h.b16 %v590
        %v929 = vunpack.c.l.b16 %v591
        %v930 = vunpack.c.h.b16 %v591
        %v931 = vunpack.c.l.b16 %v592
        %v932 = vunpack.c.h.b16 %v592
        %v933 = vunpack.c.l.b16 %v593
        %v934 = vunpack.c.l.b16 %v594
        %v935 = vunpack.c.h.b16 %v594
        %v936 = vunpack.c.l.b16 %v595
        %v937 = vunpack.c.h.b16 %v595
        %v938 = vunpack.c.l.b16 %v596
        %v939 = vunpack.c.h.b16 %v596
        %v940 = vunpack.c.l.b16 %v597
        %v941 = vunpack.c.h.b16 %v597
        %v942 = vunpack.c.l.b16 %v598
        %v943 = vunpack.c.h.b16 %v598
        %v944 = vunpack.c.l.b16 %v599
        %v945 = vunpack.c.h.b16 %v599
        %v946 = vunpack.c.l.b16 %v600
        %v947 = vunpack.c.h.b16 %v600
        %v948 = vunpack.c.l.b16 %v601
        %v949 = vunpack.c.l.b16 %v602
        %v950 = vunpack.c.h.b16 %v602
        %v951 = vunpack.c.l.b16 %v603
        %v952 = vunpack.c.h.b16 %v603
        %v953 = vunpack.c.l.b16 %v604
        %v954 = vunpack.c.h.b16 %v604
        %v955 = vunpack.c.l.b16 %v605
        %v956 = vunpack.c.h.b16 %v605
        %v957 = vunpack.c.l.b16 %v606
        %v958 = vunpack.c.h.b16 %v606
        %v959 = vunpack.c.l.b16 %v607
        %v960 = vunpack.c.h.b16 %v607
        %v961 = vunpack.c.l.b16 %v608
        %v962 = vunpack.c.h.b16 %v608
        %v963 = vunpack.c.l.b16 %v609
        %v964 = vunpack.c.l.b16 %v610
        %v965 = vunpack.c.h.b16 %v610
        %v966 = vunpack.c.l.b16 %v611
        %v967 = vunpack.c.h.b16 %v611
        %v968 = vunpack.c.l.b16 %v612
        %v969 = vunpack.c.h.b16 %v612
        %v970 = vunpack.c.l.b16 %v613
        %v971 = vunpack.c.h.b16 %v613
        %v972 = vunpack.c.l.b16 %v614
        %v973 = vunpack.c.h.b16 %v614
        %v974 = vunpack.c.l.b16 %v615
        %v975 = vunpack.c.h.b16 %v615
        %v976 = vunpack.c.l.b16 %v616
        %v977 = vunpack.c.h.b16 %v616
        %v978 = vunpack.c.l.b16 %v617
        %v979 = vunpack.c.l.b16 %v618
        %v980 = vunpack.c.h.b16 %v618
        %v981 = vunpack.c.l.b16 %v619
        %v982 = vunpack.c.h.b16 %v619
        %v983 = vunpack.c.l.b16 %v620
        %v984 = vunpack.c.h.b16 %v620
        %v985 = vunpack.c.l.b16 %v621
        %v986 = vunpack.c.h.b16 %v621
        %v987 = vunpack.c.l.b16 %v622
        %v988 = vunpack.c.h.b16 %v622
        %v989 = vunpack.c.l.b16 %v623
        %v990 = vunpack.c.h.b16 %v623
        %v991 = vunpack.c.l.b16 %v624
        %v992 = vunpack.c.h.b16 %v624
        %v993 = vunpack.c.l.b16 %v625
        %v994 = vpack.c.b16 %v769, %v754
        %v995 = vpack.c.b16 %v770, %v755
        %v996 = vpack.c.b16 %v771, %v756
        %v997 = vpack.c.b16 %v772, %v757
        %v998 = vpack.c.b16 %v773, %v758
        %v999 = vpack.c.b16 %v774, %v759
        %v1000 = vpack.c.b16 %v775, %v760
        %v1001 = vpack.c.b16 %v776, %v761
        %v1002 = vpack.c.b16 %v777, %v762
        %v1003 = vpack.c.b16 %v778, %v763
        %v1004 = vpack.c.b16 %v779, %v764
        %v1005 = vpack.c.b16 %v780, %v765
        %v1006 = vpack.c.b16 %v781, %v766
        %v1007 = vpack.c.b16 %v782, %v767
        %v1008 = vpack.c.b16 %v783, %v768
        %v1009 = vpack.c.b16 %v799, %v784
        %v1010 = vpack.c.b16 %v800, %v785
        %v1011 = vpack.c.b16 %v801, %v786
        %v1012 = vpack.c.b16 %v802, %v787
        %v1013 = vpack.c.b16 %v803, %v788
        %v1014 = vpack.c.b16 %v804, %v789
        %v1015 = vpack.c.b16 %v805, %v790
        %v1016 = vpack.c.b16 %v806, %v791
        %v1017 = vpack.c.b16 %v807, %v792
        %v1018 = vpack.c.b16 %v808, %v793
        %v1019 = vpack.c.b16 %v809, %v794
        %v1020 = vpack.c.b16 %v810, %v795
        %v1021 = vpack.c.b16 %v811, %v796
        %v1022 = vpack.c.b16 %v812, %v797
        %v1023 = vpack.c.b16 %v813, %v798
        %v1024 = vpack.c.b16 %v829, %v814
        %v1025 = vpack.c.b16 %v830, %v815
        %v1026 = vpack.c.b16 %v831, %v816
        %v1027 = vpack.c.b16 %v832, %v817
        %v1028 = vpack.c.b16 %v833, %v818
        %v1029 = vpack.c.b16 %v834, %v819
        %v1030 = vpack.c.b16 %v835, %v820
        %v1031 = vpack.c.b16 %v836, %v821
        %v1032 = vpack.c.b16 %v837, %v822
        %v1033 = vpack.c.b16 %v838, %v823
        %v1034 = vpack.c.b16 %v839, %v824
        %v1035 = vpack.c.b16 %v840, %v825
        %v1036 = vpack.c.b16 %v841, %v826
        %v1037 = vpack.c.b16 %v842, %v827
        %v1038 = vpack.c.b16 %v843, %v828
        %v1039 = vpack.c.b16 %v859, %v844
        %v1040 = vpack.c.b16 %v860, %v845
        %v1041 = vpack.c.b16 %v861, %v846
        %v1042 = vpack.c.b16 %v862, %v847
        %v1043 = vpack.c.b16 %v863, %v848
        %v1044 = vpack.c.b16 %v864, %v849
        %v1045 = vpack.c.b16 %v865, %v850
        %v1046 = vpack.c.b16 %v866, %v851
        %v1047 = vpack.c.b16 %v867, %v852
        %v1048 = vpack.c.b16 %v868, %v853
        %v1049 = vpack.c.b16 %v869, %v854
        %v1050 = vpack.c.b16 %v870, %v855
        %v1051 = vpack.c.b16 %v871, %v856
        %v1052 = vpack.c.b16 %v872, %v857
        %v1053 = vpack.c.b16 %v873, %v858
        %v1054 = vpack.c.b16 %v889, %v874
        %v1055 = vpack.c.b16 %v890, %v875
        %v1056 = vpack.c.b16 %v891, %v876
        %v1057 = vpack.c.b16 %v892, %v877
        %v1058 = vpack.c.b16 %v893, %v878
        %v1059 = vpack.c.b16 %v894, %v879
        %v1060 = vpack.c.b16 %v895, %v880
        %v1061 = vpack.c.b16 %v896, %v881
        %v1062 = vpack.c.b16 %v897, %v882
        %v1063 = vpack.c.b16 %v898, %v883
        %v1064 = vpack.c.b16 %v899, %v884
        %v1065 = vpack.c.b16 %v900, %v885
        %v1066 = vpack.c.b16 %v901, %v886
        %v1067 = vpack.c.b16 %v902, %v887
        %v1068 = vpack.c.b16 %v903, %v888
        %v1069 = vpack.c.b16 %v919, %v904
        %v1070 = vpack.c.b16 %v920, %v905
        %v1071 = vpack.c.b16 %v921, %v906
        %v1072 = vpack.c.b16 %v922, %v907
        %v1073 = vpack.c.b16 %v923, %v908
        %v1074 = vpack.c.b16 %v924, %v909
        %v1075 = vpack.c.b16 %v925, %v910
        %v1076 = vpack.c.b16 %v926, %v911
        %v1077 = vpack.c.b16 %v927, %v912
        %v1078 = vpack.c.b16 %v928, %v913
        %v1079 = vpack.c.b16 %v929, %v914
        %v1080 = vpack.c.b16 %v930, %v915
        %v1081 = vpack.c.b16 %v931, %v916
        %v1082 = vpack.c.b16 %v932, %v917
        %v1083 = vpack.c.b16 %v933, %v918
        %v1084 = vpack.c.b16 %v949, %v934
        %v1085 = vpack.c.b16 %v950, %v935
        %v1086 = vpack.c.b16 %v951, %v936
        %v1087 = vpack.c.b16 %v952, %v937
        %v1088 = vpack.c.b16 %v953, %v938
        %v1089 = vpack.c.b16 %v954, %v939
        %v1090 = vpack.c.b16 %v955, %v940
        %v1091 = vpack.c.b16 %v956, %v941
        %v1092 = vpack.c.b16 %v957, %v942
        %v1093 = vpack.c.b16 %v958, %v943
        %v1094 = vpack.c.b16 %v959, %v944
        %v1095 = vpack.c.b16 %v960, %v945
        %v1096 = vpack.c.b16 %v961, %v946
        %v1097 = vpack.c.b16 %v962, %v947
        %v1098 = vpack.c.b16 %v963, %v948
        %v1099 = vpack.c.b16 %v979, %v964
        %v1100 = vpack.c.b16 %v980, %v965
        %v1101 = vpack.c.b16 %v981, %v966
        %v1102 = vpack.c.b16 %v982, %v967
        %v1103 = vpack.c.b16 %v983, %v968
        %v1104 = vpack.c.b16 %v984, %v969
        %v1105 = vpack.c.b16 %v985, %v970
        %v1106 = vpack.c.b16 %v986, %v971
        %v1107 = vpack.c.b16 %v987, %v972
        %v1108 = vpack.c.b16 %v988, %v973
        %v1109 = vpack.c.b16 %v989, %v974
        %v1110 = vpack.c.b16 %v990, %v975
        %v1111 = vpack.c.b16 %v991, %v976
        %v1112 = vpack.c.b16 %v992, %v977
        %v1113 = vpack.c.b16 %v993, %v978
        %1234 = vmatprep.subr.bf16.mxu0 %v1100
        %1235 = vmatpush1.bf16.msra.mxu0 %v1099
        %1236 = vmatprep.subr.bf16.mxu0 %v1085
        %1237 = vmatpush1.bf16.msra.mxu0 %v1084
        %1238 = vmatprep.subr.bf16.mxu0 %v1070
        %1239 = vmatpush1.bf16.msra.mxu0 %v1069
        %1240 = vmatprep.subr.bf16.mxu0 %v1055
        %1241 = vmatpush1.bf16.msra.mxu0 %v1054
        %1242 = vmatprep.subr.bf16.mxu0 %v1040
        %1243 = vmatpush1.bf16.msra.mxu0 %v1039
        %1244 = vmatprep.subr.bf16.mxu0 %v1025
        %1245 = vmatpush1.bf16.msra.mxu0 %v1024
        %1246 = vmatprep.subr.bf16.mxu0 %v1010
        %1247 = vmatpush1.bf16.msra.mxu0 %v1009
        %1248 = vmatprep.subr.bf16.mxu0 %v995
        %1249 = vmatpush1.bf16.msra.mxu0 %v994
        %1250 = vmatprep.subr.bf16.mxu0 0
        %1251 = vmatpush2.bf16.msra.mxu0 0
        %1252 = vmatprep.subr.bf16.mxu0 0
        %1253 = vmatpush2.bf16.msra.mxu0 0
        %1254 = vmatprep.subr.bf16.mxu0 0
        %1255 = vmatpush2.bf16.msra.mxu0 0
        %1256 = vmatprep.subr.bf16.mxu0 0
        %1257 = vmatpush2.bf16.msra.mxu0 0
        %1258 = vmatprep.subr.bf16.mxu0 0
        %1259 = vmatpush2.bf16.msra.mxu0 0
        %1260 = vmatprep.subr.bf16.mxu0 0
        %1261 = vmatpush2.bf16.msra.mxu0 0
        %1262 = vmatprep.subr.bf16.mxu0 0
        %1263 = vmatpush2.bf16.msra.mxu0 0
        %1264 = vmatprep.subr.bf16.mxu0 0
        %1265 = vmatpush2.bf16.msra.mxu0 0
        %1266 = vmatprep.mubr.bf16.mxu0 0
        %1267 = vmatmul.mubr.bf16.gmra.mxu0 %v493
        %v1268 = vpop.f32.mrf.mxu0
        %v1269 = vadd.f32 0.0, %v1268
        %v1270 = vpop.f32.mrf.mxu0
        %v1271 = vadd.f32 0.0, %v1270
        %v1272 = vpop.f32.mrf.mxu0
        %v1273 = vadd.f32 0.0, %v1272
        %v1274 = vpop.f32.mrf.mxu0
        %v1275 = vadd.f32 0.0, %v1274
        %1276 = vmatprep.mubr.bf16.mxu0 0
        %1277 = vmatmul.mubr.bf16.gmra.mxu0 %v494
        %v1278 = vpop.f32.mrf.mxu0
        %v1279 = vadd.f32 0.0, %v1278
        %v1280 = vpop.f32.mrf.mxu0
        %v1281 = vadd.f32 0.0, %v1280
        %v1282 = vpop.f32.mrf.mxu0
        %v1283 = vpop.f32.mrf.mxu0
        %1284 = vdwg.mxu0
        %1285 = vmatprep.subr.bf16.mxu0 %v1102
        %1286 = vmatpush1.bf16.msra.mxu0 %v1101
        %1287 = vmatprep.subr.bf16.mxu0 %v1087
        %1288 = vmatpush1.bf16.msra.mxu0 %v1086
        %1289 = vmatprep.subr.bf16.mxu0 %v1072
        %1290 = vmatpush1.bf16.msra.mxu0 %v1071
        %1291 = vmatprep.subr.bf16.mxu0 %v1057
        %1292 = vmatpush1.bf16.msra.mxu0 %v1056
        %1293 = vmatprep.subr.bf16.mxu0 %v1042
        %1294 = vmatpush1.bf16.msra.mxu0 %v1041
        %1295 = vmatprep.subr.bf16.mxu0 %v1027
        %1296 = vmatpush1.bf16.msra.mxu0 %v1026
        %1297 = vmatprep.subr.bf16.mxu0 %v1012
        %1298 = vmatpush1.bf16.msra.mxu0 %v1011
        %1299 = vmatprep.subr.bf16.mxu0 %v997
        %1300 = vmatpush1.bf16.msra.mxu0 %v996
        %1301 = vmatprep.subr.bf16.mxu0 0
        %1302 = vmatpush2.bf16.msra.mxu0 0
        %1303 = vmatprep.subr.bf16.mxu0 0
        %1304 = vmatpush2.bf16.msra.mxu0 0
        %1305 = vmatprep.subr.bf16.mxu0 0
        %1306 = vmatpush2.bf16.msra.mxu0 0
        %1307 = vmatprep.subr.bf16.mxu0 0
        %1308 = vmatpush2.bf16.msra.mxu0 0
        %1309 = vmatprep.subr.bf16.mxu0 0
        %1310 = vmatpush2.bf16.msra.mxu0 0
        %1311 = vmatprep.subr.bf16.mxu0 0
        %1312 = vmatpush2.bf16.msra.mxu0 0
        %1313 = vmatprep.subr.bf16.mxu0 0
        %1314 = vmatpush2.bf16.msra.mxu0 0
        %1315 = vmatprep.subr.bf16.mxu0 0
        %1316 = vmatpush2.bf16.msra.mxu0 0
        %1317 = vmatprep.mubr.bf16.mxu0 0
        %1318 = vmatmul.mubr.bf16.gmra.mxu0 %v493
        %v1319 = vpop.f32.mrf.mxu0
        %v1320 = vadd.f32 0.0, %v1319
        %v1321 = vpop.f32.mrf.mxu0
        %v1322 = vadd.f32 0.0, %v1321
        %v1323 = vpop.f32.mrf.mxu0
        %v1324 = vadd.f32 0.0, %v1323
        %v1325 = vpop.f32.mrf.mxu0
        %v1326 = vadd.f32 0.0, %v1325
        %1327 = vmatprep.mubr.bf16.mxu0 0
        %1328 = vmatmul.mubr.bf16.gmra.mxu0 %v494
        %v1329 = vpop.f32.mrf.mxu0
        %v1330 = vadd.f32 0.0, %v1329
        %v1331 = vpop.f32.mrf.mxu0
        %v1332 = vadd.f32 0.0, %v1331
        %v1333 = vpop.f32.mrf.mxu0
        %v1334 = vpop.f32.mrf.mxu0
        %1335 = vdwg.mxu0
        %1336 = vmatprep.subr.bf16.mxu0 %v1104
        %1337 = vmatpush1.bf16.msra.mxu0 %v1103
        %1338 = vmatprep.subr.bf16.mxu0 %v1089
        %1339 = vmatpush1.bf16.msra.mxu0 %v1088
        %1340 = vmatprep.subr.bf16.mxu0 %v1074
        %1341 = vmatpush1.bf16.msra.mxu0 %v1073
        %1342 = vmatprep.subr.bf16.mxu0 %v1059
        %1343 = vmatpush1.bf16.msra.mxu0 %v1058
        %1344 = vmatprep.subr.bf16.mxu0 %v1044
        %1345 = vmatpush1.bf16.msra.mxu0 %v1043
        %1346 = vmatprep.subr.bf16.mxu0 %v1029
        %1347 = vmatpush1.bf16.msra.mxu0 %v1028
        %1348 = vmatprep.subr.bf16.mxu0 %v1014
        %1349 = vmatpush1.bf16.msra.mxu0 %v1013
        %1350 = vmatprep.subr.bf16.mxu0 %v999
        %1351 = vmatpush1.bf16.msra.mxu0 %v998
        %1352 = vmatprep.subr.bf16.mxu0 0
        %1353 = vmatpush2.bf16.msra.mxu0 0
        %1354 = vmatprep.subr.bf16.mxu0 0
        %1355 = vmatpush2.bf16.msra.mxu0 0
        %1356 = vmatprep.subr.bf16.mxu0 0
        %1357 = vmatpush2.bf16.msra.mxu0 0
        %1358 = vmatprep.subr.bf16.mxu0 0
        %1359 = vmatpush2.bf16.msra.mxu0 0
        %1360 = vmatprep.subr.bf16.mxu0 0
        %1361 = vmatpush2.bf16.msra.mxu0 0
        %1362 = vmatprep.subr.bf16.mxu0 0
        %1363 = vmatpush2.bf16.msra.mxu0 0
        %1364 = vmatprep.subr.bf16.mxu0 0
        %1365 = vmatpush2.bf16.msra.mxu0 0
        %1366 = vmatprep.subr.bf16.mxu0 0
        %1367 = vmatpush2.bf16.msra.mxu0 0
        %1368 = vmatprep.mubr.bf16.mxu0 0
        %1369 = vmatmul.mubr.bf16.gmra.mxu0 %v493
        %v1370 = vpop.f32.mrf.mxu0
        %v1371 = vadd.f32 0.0, %v1370
        %v1372 = vpop.f32.mrf.mxu0
        %v1373 = vadd.f32 0.0, %v1372
        %v1374 = vpop.f32.mrf.mxu0
        %v1375 = vadd.f32 0.0, %v1374
        %v1376 = vpop.f32.mrf.mxu0
        %v1377 = vadd.f32 0.0, %v1376
        %1378 = vmatprep.mubr.bf16.mxu0 0
        %1379 = vmatmul.mubr.bf16.gmra.mxu0 %v494
        %v1380 = vpop.f32.mrf.mxu0
        %v1381 = vadd.f32 0.0, %v1380
        %v1382 = vpop.f32.mrf.mxu0
        %v1383 = vadd.f32 0.0, %v1382
        %v1384 = vpop.f32.mrf.mxu0
        %v1385 = vpop.f32.mrf.mxu0
        %1386 = vdwg.mxu0
        %1387 = vmatprep.subr.bf16.mxu0 %v1106
        %1388 = vmatpush1.bf16.msra.mxu0 %v1105
        %1389 = vmatprep.subr.bf16.mxu0 %v1091
        %1390 = vmatpush1.bf16.msra.mxu0 %v1090
        %1391 = vmatprep.subr.bf16.mxu0 %v1076
        %1392 = vmatpush1.bf16.msra.mxu0 %v1075
        %1393 = vmatprep.subr.bf16.mxu0 %v1061
        %1394 = vmatpush1.bf16.msra.mxu0 %v1060
        %1395 = vmatprep.subr.bf16.mxu0 %v1046
        %1396 = vmatpush1.bf16.msra.mxu0 %v1045
        %1397 = vmatprep.subr.bf16.mxu0 %v1031
        %1398 = vmatpush1.bf16.msra.mxu0 %v1030
        %1399 = vmatprep.subr.bf16.mxu0 %v1016
        %1400 = vmatpush1.bf16.msra.mxu0 %v1015
        %1401 = vmatprep.subr.bf16.mxu0 %v1001
        %1402 = vmatpush1.bf16.msra.mxu0 %v1000
        %1403 = vmatprep.subr.bf16.mxu0 0
        %1404 = vmatpush2.bf16.msra.mxu0 0
        %1405 = vmatprep.subr.bf16.mxu0 0
        %1406 = vmatpush2.bf16.msra.mxu0 0
        %1407 = vmatprep.subr.bf16.mxu0 0
        %1408 = vmatpush2.bf16.msra.mxu0 0
        %1409 = vmatprep.subr.bf16.mxu0 0
        %1410 = vmatpush2.bf16.msra.mxu0 0
        %1411 = vmatprep.subr.bf16.mxu0 0
        %1412 = vmatpush2.bf16.msra.mxu0 0
        %1413 = vmatprep.subr.bf16.mxu0 0
        %1414 = vmatpush2.bf16.msra.mxu0 0
        %1415 = vmatprep.subr.bf16.mxu0 0
        %1416 = vmatpush2.bf16.msra.mxu0 0
        %1417 = vmatprep.subr.bf16.mxu0 0
        %1418 = vmatpush2.bf16.msra.mxu0 0
        %1419 = vmatprep.mubr.bf16.mxu0 0
        %1420 = vmatmul.mubr.bf16.gmra.mxu0 %v493
        %v1421 = vpop.f32.mrf.mxu0
        %v1422 = vadd.f32 0.0, %v1421
        %v1423 = vpop.f32.mrf.mxu0
        %v1424 = vadd.f32 0.0, %v1423
        %v1425 = vpop.f32.mrf.mxu0
        %v1426 = vadd.f32 0.0, %v1425
        %v1427 = vpop.f32.mrf.mxu0
        %v1428 = vadd.f32 0.0, %v1427
        %1429 = vmatprep.mubr.bf16.mxu0 0
        %1430 = vmatmul.mubr.bf16.gmra.mxu0 %v494
        %v1431 = vpop.f32.mrf.mxu0
        %v1432 = vadd.f32 0.0, %v1431
        %v1433 = vpop.f32.mrf.mxu0
        %v1434 = vadd.f32 0.0, %v1433
        %v1435 = vpop.f32.mrf.mxu0
        %v1436 = vpop.f32.mrf.mxu0
        %1437 = vdwg.mxu0
        %1438 = vmatprep.subr.bf16.mxu0 %v1108
        %1439 = vmatpush1.bf16.msra.mxu0 %v1107
        %1440 = vmatprep.subr.bf16.mxu0 %v1093
        %1441 = vmatpush1.bf16.msra.mxu0 %v1092
        %1442 = vmatprep.subr.bf16.mxu0 %v1078
        %1443 = vmatpush1.bf16.msra.mxu0 %v1077
        %1444 = vmatprep.subr.bf16.mxu0 %v1063
        %1445 = vmatpush1.bf16.msra.mxu0 %v1062
        %1446 = vmatprep.subr.bf16.mxu0 %v1048
        %1447 = vmatpush1.bf16.msra.mxu0 %v1047
        %1448 = vmatprep.subr.bf16.mxu0 %v1033
        %1449 = vmatpush1.bf16.msra.mxu0 %v1032
        %1450 = vmatprep.subr.bf16.mxu0 %v1018
        %1451 = vmatpush1.bf16.msra.mxu0 %v1017
        %1452 = vmatprep.subr.bf16.mxu0 %v1003
        %1453 = vmatpush1.bf16.msra.mxu0 %v1002
        %1454 = vmatprep.subr.bf16.mxu0 0
        %1455 = vmatpush2.bf16.msra.mxu0 0
        %1456 = vmatprep.subr.bf16.mxu0 0
        %1457 = vmatpush2.bf16.msra.mxu0 0
        %1458 = vmatprep.subr.bf16.mxu0 0
        %1459 = vmatpush2.bf16.msra.mxu0 0
        %1460 = vmatprep.subr.bf16.mxu0 0
        %1461 = vmatpush2.bf16.msra.mxu0 0
        %1462 = vmatprep.subr.bf16.mxu0 0
        %1463 = vmatpush2.bf16.msra.mxu0 0
        %1464 = vmatprep.subr.bf16.mxu0 0
        %1465 = vmatpush2.bf16.msra.mxu0 0
        %1466 = vmatprep.subr.bf16.mxu0 0
        %1467 = vmatpush2.bf16.msra.mxu0 0
        %1468 = vmatprep.subr.bf16.mxu0 0
        %1469 = vmatpush2.bf16.msra.mxu0 0
        %1470 = vmatprep.mubr.bf16.mxu0 0
        %1471 = vmatmul.mubr.bf16.gmra.mxu0 %v493
        %v1472 = vpop.f32.mrf.mxu0
        %v1473 = vadd.f32 0.0, %v1472
        %v1474 = vpop.f32.mrf.mxu0
        %v1475 = vadd.f32 0.0, %v1474
        %v1476 = vpop.f32.mrf.mxu0
        %v1477 = vadd.f32 0.0, %v1476
        %v1478 = vpop.f32.mrf.mxu0
        %v1479 = vadd.f32 0.0, %v1478
        %1480 = vmatprep.mubr.bf16.mxu0 0
        %1481 = vmatmul.mubr.bf16.gmra.mxu0 %v494
        %v1482 = vpop.f32.mrf.mxu0
        %v1483 = vadd.f32 0.0, %v1482
        %v1484 = vpop.f32.mrf.mxu0
        %v1485 = vadd.f32 0.0, %v1484
        %v1486 = vpop.f32.mrf.mxu0
        %v1487 = vpop.f32.mrf.mxu0
        %1488 = vdwg.mxu0
        %1489 = vmatprep.subr.bf16.mxu0 %v1110
        %1490 = vmatpush1.bf16.msra.mxu0 %v1109
        %1491 = vmatprep.subr.bf16.mxu0 %v1095
        %1492 = vmatpush1.bf16.msra.mxu0 %v1094
        %1493 = vmatprep.subr.bf16.mxu0 %v1080
        %1494 = vmatpush1.bf16.msra.mxu0 %v1079
        %1495 = vmatprep.subr.bf16.mxu0 %v1065
        %1496 = vmatpush1.bf16.msra.mxu0 %v1064
        %1497 = vmatprep.subr.bf16.mxu0 %v1050
        %1498 = vmatpush1.bf16.msra.mxu0 %v1049
        %1499 = vmatprep.subr.bf16.mxu0 %v1035
        %1500 = vmatpush1.bf16.msra.mxu0 %v1034
        %1501 = vmatprep.subr.bf16.mxu0 %v1020
        %1502 = vmatpush1.bf16.msra.mxu0 %v1019
        %1503 = vmatprep.subr.bf16.mxu0 %v1005
        %1504 = vmatpush1.bf16.msra.mxu0 %v1004
        %1505 = vmatprep.subr.bf16.mxu0 0
        %1506 = vmatpush2.bf16.msra.mxu0 0
        %1507 = vmatprep.subr.bf16.mxu0 0
        %1508 = vmatpush2.bf16.msra.mxu0 0
        %1509 = vmatprep.subr.bf16.mxu0 0
        %1510 = vmatpush2.bf16.msra.mxu0 0
        %1511 = vmatprep.subr.bf16.mxu0 0
        %1512 = vmatpush2.bf16.msra.mxu0 0
        %1513 = vmatprep.subr.bf16.mxu0 0
        %1514 = vmatpush2.bf16.msra.mxu0 0
        %1515 = vmatprep.subr.bf16.mxu0 0
        %1516 = vmatpush2.bf16.msra.mxu0 0
        %1517 = vmatprep.subr.bf16.mxu0 0
        %1518 = vmatpush2.bf16.msra.mxu0 0
        %1519 = vmatprep.subr.bf16.mxu0 0
        %1520 = vmatpush2.bf16.msra.mxu0 0
        %1521 = vmatprep.mubr.bf16.mxu0 0
        %1522 = vmatmul.mubr.bf16.gmra.mxu0 %v493
        %v1523 = vpop.f32.mrf.mxu0
        %v1524 = vadd.f32 0.0, %v1523
        %v1525 = vpop.f32.mrf.mxu0
        %v1526 = vadd.f32 0.0, %v1525
        %v1527 = vpop.f32.mrf.mxu0
        %v1528 = vadd.f32 0.0, %v1527
        %v1529 = vpop.f32.mrf.mxu0
        %v1530 = vadd.f32 0.0, %v1529
        %1531 = vmatprep.mubr.bf16.mxu0 0
        %1532 = vmatmul.mubr.bf16.gmra.mxu0 %v494
        %v1533 = vpop.f32.mrf.mxu0
        %v1534 = vadd.f32 0.0, %v1533
        %v1535 = vpop.f32.mrf.mxu0
        %v1536 = vadd.f32 0.0, %v1535
        %v1537 = vpop.f32.mrf.mxu0
        %v1538 = vpop.f32.mrf.mxu0
        %1539 = vdwg.mxu0
        %1540 = vmatprep.subr.bf16.mxu0 %v1112
        %1541 = vmatpush1.bf16.msra.mxu0 %v1111
        %1542 = vmatprep.subr.bf16.mxu0 %v1097
        %1543 = vmatpush1.bf16.msra.mxu0 %v1096
        %1544 = vmatprep.subr.bf16.mxu0 %v1082
        %1545 = vmatpush1.bf16.msra.mxu0 %v1081
        %1546 = vmatprep.subr.bf16.mxu0 %v1067
        %1547 = vmatpush1.bf16.msra.mxu0 %v1066
        %1548 = vmatprep.subr.bf16.mxu0 %v1052
        %1549 = vmatpush1.bf16.msra.mxu0 %v1051
        %1550 = vmatprep.subr.bf16.mxu0 %v1037
        %1551 = vmatpush1.bf16.msra.mxu0 %v1036
        %1552 = vmatprep.subr.bf16.mxu0 %v1022
        %1553 = vmatpush1.bf16.msra.mxu0 %v1021
        %1554 = vmatprep.subr.bf16.mxu0 %v1007
        %1555 = vmatpush1.bf16.msra.mxu0 %v1006
        %1556 = vmatprep.subr.bf16.mxu0 0
        %1557 = vmatpush2.bf16.msra.mxu0 0
        %1558 = vmatprep.subr.bf16.mxu0 0
        %1559 = vmatpush2.bf16.msra.mxu0 0
        %1560 = vmatprep.subr.bf16.mxu0 0
        %1561 = vmatpush2.bf16.msra.mxu0 0
        %1562 = vmatprep.subr.bf16.mxu0 0
        %1563 = vmatpush2.bf16.msra.mxu0 0
        %1564 = vmatprep.subr.bf16.mxu0 0
        %1565 = vmatpush2.bf16.msra.mxu0 0
        %1566 = vmatprep.subr.bf16.mxu0 0
        %1567 = vmatpush2.bf16.msra.mxu0 0
        %1568 = vmatprep.subr.bf16.mxu0 0
        %1569 = vmatpush2.bf16.msra.mxu0 0
        %1570 = vmatprep.subr.bf16.mxu0 0
        %1571 = vmatpush2.bf16.msra.mxu0 0
        %1572 = vmatprep.mubr.bf16.mxu0 0
        %1573 = vmatmul.mubr.bf16.gmra.mxu0 %v493
        %v1574 = vpop.f32.mrf.mxu0
        %v1575 = vadd.f32 0.0, %v1574
        %v1576 = vpop.f32.mrf.mxu0
        %v1577 = vadd.f32 0.0, %v1576
        %v1578 = vpop.f32.mrf.mxu0
        %v1579 = vadd.f32 0.0, %v1578
        %v1580 = vpop.f32.mrf.mxu0
        %v1581 = vadd.f32 0.0, %v1580
        %1582 = vmatprep.mubr.bf16.mxu0 0
        %1583 = vmatmul.mubr.bf16.gmra.mxu0 %v494
        %v1584 = vpop.f32.mrf.mxu0
        %v1585 = vadd.f32 0.0, %v1584
        %v1586 = vpop.f32.mrf.mxu0
        %v1587 = vadd.f32 0.0, %v1586
        %v1588 = vpop.f32.mrf.mxu0
        %v1589 = vpop.f32.mrf.mxu0
        %1590 = vdwg.mxu0
        %1591 = vmatprep.subr.bf16.mxu0 0
        %1592 = vmatpush1.bf16.msra.mxu0 %v1113
        %1593 = vmatprep.subr.bf16.mxu0 0
        %1594 = vmatpush1.bf16.msra.mxu0 %v1098
        %1595 = vmatprep.subr.bf16.mxu0 0
        %1596 = vmatpush1.bf16.msra.mxu0 %v1083
        %1597 = vmatprep.subr.bf16.mxu0 0
        %1598 = vmatpush1.bf16.msra.mxu0 %v1068
        %1599 = vmatprep.subr.bf16.mxu0 0
        %1600 = vmatpush1.bf16.msra.mxu0 %v1053
        %1601 = vmatprep.subr.bf16.mxu0 0
        %1602 = vmatpush1.bf16.msra.mxu0 %v1038
        %1603 = vmatprep.subr.bf16.mxu0 0
        %1604 = vmatpush1.bf16.msra.mxu0 %v1023
        %1605 = vmatprep.subr.bf16.mxu0 0
        %1606 = vmatpush1.bf16.msra.mxu0 %v1008
        %1607 = vmatprep.subr.bf16.mxu0 0
        %1608 = vmatpush2.bf16.msra.mxu0 0
        %1609 = vmatprep.subr.bf16.mxu0 0
        %1610 = vmatpush2.bf16.msra.mxu0 0
        %1611 = vmatprep.subr.bf16.mxu0 0
        %1612 = vmatpush2.bf16.msra.mxu0 0
        %1613 = vmatprep.subr.bf16.mxu0 0
        %1614 = vmatpush2.bf16.msra.mxu0 0
        %1615 = vmatprep.subr.bf16.mxu0 0
        %1616 = vmatpush2.bf16.msra.mxu0 0
        %1617 = vmatprep.subr.bf16.mxu0 0
        %1618 = vmatpush2.bf16.msra.mxu0 0
        %1619 = vmatprep.subr.bf16.mxu0 0
        %1620 = vmatpush2.bf16.msra.mxu0 0
        %1621 = vmatprep.subr.bf16.mxu0 0
        %1622 = vmatpush2.bf16.msra.mxu0 0
        %1623 = vmatprep.mubr.bf16.mxu0 0
        %1624 = vmatmul.mubr.bf16.gmra.mxu0 %v493
        %v1625 = vpop.f32.mrf.mxu0
        %v1626 = vadd.f32 0.0, %v1625
        %v1627 = vpop.f32.mrf.mxu0
        %v1628 = vpop.f32.mrf.mxu0
        %v1629 = vadd.f32 0.0, %v1628
        %v1630 = vpop.f32.mrf.mxu0
        %1631 = vmatprep.mubr.bf16.mxu0 0
        %1632 = vmatmul.mubr.bf16.gmra.mxu0 %v494
        %v1633 = vpop.f32.mrf.mxu0
        %v1634 = vadd.f32 0.0, %v1633
        %v1635 = vpop.f32.mrf.mxu0
        %v1636 = vpop.f32.mrf.mxu0
        %v1637 = vpop.f32.mrf.mxu0
        %1638 = vdwg.mxu0
        %v1639 = vpack.c.bf16 %v1273, %v1269
        %v1640 = vpack.c.bf16 %v1279, %v1279
        %1641 = vxpose.xlu0.b32.start [1/16] %v1271, 128
        %1642 = vxpose.xlu0.b32.cont [2/16] %v1275, 128
        %1643 = vxpose.xlu0.b32.cont [3/16] %v1281, 128
        %1644 = vxpose.xlu0.b32.cont [4/16] 0.0, 128
        %1645 = vxpose.xlu0.b32.cont [5/16] 0.0, 128
        %1646 = vxpose.xlu0.b32.cont [6/16] 0.0, 128
        %1647 = vxpose.xlu0.b32.cont [7/16] 0.0, 128
        %1648 = vxpose.xlu0.b32.cont [8/16] 0.0, 128
        %1649 = vxpose.xlu0.b32.cont [9/16] 0.0, 128
        %1650 = vxpose.xlu0.b32.cont [10/16] 0.0, 128
        %1651 = vxpose.xlu0.b32.cont [11/16] 0.0, 128
        %1652 = vxpose.xlu0.b32.cont [12/16] 0.0, 128
        %1653 = vxpose.xlu0.b32.cont [13/16] 0.0, 128
        %1654 = vxpose.xlu0.b32.cont [14/16] 0.0, 128
        %1655 = vxpose.xlu0.b32.cont [15/16] 0.0, 128
        %1656 = vxpose.xlu0.b32.end [16/16] 0.0, 128
        %v1657 = vpop.trf.xlu0
        %v1658 = vpop.trf.xlu0
        %v1659 = vpop.trf.xlu0
        %v1660 = vpop.trf.xlu0
        %v1661 = vpop.trf.xlu0
        %v1662 = vpop.trf.xlu0
        %v1663 = vpop.trf.xlu0
        %v1664 = vpop.trf.xlu0
        %v1665 = vpop.trf.xlu0
        %v1666 = vpop.trf.xlu0
        %v1667 = vpop.trf.xlu0
        %v1668 = vpop.trf.xlu0
        %v1669 = vpop.trf.xlu0
        %v1670 = vpop.trf.xlu0
        %v1671 = vpop.trf.xlu0
        %v1672 = vpop.trf.xlu0
        %v1673 = vpack.c.bf16 %v1658, %v1657
        %v1674 = vpack.c.bf16 %v1660, %v1659
        %v1675 = vpack.c.bf16 %v1662, %v1661
        %v1676 = vpack.c.bf16 %v1664, %v1663
        %v1677 = vpack.c.bf16 %v1666, %v1665
        %v1678 = vpack.c.bf16 %v1668, %v1667
        %v1679 = vpack.c.bf16 %v1670, %v1669
        %v1680 = vpack.c.bf16 %v1672, %v1671
        %1681 = vmatprep.subr.bf16.mxu0 0
        %1682 = vmatpush1.bf16.msra.mxu0 %v1680
        %1683 = vmatprep.subr.bf16.mxu0 0
        %1684 = vmatpush1.bf16.msra.mxu0 %v1679
        %1685 = vmatprep.subr.bf16.mxu0 0
        %1686 = vmatpush1.bf16.msra.mxu0 %v1678
        %1687 = vmatprep.subr.bf16.mxu0 0
        %1688 = vmatpush1.bf16.msra.mxu0 %v1677
        %1689 = vmatprep.subr.bf16.mxu0 0
        %1690 = vmatpush1.bf16.msra.mxu0 %v1676
        %1691 = vmatprep.subr.bf16.mxu0 0
        %1692 = vmatpush1.bf16.msra.mxu0 %v1675
        %1693 = vmatprep.subr.bf16.mxu0 0
        %1694 = vmatpush1.bf16.msra.mxu0 %v1674
        %1695 = vmatprep.subr.bf16.mxu0 0
        %1696 = vmatpush1.bf16.msra.mxu0 %v1673
        %1697 = vmatprep.subr.bf16.mxu0 0
        %1698 = vmatpush2.bf16.msra.mxu0 0
        %1699 = vmatprep.subr.bf16.mxu0 0
        %1700 = vmatpush2.bf16.msra.mxu0 0
        %1701 = vmatprep.subr.bf16.mxu0 0
        %1702 = vmatpush2.bf16.msra.mxu0 0
        %1703 = vmatprep.subr.bf16.mxu0 0
        %1704 = vmatpush2.bf16.msra.mxu0 0
        %1705 = vmatprep.subr.bf16.mxu0 0
        %1706 = vmatpush2.bf16.msra.mxu0 0
        %1707 = vmatprep.subr.bf16.mxu0 0
        %1708 = vmatpush2.bf16.msra.mxu0 0
        %1709 = vmatprep.subr.bf16.mxu0 0
        %1710 = vmatpush2.bf16.msra.mxu0 0
        %1711 = vmatprep.subr.bf16.mxu0 0
        %1712 = vmatpush2.bf16.msra.mxu0 0
        %1713 = vmatprep.mubr.bf16.mxu0 0
        %1714 = vmatmul.mubr.bf16.gmra.mxu0 %v1639
        %v1715 = vpop.f32.mrf.mxu0
        %v1716 = vadd.f32 %v495, %v1715
        %v1717 = vpop.f32.mrf.mxu0
        %v1718 = vpop.f32.mrf.mxu0
        %v1719 = vadd.f32 %v496, %v1718
        %v1720 = vpop.f32.mrf.mxu0
        %1721 = vmatprep.mubr.bf16.mxu0 0
        %1722 = vmatmul.mubr.bf16.gmra.mxu0 %v1640
        %v1723 = vpop.f32.mrf.mxu0
        %v1724 = vadd.f32 %v497, %v1723
        %v1725 = vpop.f32.mrf.mxu0
        %v1726 = vpop.f32.mrf.mxu0
        %v1727 = vpop.f32.mrf.mxu0
        %1728 = vdwg.mxu0
        %vm1729 = vcmask 195584
        %v1730 = vsel %vm1729, %v1716, -inf
        %1731 = vmax.xlane.f32.xlu0 %v1730
        %v1732 = vpop.xlane.xlu0 %1731
        %v1733 = vsel %vm1729, %v1719, -inf
        %1734 = vmax.xlane.f32.xlu0 %v1733
        %v1735 = vpop.xlane.xlu0 %1734
        %v1736 = vsel %vm1729, %v1724, -inf
        %1737 = vmax.xlane.f32.xlu0 %v1736
        %v1738 = vpop.xlane.xlu0 %1737
        %v1739 = vsub.f32 %v1716, %v1732
        %v1740 = vsub.f32 %v1719, %v1735
        %v1741 = vsub.f32 %v1724, %v1738
        %v1742 = vmul.f32 %v1739, 1.442695
        %v1743 = vpow.pop %v1742
        %v1744 = vmul.f32 %v1740, 1.442695
        %v1745 = vpow.pop %v1744
        %v1746 = vmul.f32 %v1741, 1.442695
        %v1747 = vpow.pop %v1746
        %v1748 = vsel %vm1729, %v1743, 0.0
        %1749 = vadd.xlane.f32.xlu0 %v1748
        %v1750 = vpop.xlane.xlu0 %1749
        %v1751 = vsel %vm1729, %v1745, 0.0
        %1752 = vadd.xlane.f32.xlu0 %v1751
        %v1753 = vpop.xlane.xlu0 %1752
        %v1754 = vsel %vm1729, %v1747, 0.0
        %1755 = vadd.xlane.f32.xlu0 %v1754
        %v1756 = vpop.xlane.xlu0 %1755
        %v1757 = vrcp.pop %v1750
        %v1758 = vrcp.pop %v1753
        %v1759 = vrcp.pop %v1756
        %v1760 = vmul.f32 %v1743, %v1757
        %v1761 = vmul.f32 %v1745, %v1758
        %v1762 = vmul.f32 %v1747, %v1759
        %v1763 = vpack.c.bf16 %v1761, %v1760
        %v1764 = vpack.c.bf16 %v1762, %v1762
        %v1765 = vpack.c.bf16 %v1324, %v1320
        %v1766 = vpack.c.bf16 %v1330, %v1330
        %v1768 = vsel %vm1729, %v1763, 0
        %v1771 = vsel %vm1729, %v1764, 0
        %vm1773 = vcmask 1043456
        %v1775 = vsel %vm1773, %v1766, 0
        %1777 = vmatprep.subr.bf16.mxu0 0
        %1778 = vmatpush1.bf16.msra.mxu0 0
        %1779 = vmatprep.subr.bf16.mxu0 0
        %1780 = vmatpush1.bf16.msra.mxu0 0
        %1781 = vmatprep.subr.bf16.mxu0 0
        %1782 = vmatpush1.bf16.msra.mxu0 0
        %1783 = vmatprep.subr.bf16.mxu0 0
        %1784 = vmatpush1.bf16.msra.mxu0 0
        %1785 = vmatprep.subr.bf16.mxu0 0
        %1786 = vmatpush1.bf16.msra.mxu0 0
        %1787 = vmatprep.subr.bf16.mxu0 0
        %1788 = vmatpush1.bf16.msra.mxu0 0
        %1789 = vmatprep.subr.bf16.mxu0 0
        %1790 = vmatpush1.bf16.msra.mxu0 %v1775
        %1791 = vmatprep.subr.bf16.mxu0 0
        %1792 = vmatpush1.bf16.msra.mxu0 %v1765
        %1793 = vmatprep.subr.bf16.mxu0 0
        %1794 = vmatpush2.bf16.msra.mxu0 0
        %1795 = vmatprep.subr.bf16.mxu0 0
        %1796 = vmatpush2.bf16.msra.mxu0 0
        %1797 = vmatprep.subr.bf16.mxu0 0
        %1798 = vmatpush2.bf16.msra.mxu0 0
        %1799 = vmatprep.subr.bf16.mxu0 0
        %1800 = vmatpush2.bf16.msra.mxu0 0
        %1801 = vmatprep.subr.bf16.mxu0 0
        %1802 = vmatpush2.bf16.msra.mxu0 0
        %1803 = vmatprep.subr.bf16.mxu0 0
        %1804 = vmatpush2.bf16.msra.mxu0 0
        %1805 = vmatprep.subr.bf16.mxu0 0
        %1806 = vmatpush2.bf16.msra.mxu0 0
        %1807 = vmatprep.subr.bf16.mxu0 0
        %1808 = vmatpush2.bf16.msra.mxu0 0
        %1809 = vmatprep.mubr.bf16.mxu0 0
        %1810 = vmatmul.mubr.bf16.gmra.mxu0 %v1768
        %v1811 = vpop.f32.mrf.mxu0
        %v1812 = vadd.f32 0.0, %v1811
        %v1813 = vpop.f32.mrf.mxu0
        %v1814 = vpop.f32.mrf.mxu0
        %v1815 = vadd.f32 0.0, %v1814
        %v1816 = vpop.f32.mrf.mxu0
        %1817 = vmatprep.mubr.bf16.mxu0 0
        %1818 = vmatmul.mubr.bf16.gmra.mxu0 %v1771
        %v1819 = vpop.f32.mrf.mxu0
        %v1820 = vadd.f32 0.0, %v1819
        %v1821 = vpop.f32.mrf.mxu0
        %v1822 = vpop.f32.mrf.mxu0
        %v1823 = vpop.f32.mrf.mxu0
        %1824 = vdwg.mxu0
        %v1825 = vadd.f32 %v1812, 0.0
        %v1826 = vadd.f32 %v1815, 0.0
        %v1827 = vadd.f32 %v1820, 0.0
        %v1828 = vpack.c.bf16 %v1815, %v1812
        %v1829 = vpack.c.bf16 %v1820, %v1820
        %v1830 = vld [vmem:[#allocation8] sm:$0xff]
        %v1831 = vld [vmem:[#allocation8 + $0x8] sm:$0xff]
        %v1832 = vld [vmem:[#allocation8 + $0x10] sm:$0xff]
        %v1833 = vld [vmem:[#allocation8 + $0x18] sm:$0xff]
        %v1834 = vld [vmem:[#allocation8 + $0x20] sm:$0xff]
        %v1835 = vld [vmem:[#allocation8 + $0x28] sm:$0xff]
        %v1836 = vld [vmem:[#allocation8 + $0x30] sm:$0xff]
        %v1837 = vld [vmem:[#allocation8 + $0x38] sm:$0xff]
        %v1838 = vld [vmem:[#allocation8 + $0x40] sm:$0xff]
        %v1839 = vld [vmem:[#allocation8 + $0x48] sm:$0xff]
        %v1840 = vld [vmem:[#allocation8 + $0x50] sm:$0xff]
        %v1841 = vld [vmem:[#allocation8 + $0x58] sm:$0xff]
        %v1842 = vld [vmem:[#allocation8 + $0x60] sm:$0xff]
        %v1843 = vld [vmem:[#allocation8 + $0x68] sm:$0xff]
        %v1844 = vld [vmem:[#allocation8 + $0x70] sm:$0xff]
        %v1845 = vld [vmem:[#allocation8 + $0x78] sm:$0xff]
        %v1862 = vunpack.c.l.b16 %v1830
        %v1863 = vunpack.c.h.b16 %v1830
        %v1864 = vunpack.c.l.b16 %v1831
        %v1865 = vunpack.c.h.b16 %v1831
        %v1866 = vunpack.c.l.b16 %v1832
        %v1867 = vunpack.c.h.b16 %v1832
        %v1868 = vunpack.c.l.b16 %v1833
        %v1869 = vunpack.c.h.b16 %v1833
        %v1870 = vunpack.c.l.b16 %v1834
        %v1871 = vunpack.c.h.b16 %v1834
        %v1872 = vunpack.c.l.b16 %v1835
        %v1873 = vunpack.c.h.b16 %v1835
        %v1874 = vunpack.c.l.b16 %v1836
        %v1875 = vunpack.c.h.b16 %v1836
        %v1876 = vunpack.c.l.b16 %v1837
        %v1877 = vunpack.c.h.b16 %v1837
        %v1878 = vunpack.c.l.b16 %v1838
        %v1879 = vunpack.c.h.b16 %v1838
        %v1880 = vunpack.c.l.b16 %v1839
        %v1881 = vunpack.c.h.b16 %v1839
        %v1882 = vunpack.c.l.b16 %v1840
        %v1883 = vunpack.c.h.b16 %v1840
        %v1884 = vunpack.c.l.b16 %v1841
        %v1885 = vunpack.c.h.b16 %v1841
        %v1886 = vunpack.c.l.b16 %v1842
        %v1887 = vunpack.c.h.b16 %v1842
        %v1888 = vunpack.c.l.b16 %v1843
        %v1889 = vunpack.c.h.b16 %v1843
        %v1890 = vunpack.c.l.b16 %v1844
        %v1891 = vunpack.c.h.b16 %v1844
        %v1892 = vunpack.c.l.b16 %v1845
        %v1893 = vunpack.c.h.b16 %v1845
        %v1894 = vpack.c.b16 %v1864, %v1862
        %v1895 = vpack.c.b16 %v1865, %v1863
        %v1896 = vpack.c.b16 %v1868, %v1866
        %v1897 = vpack.c.b16 %v1869, %v1867
        %v1898 = vpack.c.b16 %v1872, %v1870
        %v1899 = vpack.c.b16 %v1873, %v1871
        %v1900 = vpack.c.b16 %v1876, %v1874
        %v1901 = vpack.c.b16 %v1877, %v1875
        %v1902 = vpack.c.b16 %v1880, %v1878
        %v1903 = vpack.c.b16 %v1881, %v1879
        %v1904 = vpack.c.b16 %v1884, %v1882
        %v1905 = vpack.c.b16 %v1885, %v1883
        %v1906 = vpack.c.b16 %v1888, %v1886
        %v1907 = vpack.c.b16 %v1889, %v1887
        %v1908 = vpack.c.b16 %v1892, %v1890
        %v1909 = vpack.c.b16 %v1893, %v1891
        %1926 = vmatprep.subr.bf16.mxu0 %v1909
        %1927 = vmatpush1.bf16.msra.mxu0 %v1908
        %1928 = vmatprep.subr.bf16.mxu0 %v1907
        %1929 = vmatpush1.bf16.msra.mxu0 %v1906
        %1930 = vmatprep.subr.bf16.mxu0 %v1905
        %1931 = vmatpush1.bf16.msra.mxu0 %v1904
        %1932 = vmatprep.subr.bf16.mxu0 %v1903
        %1933 = vmatpush1.bf16.msra.mxu0 %v1902
        %1934 = vmatprep.subr.bf16.mxu0 %v1901
        %1935 = vmatpush1.bf16.msra.mxu0 %v1900
        %1936 = vmatprep.subr.bf16.mxu0 %v1899
        %1937 = vmatpush1.bf16.msra.mxu0 %v1898
        %1938 = vmatprep.subr.bf16.mxu0 %v1897
        %1939 = vmatpush1.bf16.msra.mxu0 %v1896
        %1940 = vmatprep.subr.bf16.mxu0 %v1895
        %1941 = vmatpush1.bf16.msra.mxu0 %v1894
        %1942 = vmatprep.subr.bf16.mxu0 0
        %1943 = vmatpush2.bf16.msra.mxu0 0
        %1944 = vmatprep.subr.bf16.mxu0 0
        %1945 = vmatpush2.bf16.msra.mxu0 0
        %1946 = vmatprep.subr.bf16.mxu0 0
        %1947 = vmatpush2.bf16.msra.mxu0 0
        %1948 = vmatprep.subr.bf16.mxu0 0
        %1949 = vmatpush2.bf16.msra.mxu0 0
        %1950 = vmatprep.subr.bf16.mxu0 0
        %1951 = vmatpush2.bf16.msra.mxu0 0
        %1952 = vmatprep.subr.bf16.mxu0 0
        %1953 = vmatpush2.bf16.msra.mxu0 0
        %1954 = vmatprep.subr.bf16.mxu0 0
        %1955 = vmatpush2.bf16.msra.mxu0 0
        %1956 = vmatprep.subr.bf16.mxu0 0
        %1957 = vmatpush2.bf16.msra.mxu0 0
        %1958 = vmatprep.mubr.bf16.mxu0 0
        %1959 = vmatmul.mubr.bf16.gmra.mxu0 %v1828
        %v1960 = vpop.f32.mrf.mxu0
        %v1961 = vadd.f32 0.0, %v1960
        %v1962 = vpop.f32.mrf.mxu0
        %v1963 = vadd.f32 0.0, %v1962
        %v1964 = vpop.f32.mrf.mxu0
        %v1965 = vadd.f32 0.0, %v1964
        %v1966 = vpop.f32.mrf.mxu0
        %v1967 = vadd.f32 0.0, %v1966
        %1968 = vmatprep.mubr.bf16.mxu0 0
        %1969 = vmatmul.mubr.bf16.gmra.mxu0 %v1829
        %v1970 = vpop.f32.mrf.mxu0
        %v1971 = vadd.f32 0.0, %v1970
        %v1972 = vpop.f32.mrf.mxu0
        %v1973 = vadd.f32 0.0, %v1972
        %v1974 = vpop.f32.mrf.mxu0
        %v1975 = vpop.f32.mrf.mxu0
        %1976 = vdwg.mxu0
        %v1977 = vmax.f32 %v1961, 0.0
        %v1978 = vmax.f32 %v1963, 0.0
        %v1979 = vmax.f32 %v1965, 0.0
        %v1980 = vmax.f32 %v1967, 0.0
        %v1981 = vmax.f32 %v1971, 0.0
        %v1982 = vmax.f32 %v1973, 0.0
        %v1983 = vpack.c.bf16 %v1979, %v1977
        %v1984 = vpack.c.bf16 %v1980, %v1978
        %v1985 = vpack.c.bf16 %v1981, %v1981
        %v1986 = vpack.c.bf16 %v1982, %v1982
        %v1987 = vpack.c.bf16 %v1326, %v1322
        %v1988 = vpack.c.bf16 %v1332, %v1332
        %1989 = vxpose.xlu0.b32.start [1/16] %v1371, 128
        %1990 = vxpose.xlu0.b32.cont [2/16] %v1375, 128
        %1991 = vxpose.xlu0.b32.cont [3/16] %v1381, 128
        %1992 = vxpose.xlu0.b32.cont [4/16] 0.0, 128
        %1993 = vxpose.xlu0.b32.cont [5/16] 0.0, 128
        %1994 = vxpose.xlu0.b32.cont [6/16] 0.0, 128
        %1995 = vxpose.xlu0.b32.cont [7/16] 0.0, 128
        %1996 = vxpose.xlu0.b32.cont [8/16] 0.0, 128
        %1997 = vxpose.xlu0.b32.cont [9/16] 0.0, 128
        %1998 = vxpose.xlu0.b32.cont [10/16] 0.0, 128
        %1999 = vxpose.xlu0.b32.cont [11/16] 0.0, 128
        %2000 = vxpose.xlu0.b32.cont [12/16] 0.0, 128
        %2001 = vxpose.xlu0.b32.cont [13/16] 0.0, 128
        %2002 = vxpose.xlu0.b32.cont [14/16] 0.0, 128
        %2003 = vxpose.xlu0.b32.cont [15/16] 0.0, 128
        %2004 = vxpose.xlu0.b32.end [16/16] 0.0, 128
        %v2005 = vpop.trf.xlu0
        %v2006 = vpop.trf.xlu0
        %v2007 = vpop.trf.xlu0
        %v2008 = vpop.trf.xlu0
        %v2009 = vpop.trf.xlu0
        %v2010 = vpop.trf.xlu0
        %v2011 = vpop.trf.xlu0
        %v2012 = vpop.trf.xlu0
        %v2013 = vpop.trf.xlu0
        %v2014 = vpop.trf.xlu0
        %v2015 = vpop.trf.xlu0
        %v2016 = vpop.trf.xlu0
        %v2017 = vpop.trf.xlu0
        %v2018 = vpop.trf.xlu0
        %v2019 = vpop.trf.xlu0
        %v2020 = vpop.trf.xlu0
        %v2021 = vpack.c.bf16 %v2006, %v2005
        %v2022 = vpack.c.bf16 %v2008, %v2007
        %v2023 = vpack.c.bf16 %v2010, %v2009
        %v2024 = vpack.c.bf16 %v2012, %v2011
        %v2025 = vpack.c.bf16 %v2014, %v2013
        %v2026 = vpack.c.bf16 %v2016, %v2015
        %v2027 = vpack.c.bf16 %v2018, %v2017
        %v2028 = vpack.c.bf16 %v2020, %v2019
        %2029 = vmatprep.subr.bf16.mxu0 0
        %2030 = vmatpush1.bf16.msra.mxu0 %v2028
        %2031 = vmatprep.subr.bf16.mxu0 0
        %2032 = vmatpush1.bf16.msra.mxu0 %v2027
        %2033 = vmatprep.subr.bf16.mxu0 0
        %2034 = vmatpush1.bf16.msra.mxu0 %v2026
        %2035 = vmatprep.subr.bf16.mxu0 0
        %2036 = vmatpush1.bf16.msra.mxu0 %v2025
        %2037 = vmatprep.subr.bf16.mxu0 0
        %2038 = vmatpush1.bf16.msra.mxu0 %v2024
        %2039 = vmatprep.subr.bf16.mxu0 0
        %2040 = vmatpush1.bf16.msra.mxu0 %v2023
        %2041 = vmatprep.subr.bf16.mxu0 0
        %2042 = vmatpush1.bf16.msra.mxu0 %v2022
        %2043 = vmatprep.subr.bf16.mxu0 0
        %2044 = vmatpush1.bf16.msra.mxu0 %v2021
        %2045 = vmatprep.subr.bf16.mxu0 0
        %2046 = vmatpush2.bf16.msra.mxu0 0
        %2047 = vmatprep.subr.bf16.mxu0 0
        %2048 = vmatpush2.bf16.msra.mxu0 0
        %2049 = vmatprep.subr.bf16.mxu0 0
        %2050 = vmatpush2.bf16.msra.mxu0 0
        %2051 = vmatprep.subr.bf16.mxu0 0
        %2052 = vmatpush2.bf16.msra.mxu0 0
        %2053 = vmatprep.subr.bf16.mxu0 0
        %2054 = vmatpush2.bf16.msra.mxu0 0
        %2055 = vmatprep.subr.bf16.mxu0 0
        %2056 = vmatpush2.bf16.msra.mxu0 0
        %2057 = vmatprep.subr.bf16.mxu0 0
        %2058 = vmatpush2.bf16.msra.mxu0 0
        %2059 = vmatprep.subr.bf16.mxu0 0
        %2060 = vmatpush2.bf16.msra.mxu0 0
        %2061 = vmatprep.mubr.bf16.mxu0 0
        %2062 = vmatmul.mubr.bf16.gmra.mxu0 %v1987
        %v2063 = vpop.f32.mrf.mxu0
        %v2064 = vadd.f32 %v495, %v2063
        %v2065 = vpop.f32.mrf.mxu0
        %v2066 = vpop.f32.mrf.mxu0
        %v2067 = vadd.f32 %v496, %v2066
        %v2068 = vpop.f32.mrf.mxu0
        %2069 = vmatprep.mubr.bf16.mxu0 0
        %2070 = vmatmul.mubr.bf16.gmra.mxu0 %v1988
        %v2071 = vpop.f32.mrf.mxu0
        %v2072 = vadd.f32 %v497, %v2071
        %v2073 = vpop.f32.mrf.mxu0
        %v2074 = vpop.f32.mrf.mxu0
        %v2075 = vpop.f32.mrf.mxu0
        %2076 = vdwg.mxu0
        %v2077 = vsel %vm1729, %v2064, -inf
        %2078 = vmax.xlane.f32.xlu0 %v2077
        %v2079 = vpop.xlane.xlu0 %2078
        %v2080 = vsel %vm1729, %v2067, -inf
        %2081 = vmax.xlane.f32.xlu0 %v2080
        %v2082 = vpop.xlane.xlu0 %2081
        %v2083 = vsel %vm1729, %v2072, -inf
        %2084 = vmax.xlane.f32.xlu0 %v2083
        %v2085 = vpop.xlane.xlu0 %2084
        %v2086 = vsub.f32 %v2064, %v2079
        %v2087 = vsub.f32 %v2067, %v2082
        %v2088 = vsub.f32 %v2072, %v2085
        %v2089 = vmul.f32 %v2086, 1.442695
        %v2090 = vpow.pop %v2089
        %v2091 = vmul.f32 %v2087, 1.442695
        %v2092 = vpow.pop %v2091
        %v2093 = vmul.f32 %v2088, 1.442695
        %v2094 = vpow.pop %v2093
        %v2095 = vsel %vm1729, %v2090, 0.0
        %2096 = vadd.xlane.f32.xlu0 %v2095
        %v2097 = vpop.xlane.xlu0 %2096
        %v2098 = vsel %vm1729, %v2092, 0.0
        %2099 = vadd.xlane.f32.xlu0 %v2098
        %v2100 = vpop.xlane.xlu0 %2099
        %v2101 = vsel %vm1729, %v2094, 0.0
        %2102 = vadd.xlane.f32.xlu0 %v2101
        %v2103 = vpop.xlane.xlu0 %2102
        %v2104 = vrcp.pop %v2097
        %v2105 = vrcp.pop %v2100
        %v2106 = vrcp.pop %v2103
        %v2107 = vmul.f32 %v2090, %v2104
        %v2108 = vmul.f32 %v2092, %v2105
        %v2109 = vmul.f32 %v2094, %v2106
        %v2110 = vpack.c.bf16 %v2108, %v2107
        %v2111 = vpack.c.bf16 %v2109, %v2109
        %v2112 = vpack.c.bf16 %v1377, %v1373
        %v2113 = vpack.c.bf16 %v1383, %v1383
        %v2115 = vsel %vm1729, %v2110, 0
        %v2118 = vsel %vm1729, %v2111, 0
        %v2121 = vsel %vm1773, %v2113, 0
        %2123 = vmatprep.subr.bf16.mxu0 0
        %2124 = vmatpush1.bf16.msra.mxu0 0
        %2125 = vmatprep.subr.bf16.mxu0 0
        %2126 = vmatpush1.bf16.msra.mxu0 0
        %2127 = vmatprep.subr.bf16.mxu0 0
        %2128 = vmatpush1.bf16.msra.mxu0 0
        %2129 = vmatprep.subr.bf16.mxu0 0
        %2130 = vmatpush1.bf16.msra.mxu0 0
        %2131 = vmatprep.subr.bf16.mxu0 0
        %2132 = vmatpush1.bf16.msra.mxu0 0
        %2133 = vmatprep.subr.bf16.mxu0 0
        %2134 = vmatpush1.bf16.msra.mxu0 0
        %2135 = vmatprep.subr.bf16.mxu0 0
        %2136 = vmatpush1.bf16.msra.mxu0 %v2121
        %2137 = vmatprep.subr.bf16.mxu0 0
        %2138 = vmatpush1.bf16.msra.mxu0 %v2112
        %2139 = vmatprep.subr.bf16.mxu0 0
        %2140 = vmatpush2.bf16.msra.mxu0 0
        %2141 = vmatprep.subr.bf16.mxu0 0
        %2142 = vmatpush2.bf16.msra.mxu0 0
        %2143 = vmatprep.subr.bf16.mxu0 0
        %2144 = vmatpush2.bf16.msra.mxu0 0
        %2145 = vmatprep.subr.bf16.mxu0 0
        %2146 = vmatpush2.bf16.msra.mxu0 0
        %2147 = vmatprep.subr.bf16.mxu0 0
        %2148 = vmatpush2.bf16.msra.mxu0 0
        %2149 = vmatprep.subr.bf16.mxu0 0
        %2150 = vmatpush2.bf16.msra.mxu0 0
        %2151 = vmatprep.subr.bf16.mxu0 0
        %2152 = vmatpush2.bf16.msra.mxu0 0
        %2153 = vmatprep.subr.bf16.mxu0 0
        %2154 = vmatpush2.bf16.msra.mxu0 0
        %2155 = vmatprep.mubr.bf16.mxu0 0
        %2156 = vmatmul.mubr.bf16.gmra.mxu0 %v2115
        %v2157 = vpop.f32.mrf.mxu0
        %v2158 = vadd.f32 0.0, %v2157
        %v2159 = vpop.f32.mrf.mxu0
        %v2160 = vpop.f32.mrf.mxu0
        %v2161 = vadd.f32 0.0, %v2160
        %v2162 = vpop.f32.mrf.mxu0
        %2163 = vmatprep.mubr.bf16.mxu0 0
        %2164 = vmatmul.mubr.bf16.gmra.mxu0 %v2118
        %v2165 = vpop.f32.mrf.mxu0
        %v2166 = vadd.f32 0.0, %v2165
        %v2167 = vpop.f32.mrf.mxu0
        %v2168 = vpop.f32.mrf.mxu0
        %v2169 = vpop.f32.mrf.mxu0
        %2170 = vdwg.mxu0
        %v2171 = vadd.f32 %v1825, %v2158
        %v2172 = vadd.f32 %v1826, %v2161
        %v2173 = vadd.f32 %v1827, %v2166
        %v2174 = vpack.c.bf16 %v2161, %v2158
        %v2175 = vpack.c.bf16 %v2166, %v2166
        %s2176 = scalar_lea.vmem [#allocation8], 128
        %v2177 = vld [vmem:[%s2176] sm:$0xff]
        %v2178 = vld [vmem:[%s2176 + $0x8] sm:$0xff]
        %v2179 = vld [vmem:[%s2176 + $0x10] sm:$0xff]
        %v2180 = vld [vmem:[%s2176 + $0x18] sm:$0xff]
        %v2181 = vld [vmem:[%s2176 + $0x20] sm:$0xff]
        %v2182 = vld [vmem:[%s2176 + $0x28] sm:$0xff]
        %v2183 = vld [vmem:[%s2176 + $0x30] sm:$0xff]
        %v2184 = vld [vmem:[%s2176 + $0x38] sm:$0xff]
        %v2185 = vld [vmem:[%s2176 + $0x40] sm:$0xff]
        %v2186 = vld [vmem:[%s2176 + $0x48] sm:$0xff]
        %v2187 = vld [vmem:[%s2176 + $0x50] sm:$0xff]
        %v2188 = vld [vmem:[%s2176 + $0x58] sm:$0xff]
        %v2189 = vld [vmem:[%s2176 + $0x60] sm:$0xff]
        %v2190 = vld [vmem:[%s2176 + $0x68] sm:$0xff]
        %v2191 = vld [vmem:[%s2176 + $0x70] sm:$0xff]
        %v2192 = vld [vmem:[%s2176 + $0x78] sm:$0xff]
        %v2209 = vunpack.c.l.b16 %v2177
        %v2210 = vunpack.c.h.b16 %v2177
        %v2211 = vunpack.c.l.b16 %v2178
        %v2212 = vunpack.c.h.b16 %v2178
        %v2213 = vunpack.c.l.b16 %v2179
        %v2214 = vunpack.c.h.b16 %v2179
        %v2215 = vunpack.c.l.b16 %v2180
        %v2216 = vunpack.c.h.b16 %v2180
        %v2217 = vunpack.c.l.b16 %v2181
        %v2218 = vunpack.c.h.b16 %v2181
        %v2219 = vunpack.c.l.b16 %v2182
        %v2220 = vunpack.c.h.b16 %v2182
        %v2221 = vunpack.c.l.b16 %v2183
        %v2222 = vunpack.c.h.b16 %v2183
        %v2223 = vunpack.c.l.b16 %v2184
        %v2224 = vunpack.c.h.b16 %v2184
        %v2225 = vunpack.c.l.b16 %v2185
        %v2226 = vunpack.c.h.b16 %v2185
        %v2227 = vunpack.c.l.b16 %v2186
        %v2228 = vunpack.c.h.b16 %v2186
        %v2229 = vunpack.c.l.b16 %v2187
        %v2230 = vunpack.c.h.b16 %v2187
        %v2231 = vunpack.c.l.b16 %v2188
        %v2232 = vunpack.c.h.b16 %v2188
        %v2233 = vunpack.c.l.b16 %v2189
        %v2234 = vunpack.c.h.b16 %v2189
        %v2235 = vunpack.c.l.b16 %v2190
        %v2236 = vunpack.c.h.b16 %v2190
        %v2237 = vunpack.c.l.b16 %v2191
        %v2238 = vunpack.c.h.b16 %v2191
        %v2239 = vunpack.c.l.b16 %v2192
        %v2240 = vunpack.c.h.b16 %v2192
        %v2241 = vpack.c.b16 %v2211, %v2209
        %v2242 = vpack.c.b16 %v2212, %v2210
        %v2243 = vpack.c.b16 %v2215, %v2213
        %v2244 = vpack.c.b16 %v2216, %v2214
        %v2245 = vpack.c.b16 %v2219, %v2217
        %v2246 = vpack.c.b16 %v2220, %v2218
        %v2247 = vpack.c.b16 %v2223, %v2221
        %v2248 = vpack.c.b16 %v2224, %v2222
        %v2249 = vpack.c.b16 %v2227, %v2225
        %v2250 = vpack.c.b16 %v2228, %v2226
        %v2251 = vpack.c.b16 %v2231, %v2229
        %v2252 = vpack.c.b16 %v2232, %v2230
        %v2253 = vpack.c.b16 %v2235, %v2233
        %v2254 = vpack.c.b16 %v2236, %v2234
        %v2255 = vpack.c.b16 %v2239, %v2237
        %v2256 = vpack.c.b16 %v2240, %v2238
        %2273 = vmatprep.subr.bf16.mxu0 %v2256
        %2274 = vmatpush1.bf16.msra.mxu0 %v2255
        %2275 = vmatprep.subr.bf16.mxu0 %v2254
        %2276 = vmatpush1.bf16.msra.mxu0 %v2253
        %2277 = vmatprep.subr.bf16.mxu0 %v2252
        %2278 = vmatpush1.bf16.msra.mxu0 %v2251
        %2279 = vmatprep.subr.bf16.mxu0 %v2250
        %2280 = vmatpush1.bf16.msra.mxu0 %v2249
        %2281 = vmatprep.subr.bf16.mxu0 %v2248
        %2282 = vmatpush1.bf16.msra.mxu0 %v2247
        %2283 = vmatprep.subr.bf16.mxu0 %v2246
        %2284 = vmatpush1.bf16.msra.mxu0 %v2245
        %2285 = vmatprep.subr.bf16.mxu0 %v2244
        %2286 = vmatpush1.bf16.msra.mxu0 %v2243
        %2287 = vmatprep.subr.bf16.mxu0 %v2242
        %2288 = vmatpush1.bf16.msra.mxu0 %v2241
        %2289 = vmatprep.subr.bf16.mxu0 0
        %2290 = vmatpush2.bf16.msra.mxu0 0
        %2291 = vmatprep.subr.bf16.mxu0 0
        %2292 = vmatpush2.bf16.msra.mxu0 0
        %2293 = vmatprep.subr.bf16.mxu0 0
        %2294 = vmatpush2.bf16.msra.mxu0 0
        %2295 = vmatprep.subr.bf16.mxu0 0
        %2296 = vmatpush2.bf16.msra.mxu0 0
        %2297 = vmatprep.subr.bf16.mxu0 0
        %2298 = vmatpush2.bf16.msra.mxu0 0
        %2299 = vmatprep.subr.bf16.mxu0 0
        %2300 = vmatpush2.bf16.msra.mxu0 0
        %2301 = vmatprep.subr.bf16.mxu0 0
        %2302 = vmatpush2.bf16.msra.mxu0 0
        %2303 = vmatprep.subr.bf16.mxu0 0
        %2304 = vmatpush2.bf16.msra.mxu0 0
        %2305 = vmatprep.mubr.bf16.mxu0 0
        %2306 = vmatmul.mubr.bf16.gmra.mxu0 %v2174
        %v2307 = vpop.f32.mrf.mxu0
        %v2308 = vadd.f32 0.0, %v2307
        %v2309 = vpop.f32.mrf.mxu0
        %v2310 = vadd.f32 0.0, %v2309
        %v2311 = vpop.f32.mrf.mxu0
        %v2312 = vadd.f32 0.0, %v2311
        %v2313 = vpop.f32.mrf.mxu0
        %v2314 = vadd.f32 0.0, %v2313
        %2315 = vmatprep.mubr.bf16.mxu0 0
        %2316 = vmatmul.mubr.bf16.gmra.mxu0 %v2175
        %v2317 = vpop.f32.mrf.mxu0
        %v2318 = vadd.f32 0.0, %v2317
        %v2319 = vpop.f32.mrf.mxu0
        %v2320 = vadd.f32 0.0, %v2319
        %v2321 = vpop.f32.mrf.mxu0
        %v2322 = vpop.f32.mrf.mxu0
        %2323 = vdwg.mxu0
        %v2324 = vmax.f32 %v2308, 0.0
        %v2325 = vmax.f32 %v2310, 0.0
        %v2326 = vmax.f32 %v2312, 0.0
        %v2327 = vmax.f32 %v2314, 0.0
        %v2328 = vmax.f32 %v2318, 0.0
        %v2329 = vmax.f32 %v2320, 0.0
        %v2330 = vpack.c.bf16 %v2326, %v2324
        %v2331 = vpack.c.bf16 %v2327, %v2325
        %v2332 = vpack.c.bf16 %v2328, %v2328
        %v2333 = vpack.c.bf16 %v2329, %v2329
        %v2334 = vpack.c.bf16 %v1426, %v1422
        %v2335 = vpack.c.bf16 %v1432, %v1432
        %2336 = vxpose.xlu0.b32.start [1/16] %v1424, 128
        %2337 = vxpose.xlu0.b32.cont [2/16] %v1428, 128
        %2338 = vxpose.xlu0.b32.cont [3/16] %v1434, 128
        %2339 = vxpose.xlu0.b32.cont [4/16] 0.0, 128
        %2340 = vxpose.xlu0.b32.cont [5/16] 0.0, 128
        %2341 = vxpose.xlu0.b32.cont [6/16] 0.0, 128
        %2342 = vxpose.xlu0.b32.cont [7/16] 0.0, 128
        %2343 = vxpose.xlu0.b32.cont [8/16] 0.0, 128
        %2344 = vxpose.xlu0.b32.cont [9/16] 0.0, 128
        %2345 = vxpose.xlu0.b32.cont [10/16] 0.0, 128
        %2346 = vxpose.xlu0.b32.cont [11/16] 0.0, 128
        %2347 = vxpose.xlu0.b32.cont [12/16] 0.0, 128
        %2348 = vxpose.xlu0.b32.cont [13/16] 0.0, 128
        %2349 = vxpose.xlu0.b32.cont [14/16] 0.0, 128
        %2350 = vxpose.xlu0.b32.cont [15/16] 0.0, 128
        %2351 = vxpose.xlu0.b32.end [16/16] 0.0, 128
        %v2352 = vpop.trf.xlu0
        %v2353 = vpop.trf.xlu0
        %v2354 = vpop.trf.xlu0
        %v2355 = vpop.trf.xlu0
        %v2356 = vpop.trf.xlu0
        %v2357 = vpop.trf.xlu0
        %v2358 = vpop.trf.xlu0
        %v2359 = vpop.trf.xlu0
        %v2360 = vpop.trf.xlu0
        %v2361 = vpop.trf.xlu0
        %v2362 = vpop.trf.xlu0
        %v2363 = vpop.trf.xlu0
        %v2364 = vpop.trf.xlu0
        %v2365 = vpop.trf.xlu0
        %v2366 = vpop.trf.xlu0
        %v2367 = vpop.trf.xlu0
        %v2368 = vpack.c.bf16 %v2353, %v2352
        %v2369 = vpack.c.bf16 %v2355, %v2354
        %v2370 = vpack.c.bf16 %v2357, %v2356
        %v2371 = vpack.c.bf16 %v2359, %v2358
        %v2372 = vpack.c.bf16 %v2361, %v2360
        %v2373 = vpack.c.bf16 %v2363, %v2362
        %v2374 = vpack.c.bf16 %v2365, %v2364
        %v2375 = vpack.c.bf16 %v2367, %v2366
        %2376 = vmatprep.subr.bf16.mxu0 0
        %2377 = vmatpush1.bf16.msra.mxu0 %v2375
        %2378 = vmatprep.subr.bf16.mxu0 0
        %2379 = vmatpush1.bf16.msra.mxu0 %v2374
        %2380 = vmatprep.subr.bf16.mxu0 0
        %2381 = vmatpush1.bf16.msra.mxu0 %v2373
        %2382 = vmatprep.subr.bf16.mxu0 0
        %2383 = vmatpush1.bf16.msra.mxu0 %v2372
        %2384 = vmatprep.subr.bf16.mxu0 0
        %2385 = vmatpush1.bf16.msra.mxu0 %v2371
        %2386 = vmatprep.subr.bf16.mxu0 0
        %2387 = vmatpush1.bf16.msra.mxu0 %v2370
        %2388 = vmatprep.subr.bf16.mxu0 0
        %2389 = vmatpush1.bf16.msra.mxu0 %v2369
        %2390 = vmatprep.subr.bf16.mxu0 0
        %2391 = vmatpush1.bf16.msra.mxu0 %v2368
        %2392 = vmatprep.subr.bf16.mxu0 0
        %2393 = vmatpush2.bf16.msra.mxu0 0
        %2394 = vmatprep.subr.bf16.mxu0 0
        %2395 = vmatpush2.bf16.msra.mxu0 0
        %2396 = vmatprep.subr.bf16.mxu0 0
        %2397 = vmatpush2.bf16.msra.mxu0 0
        %2398 = vmatprep.subr.bf16.mxu0 0
        %2399 = vmatpush2.bf16.msra.mxu0 0
        %2400 = vmatprep.subr.bf16.mxu0 0
        %2401 = vmatpush2.bf16.msra.mxu0 0
        %2402 = vmatprep.subr.bf16.mxu0 0
        %2403 = vmatpush2.bf16.msra.mxu0 0
        %2404 = vmatprep.subr.bf16.mxu0 0
        %2405 = vmatpush2.bf16.msra.mxu0 0
        %2406 = vmatprep.subr.bf16.mxu0 0
        %2407 = vmatpush2.bf16.msra.mxu0 0
        %2408 = vmatprep.mubr.bf16.mxu0 0
        %2409 = vmatmul.mubr.bf16.gmra.mxu0 %v2334
        %v2410 = vpop.f32.mrf.mxu0
        %v2411 = vadd.f32 %v495, %v2410
        %v2412 = vpop.f32.mrf.mxu0
        %v2413 = vpop.f32.mrf.mxu0
        %v2414 = vadd.f32 %v496, %v2413
        %v2415 = vpop.f32.mrf.mxu0
        %2416 = vmatprep.mubr.bf16.mxu0 0
        %2417 = vmatmul.mubr.bf16.gmra.mxu0 %v2335
        %v2418 = vpop.f32.mrf.mxu0
        %v2419 = vadd.f32 %v497, %v2418
        %v2420 = vpop.f32.mrf.mxu0
        %v2421 = vpop.f32.mrf.mxu0
        %v2422 = vpop.f32.mrf.mxu0
        %2423 = vdwg.mxu0
        %v2424 = vsel %vm1729, %v2411, -inf
        %2425 = vmax.xlane.f32.xlu0 %v2424
        %v2426 = vpop.xlane.xlu0 %2425
        %v2427 = vsel %vm1729, %v2414, -inf
        %2428 = vmax.xlane.f32.xlu0 %v2427
        %v2429 = vpop.xlane.xlu0 %2428
        %v2430 = vsel %vm1729, %v2419, -inf
        %2431 = vmax.xlane.f32.xlu0 %v2430
        %v2432 = vpop.xlane.xlu0 %2431
        %v2433 = vsub.f32 %v2411, %v2426
        %v2434 = vsub.f32 %v2414, %v2429
        %v2435 = vsub.f32 %v2419, %v2432
        %v2436 = vmul.f32 %v2433, 1.442695
        %v2437 = vpow.pop %v2436
        %v2438 = vmul.f32 %v2434, 1.442695
        %v2439 = vpow.pop %v2438
        %v2440 = vmul.f32 %v2435, 1.442695
        %v2441 = vpow.pop %v2440
        %v2442 = vsel %vm1729, %v2437, 0.0
        %2443 = vadd.xlane.f32.xlu0 %v2442
        %v2444 = vpop.xlane.xlu0 %2443
        %v2445 = vsel %vm1729, %v2439, 0.0
        %2446 = vadd.xlane.f32.xlu0 %v2445
        %v2447 = vpop.xlane.xlu0 %2446
        %v2448 = vsel %vm1729, %v2441, 0.0
        %2449 = vadd.xlane.f32.xlu0 %v2448
        %v2450 = vpop.xlane.xlu0 %2449
        %v2451 = vrcp.pop %v2444
        %v2452 = vrcp.pop %v2447
        %v2453 = vrcp.pop %v2450
        %v2454 = vmul.f32 %v2437, %v2451
        %v2455 = vmul.f32 %v2439, %v2452
        %v2456 = vmul.f32 %v2441, %v2453
        %v2457 = vpack.c.bf16 %v2455, %v2454
        %v2458 = vpack.c.bf16 %v2456, %v2456
        %v2459 = vpack.c.bf16 %v1477, %v1473
        %v2460 = vpack.c.bf16 %v1483, %v1483
        %v2462 = vsel %vm1729, %v2457, 0
        %v2465 = vsel %vm1729, %v2458, 0
        %v2468 = vsel %vm1773, %v2460, 0
        %2470 = vmatprep.subr.bf16.mxu0 0
        %2471 = vmatpush1.bf16.msra.mxu0 0
        %2472 = vmatprep.subr.bf16.mxu0 0
        %2473 = vmatpush1.bf16.msra.mxu0 0
        %2474 = vmatprep.subr.bf16.mxu0 0
        %2475 = vmatpush1.bf16.msra.mxu0 0
        %2476 = vmatprep.subr.bf16.mxu0 0
        %2477 = vmatpush1.bf16.msra.mxu0 0
        %2478 = vmatprep.subr.bf16.mxu0 0
        %2479 = vmatpush1.bf16.msra.mxu0 0
        %2480 = vmatprep.subr.bf16.mxu0 0
        %2481 = vmatpush1.bf16.msra.mxu0 0
        %2482 = vmatprep.subr.bf16.mxu0 0
        %2483 = vmatpush1.bf16.msra.mxu0 %v2468
        %2484 = vmatprep.subr.bf16.mxu0 0
        %2485 = vmatpush1.bf16.msra.mxu0 %v2459
        %2486 = vmatprep.subr.bf16.mxu0 0
        %2487 = vmatpush2.bf16.msra.mxu0 0
        %2488 = vmatprep.subr.bf16.mxu0 0
        %2489 = vmatpush2.bf16.msra.mxu0 0
        %2490 = vmatprep.subr.bf16.mxu0 0
        %2491 = vmatpush2.bf16.msra.mxu0 0
        %2492 = vmatprep.subr.bf16.mxu0 0
        %2493 = vmatpush2.bf16.msra.mxu0 0
        %2494 = vmatprep.subr.bf16.mxu0 0
        %2495 = vmatpush2.bf16.msra.mxu0 0
        %2496 = vmatprep.subr.bf16.mxu0 0
        %2497 = vmatpush2.bf16.msra.mxu0 0
        %2498 = vmatprep.subr.bf16.mxu0 0
        %2499 = vmatpush2.bf16.msra.mxu0 0
        %2500 = vmatprep.subr.bf16.mxu0 0
        %2501 = vmatpush2.bf16.msra.mxu0 0
        %2502 = vmatprep.mubr.bf16.mxu0 0
        %2503 = vmatmul.mubr.bf16.gmra.mxu0 %v2462
        %v2504 = vpop.f32.mrf.mxu0
        %v2505 = vadd.f32 0.0, %v2504
        %v2506 = vpop.f32.mrf.mxu0
        %v2507 = vpop.f32.mrf.mxu0
        %v2508 = vadd.f32 0.0, %v2507
        %v2509 = vpop.f32.mrf.mxu0
        %2510 = vmatprep.mubr.bf16.mxu0 0
        %2511 = vmatmul.mubr.bf16.gmra.mxu0 %v2465
        %v2512 = vpop.f32.mrf.mxu0
        %v2513 = vadd.f32 0.0, %v2512
        %v2514 = vpop.f32.mrf.mxu0
        %v2515 = vpop.f32.mrf.mxu0
        %v2516 = vpop.f32.mrf.mxu0
        %2517 = vdwg.mxu0
        %v2518 = vadd.f32 %v2171, %v2505
        %v2519 = vadd.f32 %v2172, %v2508
        %v2520 = vadd.f32 %v2173, %v2513
        %v2521 = vpack.c.bf16 %v2508, %v2505
        %v2522 = vpack.c.bf16 %v2513, %v2513
        %s2523 = scalar_lea.vmem [#allocation8], 256
        %v2524 = vld [vmem:[%s2523] sm:$0xff]
        %v2525 = vld [vmem:[%s2523 + $0x8] sm:$0xff]
        %v2526 = vld [vmem:[%s2523 + $0x10] sm:$0xff]
        %v2527 = vld [vmem:[%s2523 + $0x18] sm:$0xff]
        %v2528 = vld [vmem:[%s2523 + $0x20] sm:$0xff]
        %v2529 = vld [vmem:[%s2523 + $0x28] sm:$0xff]
        %v2530 = vld [vmem:[%s2523 + $0x30] sm:$0xff]
        %v2531 = vld [vmem:[%s2523 + $0x38] sm:$0xff]
        %v2532 = vld [vmem:[%s2523 + $0x40] sm:$0xff]
        %v2533 = vld [vmem:[%s2523 + $0x48] sm:$0xff]
        %v2534 = vld [vmem:[%s2523 + $0x50] sm:$0xff]
        %v2535 = vld [vmem:[%s2523 + $0x58] sm:$0xff]
        %v2536 = vld [vmem:[%s2523 + $0x60] sm:$0xff]
        %v2537 = vld [vmem:[%s2523 + $0x68] sm:$0xff]
        %v2538 = vld [vmem:[%s2523 + $0x70] sm:$0xff]
        %v2539 = vld [vmem:[%s2523 + $0x78] sm:$0xff]
        %v2556 = vunpack.c.l.b16 %v2524
        %v2557 = vunpack.c.h.b16 %v2524
        %v2558 = vunpack.c.l.b16 %v2525
        %v2559 = vunpack.c.h.b16 %v2525
        %v2560 = vunpack.c.l.b16 %v2526
        %v2561 = vunpack.c.h.b16 %v2526
        %v2562 = vunpack.c.l.b16 %v2527
        %v2563 = vunpack.c.h.b16 %v2527
        %v2564 = vunpack.c.l.b16 %v2528
        %v2565 = vunpack.c.h.b16 %v2528
        %v2566 = vunpack.c.l.b16 %v2529
        %v2567 = vunpack.c.h.b16 %v2529
        %v2568 = vunpack.c.l.b16 %v2530
        %v2569 = vunpack.c.h.b16 %v2530
        %v2570 = vunpack.c.l.b16 %v2531
        %v2571 = vunpack.c.h.b16 %v2531
        %v2572 = vunpack.c.l.b16 %v2532
        %v2573 = vunpack.c.h.b16 %v2532
        %v2574 = vunpack.c.l.b16 %v2533
        %v2575 = vunpack.c.h.b16 %v2533
        %v2576 = vunpack.c.l.b16 %v2534
        %v2577 = vunpack.c.h.b16 %v2534
        %v2578 = vunpack.c.l.b16 %v2535
        %v2579 = vunpack.c.h.b16 %v2535
        %v2580 = vunpack.c.l.b16 %v2536
        %v2581 = vunpack.c.h.b16 %v2536
        %v2582 = vunpack.c.l.b16 %v2537
        %v2583 = vunpack.c.h.b16 %v2537
        %v2584 = vunpack.c.l.b16 %v2538
        %v2585 = vunpack.c.h.b16 %v2538
        %v2586 = vunpack.c.l.b16 %v2539
        %v2587 = vunpack.c.h.b16 %v2539
        %v2588 = vpack.c.b16 %v2558, %v2556
        %v2589 = vpack.c.b16 %v2559, %v2557
        %v2590 = vpack.c.b16 %v2562, %v2560
        %v2591 = vpack.c.b16 %v2563, %v2561
        %v2592 = vpack.c.b16 %v2566, %v2564
        %v2593 = vpack.c.b16 %v2567, %v2565
        %v2594 = vpack.c.b16 %v2570, %v2568
        %v2595 = vpack.c.b16 %v2571, %v2569
        %v2596 = vpack.c.b16 %v2574, %v2572
        %v2597 = vpack.c.b16 %v2575, %v2573
        %v2598 = vpack.c.b16 %v2578, %v2576
        %v2599 = vpack.c.b16 %v2579, %v2577
        %v2600 = vpack.c.b16 %v2582, %v2580
        %v2601 = vpack.c.b16 %v2583, %v2581
        %v2602 = vpack.c.b16 %v2586, %v2584
        %v2603 = vpack.c.b16 %v2587, %v2585
        %2620 = vmatprep.subr.bf16.mxu0 %v2603
        %2621 = vmatpush1.bf16.msra.mxu0 %v2602
        %2622 = vmatprep.subr.bf16.mxu0 %v2601
        %2623 = vmatpush1.bf16.msra.mxu0 %v2600
        %2624 = vmatprep.subr.bf16.mxu0 %v2599
        %2625 = vmatpush1.bf16.msra.mxu0 %v2598
        %2626 = vmatprep.subr.bf16.mxu0 %v2597
        %2627 = vmatpush1.bf16.msra.mxu0 %v2596
        %2628 = vmatprep.subr.bf16.mxu0 %v2595
        %2629 = vmatpush1.bf16.msra.mxu0 %v2594
        %2630 = vmatprep.subr.bf16.mxu0 %v2593
        %2631 = vmatpush1.bf16.msra.mxu0 %v2592
        %2632 = vmatprep.subr.bf16.mxu0 %v2591
        %2633 = vmatpush1.bf16.msra.mxu0 %v2590
        %2634 = vmatprep.subr.bf16.mxu0 %v2589
        %2635 = vmatpush1.bf16.msra.mxu0 %v2588
        %2636 = vmatprep.subr.bf16.mxu0 0
        %2637 = vmatpush2.bf16.msra.mxu0 0
        %2638 = vmatprep.subr.bf16.mxu0 0
        %2639 = vmatpush2.bf16.msra.mxu0 0
        %2640 = vmatprep.subr.bf16.mxu0 0
        %2641 = vmatpush2.bf16.msra.mxu0 0
        %2642 = vmatprep.subr.bf16.mxu0 0
        %2643 = vmatpush2.bf16.msra.mxu0 0
        %2644 = vmatprep.subr.bf16.mxu0 0
        %2645 = vmatpush2.bf16.msra.mxu0 0
        %2646 = vmatprep.subr.bf16.mxu0 0
        %2647 = vmatpush2.bf16.msra.mxu0 0
        %2648 = vmatprep.subr.bf16.mxu0 0
        %2649 = vmatpush2.bf16.msra.mxu0 0
        %2650 = vmatprep.subr.bf16.mxu0 0
        %2651 = vmatpush2.bf16.msra.mxu0 0
        %2652 = vmatprep.mubr.bf16.mxu0 0
        %2653 = vmatmul.mubr.bf16.gmra.mxu0 %v2521
        %v2654 = vpop.f32.mrf.mxu0
        %v2655 = vadd.f32 0.0, %v2654
        %v2656 = vpop.f32.mrf.mxu0
        %v2657 = vadd.f32 0.0, %v2656
        %v2658 = vpop.f32.mrf.mxu0
        %v2659 = vadd.f32 0.0, %v2658
        %v2660 = vpop.f32.mrf.mxu0
        %v2661 = vadd.f32 0.0, %v2660
        %2662 = vmatprep.mubr.bf16.mxu0 0
        %2663 = vmatmul.mubr.bf16.gmra.mxu0 %v2522
        %v2664 = vpop.f32.mrf.mxu0
        %v2665 = vadd.f32 0.0, %v2664
        %v2666 = vpop.f32.mrf.mxu0
        %v2667 = vadd.f32 0.0, %v2666
        %v2668 = vpop.f32.mrf.mxu0
        %v2669 = vpop.f32.mrf.mxu0
        %2670 = vdwg.mxu0
        %v2671 = vmax.f32 %v2655, 0.0
        %v2672 = vmax.f32 %v2657, 0.0
        %v2673 = vmax.f32 %v2659, 0.0
        %v2674 = vmax.f32 %v2661, 0.0
        %v2675 = vmax.f32 %v2665, 0.0
        %v2676 = vmax.f32 %v2667, 0.0
        %v2677 = vpack.c.bf16 %v2673, %v2671
        %v2678 = vpack.c.bf16 %v2674, %v2672
        %v2679 = vpack.c.bf16 %v2675, %v2675
        %v2680 = vpack.c.bf16 %v2676, %v2676
        %v2681 = vpack.c.bf16 %v1479, %v1475
        %v2682 = vpack.c.bf16 %v1485, %v1485
        %2683 = vxpose.xlu0.b32.start [1/16] %v1524, 128
        %2684 = vxpose.xlu0.b32.cont [2/16] %v1528, 128
        %2685 = vxpose.xlu0.b32.cont [3/16] %v1534, 128
        %2686 = vxpose.xlu0.b32.cont [4/16] 0.0, 128
        %2687 = vxpose.xlu0.b32.cont [5/16] 0.0, 128
        %2688 = vxpose.xlu0.b32.cont [6/16] 0.0, 128
        %2689 = vxpose.xlu0.b32.cont [7/16] 0.0, 128
        %2690 = vxpose.xlu0.b32.cont [8/16] 0.0, 128
        %2691 = vxpose.xlu0.b32.cont [9/16] 0.0, 128
        %2692 = vxpose.xlu0.b32.cont [10/16] 0.0, 128
        %2693 = vxpose.xlu0.b32.cont [11/16] 0.0, 128
        %2694 = vxpose.xlu0.b32.cont [12/16] 0.0, 128
        %2695 = vxpose.xlu0.b32.cont [13/16] 0.0, 128
        %2696 = vxpose.xlu0.b32.cont [14/16] 0.0, 128
        %2697 = vxpose.xlu0.b32.cont [15/16] 0.0, 128
        %2698 = vxpose.xlu0.b32.end [16/16] 0.0, 128
        %v2699 = vpop.trf.xlu0
        %v2700 = vpop.trf.xlu0
        %v2701 = vpop.trf.xlu0
        %v2702 = vpop.trf.xlu0
        %v2703 = vpop.trf.xlu0
        %v2704 = vpop.trf.xlu0
        %v2705 = vpop.trf.xlu0
        %v2706 = vpop.trf.xlu0
        %v2707 = vpop.trf.xlu0
        %v2708 = vpop.trf.xlu0
        %v2709 = vpop.trf.xlu0
        %v2710 = vpop.trf.xlu0
        %v2711 = vpop.trf.xlu0
        %v2712 = vpop.trf.xlu0
        %v2713 = vpop.trf.xlu0
        %v2714 = vpop.trf.xlu0
        %v2715 = vpack.c.bf16 %v2700, %v2699
        %v2716 = vpack.c.bf16 %v2702, %v2701
        %v2717 = vpack.c.bf16 %v2704, %v2703
        %v2718 = vpack.c.bf16 %v2706, %v2705
        %v2719 = vpack.c.bf16 %v2708, %v2707
        %v2720 = vpack.c.bf16 %v2710, %v2709
        %v2721 = vpack.c.bf16 %v2712, %v2711
        %v2722 = vpack.c.bf16 %v2714, %v2713
        %2723 = vmatprep.subr.bf16.mxu0 0
        %2724 = vmatpush1.bf16.msra.mxu0 %v2722
        %2725 = vmatprep.subr.bf16.mxu0 0
        %2726 = vmatpush1.bf16.msra.mxu0 %v2721
        %2727 = vmatprep.subr.bf16.mxu0 0
        %2728 = vmatpush1.bf16.msra.mxu0 %v2720
        %2729 = vmatprep.subr.bf16.mxu0 0
        %2730 = vmatpush1.bf16.msra.mxu0 %v2719
        %2731 = vmatprep.subr.bf16.mxu0 0
        %2732 = vmatpush1.bf16.msra.mxu0 %v2718
        %2733 = vmatprep.subr.bf16.mxu0 0
        %2734 = vmatpush1.bf16.msra.mxu0 %v2717
        %2735 = vmatprep.subr.bf16.mxu0 0
        %2736 = vmatpush1.bf16.msra.mxu0 %v2716
        %2737 = vmatprep.subr.bf16.mxu0 0
        %2738 = vmatpush1.bf16.msra.mxu0 %v2715
        %2739 = vmatprep.subr.bf16.mxu0 0
        %2740 = vmatpush2.bf16.msra.mxu0 0
        %2741 = vmatprep.subr.bf16.mxu0 0
        %2742 = vmatpush2.bf16.msra.mxu0 0
        %2743 = vmatprep.subr.bf16.mxu0 0
        %2744 = vmatpush2.bf16.msra.mxu0 0
        %2745 = vmatprep.subr.bf16.mxu0 0
        %2746 = vmatpush2.bf16.msra.mxu0 0
        %2747 = vmatprep.subr.bf16.mxu0 0
        %2748 = vmatpush2.bf16.msra.mxu0 0
        %2749 = vmatprep.subr.bf16.mxu0 0
        %2750 = vmatpush2.bf16.msra.mxu0 0
        %2751 = vmatprep.subr.bf16.mxu0 0
        %2752 = vmatpush2.bf16.msra.mxu0 0
        %2753 = vmatprep.subr.bf16.mxu0 0
        %2754 = vmatpush2.bf16.msra.mxu0 0
        %2755 = vmatprep.mubr.bf16.mxu0 0
        %2756 = vmatmul.mubr.bf16.gmra.mxu0 %v2681
        %v2757 = vpop.f32.mrf.mxu0
        %v2758 = vadd.f32 %v495, %v2757
        %v2759 = vpop.f32.mrf.mxu0
        %v2760 = vpop.f32.mrf.mxu0
        %v2761 = vadd.f32 %v496, %v2760
        %v2762 = vpop.f32.mrf.mxu0
        %2763 = vmatprep.mubr.bf16.mxu0 0
        %2764 = vmatmul.mubr.bf16.gmra.mxu0 %v2682
        %v2765 = vpop.f32.mrf.mxu0
        %v2766 = vadd.f32 %v497, %v2765
        %v2767 = vpop.f32.mrf.mxu0
        %v2768 = vpop.f32.mrf.mxu0
        %v2769 = vpop.f32.mrf.mxu0
        %2770 = vdwg.mxu0
        %v2771 = vsel %vm1729, %v2758, -inf
        %2772 = vmax.xlane.f32.xlu0 %v2771
        %v2773 = vpop.xlane.xlu0 %2772
        %v2774 = vsel %vm1729, %v2761, -inf
        %2775 = vmax.xlane.f32.xlu0 %v2774
        %v2776 = vpop.xlane.xlu0 %2775
        %v2777 = vsel %vm1729, %v2766, -inf
        %2778 = vmax.xlane.f32.xlu0 %v2777
        %v2779 = vpop.xlane.xlu0 %2778
        %v2780 = vsub.f32 %v2758, %v2773
        %v2781 = vsub.f32 %v2761, %v2776
        %v2782 = vsub.f32 %v2766, %v2779
        %v2783 = vmul.f32 %v2780, 1.442695
        %v2784 = vpow.pop %v2783
        %v2785 = vmul.f32 %v2781, 1.442695
        %v2786 = vpow.pop %v2785
        %v2787 = vmul.f32 %v2782, 1.442695
        %v2788 = vpow.pop %v2787
        %v2789 = vsel %vm1729, %v2784, 0.0
        %2790 = vadd.xlane.f32.xlu0 %v2789
        %v2791 = vpop.xlane.xlu0 %2790
        %v2792 = vsel %vm1729, %v2786, 0.0
        %2793 = vadd.xlane.f32.xlu0 %v2792
        %v2794 = vpop.xlane.xlu0 %2793
        %v2795 = vsel %vm1729, %v2788, 0.0
        %2796 = vadd.xlane.f32.xlu0 %v2795
        %v2797 = vpop.xlane.xlu0 %2796
        %v2798 = vrcp.pop %v2791
        %v2799 = vrcp.pop %v2794
        %v2800 = vrcp.pop %v2797
        %v2801 = vmul.f32 %v2784, %v2798
        %v2802 = vmul.f32 %v2786, %v2799
        %v2803 = vmul.f32 %v2788, %v2800
        %v2804 = vpack.c.bf16 %v2802, %v2801
        %v2805 = vpack.c.bf16 %v2803, %v2803
        %v2806 = vpack.c.bf16 %v1530, %v1526
        %v2807 = vpack.c.bf16 %v1536, %v1536
        %v2809 = vsel %vm1729, %v2804, 0
        %v2812 = vsel %vm1729, %v2805, 0
        %v2815 = vsel %vm1773, %v2807, 0
        %2817 = vmatprep.subr.bf16.mxu0 0
        %2818 = vmatpush1.bf16.msra.mxu0 0
        %2819 = vmatprep.subr.bf16.mxu0 0
        %2820 = vmatpush1.bf16.msra.mxu0 0
        %2821 = vmatprep.subr.bf16.mxu0 0
        %2822 = vmatpush1.bf16.msra.mxu0 0
        %2823 = vmatprep.subr.bf16.mxu0 0
        %2824 = vmatpush1.bf16.msra.mxu0 0
        %2825 = vmatprep.subr.bf16.mxu0 0
        %2826 = vmatpush1.bf16.msra.mxu0 0
        %2827 = vmatprep.subr.bf16.mxu0 0
        %2828 = vmatpush1.bf16.msra.mxu0 0
        %2829 = vmatprep.subr.bf16.mxu0 0
        %2830 = vmatpush1.bf16.msra.mxu0 %v2815
        %2831 = vmatprep.subr.bf16.mxu0 0
        %2832 = vmatpush1.bf16.msra.mxu0 %v2806
        %2833 = vmatprep.subr.bf16.mxu0 0
        %2834 = vmatpush2.bf16.msra.mxu0 0
        %2835 = vmatprep.subr.bf16.mxu0 0
        %2836 = vmatpush2.bf16.msra.mxu0 0
        %2837 = vmatprep.subr.bf16.mxu0 0
        %2838 = vmatpush2.bf16.msra.mxu0 0
        %2839 = vmatprep.subr.bf16.mxu0 0
        %2840 = vmatpush2.bf16.msra.mxu0 0
        %2841 = vmatprep.subr.bf16.mxu0 0
        %2842 = vmatpush2.bf16.msra.mxu0 0
        %2843 = vmatprep.subr.bf16.mxu0 0
        %2844 = vmatpush2.bf16.msra.mxu0 0
        %2845 = vmatprep.subr.bf16.mxu0 0
        %2846 = vmatpush2.bf16.msra.mxu0 0
        %2847 = vmatprep.subr.bf16.mxu0 0
        %2848 = vmatpush2.bf16.msra.mxu0 0
        %2849 = vmatprep.mubr.bf16.mxu0 0
        %2850 = vmatmul.mubr.bf16.gmra.mxu0 %v2809
        %v2851 = vpop.f32.mrf.mxu0
        %v2852 = vadd.f32 0.0, %v2851
        %v2853 = vpop.f32.mrf.mxu0
        %v2854 = vpop.f32.mrf.mxu0
        %v2855 = vadd.f32 0.0, %v2854
        %v2856 = vpop.f32.mrf.mxu0
        %2857 = vmatprep.mubr.bf16.mxu0 0
        %2858 = vmatmul.mubr.bf16.gmra.mxu0 %v2812
        %v2859 = vpop.f32.mrf.mxu0
        %v2860 = vadd.f32 0.0, %v2859
        %v2861 = vpop.f32.mrf.mxu0
        %v2862 = vpop.f32.mrf.mxu0
        %v2863 = vpop.f32.mrf.mxu0
        %2864 = vdwg.mxu0
        %v2865 = vadd.f32 %v2518, %v2852
        %v2866 = vadd.f32 %v2519, %v2855
        %v2867 = vadd.f32 %v2520, %v2860
        %v2868 = vpack.c.bf16 %v2855, %v2852
        %v2869 = vpack.c.bf16 %v2860, %v2860
        %s2870 = scalar_lea.vmem [#allocation8], 384
        %v2871 = vld [vmem:[%s2870] sm:$0xff]
        %v2872 = vld [vmem:[%s2870 + $0x8] sm:$0xff]
        %v2873 = vld [vmem:[%s2870 + $0x10] sm:$0xff]
        %v2874 = vld [vmem:[%s2870 + $0x18] sm:$0xff]
        %v2875 = vld [vmem:[%s2870 + $0x20] sm:$0xff]
        %v2876 = vld [vmem:[%s2870 + $0x28] sm:$0xff]
        %v2877 = vld [vmem:[%s2870 + $0x30] sm:$0xff]
        %v2878 = vld [vmem:[%s2870 + $0x38] sm:$0xff]
        %v2879 = vld [vmem:[%s2870 + $0x40] sm:$0xff]
        %v2880 = vld [vmem:[%s2870 + $0x48] sm:$0xff]
        %v2881 = vld [vmem:[%s2870 + $0x50] sm:$0xff]
        %v2882 = vld [vmem:[%s2870 + $0x58] sm:$0xff]
        %v2883 = vld [vmem:[%s2870 + $0x60] sm:$0xff]
        %v2884 = vld [vmem:[%s2870 + $0x68] sm:$0xff]
        %v2885 = vld [vmem:[%s2870 + $0x70] sm:$0xff]
        %v2886 = vld [vmem:[%s2870 + $0x78] sm:$0xff]
        %v2903 = vunpack.c.l.b16 %v2871
        %v2904 = vunpack.c.h.b16 %v2871
        %v2905 = vunpack.c.l.b16 %v2872
        %v2906 = vunpack.c.h.b16 %v2872
        %v2907 = vunpack.c.l.b16 %v2873
        %v2908 = vunpack.c.h.b16 %v2873
        %v2909 = vunpack.c.l.b16 %v2874
        %v2910 = vunpack.c.h.b16 %v2874
        %v2911 = vunpack.c.l.b16 %v2875
        %v2912 = vunpack.c.h.b16 %v2875
        %v2913 = vunpack.c.l.b16 %v2876
        %v2914 = vunpack.c.h.b16 %v2876
        %v2915 = vunpack.c.l.b16 %v2877
        %v2916 = vunpack.c.h.b16 %v2877
        %v2917 = vunpack.c.l.b16 %v2878
        %v2918 = vunpack.c.h.b16 %v2878
        %v2919 = vunpack.c.l.b16 %v2879
        %v2920 = vunpack.c.h.b16 %v2879
        %v2921 = vunpack.c.l.b16 %v2880
        %v2922 = vunpack.c.h.b16 %v2880
        %v2923 = vunpack.c.l.b16 %v2881
        %v2924 = vunpack.c.h.b16 %v2881
        %v2925 = vunpack.c.l.b16 %v2882
        %v2926 = vunpack.c.h.b16 %v2882
        %v2927 = vunpack.c.l.b16 %v2883
        %v2928 = vunpack.c.h.b16 %v2883
        %v2929 = vunpack.c.l.b16 %v2884
        %v2930 = vunpack.c.h.b16 %v2884
        %v2931 = vunpack.c.l.b16 %v2885
        %v2932 = vunpack.c.h.b16 %v2885
        %v2933 = vunpack.c.l.b16 %v2886
        %v2934 = vunpack.c.h.b16 %v2886
        %v2935 = vpack.c.b16 %v2905, %v2903
        %v2936 = vpack.c.b16 %v2906, %v2904
        %v2937 = vpack.c.b16 %v2909, %v2907
        %v2938 = vpack.c.b16 %v2910, %v2908
        %v2939 = vpack.c.b16 %v2913, %v2911
        %v2940 = vpack.c.b16 %v2914, %v2912
        %v2941 = vpack.c.b16 %v2917, %v2915
        %v2942 = vpack.c.b16 %v2918, %v2916
        %v2943 = vpack.c.b16 %v2921, %v2919
        %v2944 = vpack.c.b16 %v2922, %v2920
        %v2945 = vpack.c.b16 %v2925, %v2923
        %v2946 = vpack.c.b16 %v2926, %v2924
        %v2947 = vpack.c.b16 %v2929, %v2927
        %v2948 = vpack.c.b16 %v2930, %v2928
        %v2949 = vpack.c.b16 %v2933, %v2931
        %v2950 = vpack.c.b16 %v2934, %v2932
        %2967 = vmatprep.subr.bf16.mxu0 %v2950
        %2968 = vmatpush1.bf16.msra.mxu0 %v2949
        %2969 = vmatprep.subr.bf16.mxu0 %v2948
        %2970 = vmatpush1.bf16.msra.mxu0 %v2947
        %2971 = vmatprep.subr.bf16.mxu0 %v2946
        %2972 = vmatpush1.bf16.msra.mxu0 %v2945
        %2973 = vmatprep.subr.bf16.mxu0 %v2944
        %2974 = vmatpush1.bf16.msra.mxu0 %v2943
        %2975 = vmatprep.subr.bf16.mxu0 %v2942
        %2976 = vmatpush1.bf16.msra.mxu0 %v2941
        %2977 = vmatprep.subr.bf16.mxu0 %v2940
        %2978 = vmatpush1.bf16.msra.mxu0 %v2939
        %2979 = vmatprep.subr.bf16.mxu0 %v2938
        %2980 = vmatpush1.bf16.msra.mxu0 %v2937
        %2981 = vmatprep.subr.bf16.mxu0 %v2936
        %2982 = vmatpush1.bf16.msra.mxu0 %v2935
        %2983 = vmatprep.subr.bf16.mxu0 0
        %2984 = vmatpush2.bf16.msra.mxu0 0
        %2985 = vmatprep.subr.bf16.mxu0 0
        %2986 = vmatpush2.bf16.msra.mxu0 0
        %2987 = vmatprep.subr.bf16.mxu0 0
        %2988 = vmatpush2.bf16.msra.mxu0 0
        %2989 = vmatprep.subr.bf16.mxu0 0
        %2990 = vmatpush2.bf16.msra.mxu0 0
        %2991 = vmatprep.subr.bf16.mxu0 0
        %2992 = vmatpush2.bf16.msra.mxu0 0
        %2993 = vmatprep.subr.bf16.mxu0 0
        %2994 = vmatpush2.bf16.msra.mxu0 0
        %2995 = vmatprep.subr.bf16.mxu0 0
        %2996 = vmatpush2.bf16.msra.mxu0 0
        %2997 = vmatprep.subr.bf16.mxu0 0
        %2998 = vmatpush2.bf16.msra.mxu0 0
        %2999 = vmatprep.mubr.bf16.mxu0 0
        %3000 = vmatmul.mubr.bf16.gmra.mxu0 %v2868
        %v3001 = vpop.f32.mrf.mxu0
        %v3002 = vadd.f32 0.0, %v3001
        %v3003 = vpop.f32.mrf.mxu0
        %v3004 = vadd.f32 0.0, %v3003
        %v3005 = vpop.f32.mrf.mxu0
        %v3006 = vadd.f32 0.0, %v3005
        %v3007 = vpop.f32.mrf.mxu0
        %v3008 = vadd.f32 0.0, %v3007
        %3009 = vmatprep.mubr.bf16.mxu0 0
        %3010 = vmatmul.mubr.bf16.gmra.mxu0 %v2869
        %v3011 = vpop.f32.mrf.mxu0
        %v3012 = vadd.f32 0.0, %v3011
        %v3013 = vpop.f32.mrf.mxu0
        %v3014 = vadd.f32 0.0, %v3013
        %v3015 = vpop.f32.mrf.mxu0
        %v3016 = vpop.f32.mrf.mxu0
        %3017 = vdwg.mxu0
        %v3018 = vmax.f32 %v3002, 0.0
        %v3019 = vmax.f32 %v3004, 0.0
        %v3020 = vmax.f32 %v3006, 0.0
        %v3021 = vmax.f32 %v3008, 0.0
        %v3022 = vmax.f32 %v3012, 0.0
        %v3023 = vmax.f32 %v3014, 0.0
        %v3024 = vpack.c.bf16 %v3020, %v3018
        %v3025 = vpack.c.bf16 %v3021, %v3019
        %v3026 = vpack.c.bf16 %v3022, %v3022
        %v3027 = vpack.c.bf16 %v3023, %v3023
        %v3028 = vpack.c.bf16 %v1579, %v1575
        %v3029 = vpack.c.bf16 %v1585, %v1585
        %3030 = vxpose.xlu0.b32.start [1/16] %v1577, 128
        %3031 = vxpose.xlu0.b32.cont [2/16] %v1581, 128
        %3032 = vxpose.xlu0.b32.cont [3/16] %v1587, 128
        %3033 = vxpose.xlu0.b32.cont [4/16] 0.0, 128
        %3034 = vxpose.xlu0.b32.cont [5/16] 0.0, 128
        %3035 = vxpose.xlu0.b32.cont [6/16] 0.0, 128
        %3036 = vxpose.xlu0.b32.cont [7/16] 0.0, 128
        %3037 = vxpose.xlu0.b32.cont [8/16] 0.0, 128
        %3038 = vxpose.xlu0.b32.cont [9/16] 0.0, 128
        %3039 = vxpose.xlu0.b32.cont [10/16] 0.0, 128
        %3040 = vxpose.xlu0.b32.cont [11/16] 0.0, 128
        %3041 = vxpose.xlu0.b32.cont [12/16] 0.0, 128
        %3042 = vxpose.xlu0.b32.cont [13/16] 0.0, 128
        %3043 = vxpose.xlu0.b32.cont [14/16] 0.0, 128
        %3044 = vxpose.xlu0.b32.cont [15/16] 0.0, 128
        %3045 = vxpose.xlu0.b32.end [16/16] 0.0, 128
        %v3046 = vpop.trf.xlu0
        %v3047 = vpop.trf.xlu0
        %v3048 = vpop.trf.xlu0
        %v3049 = vpop.trf.xlu0
        %v3050 = vpop.trf.xlu0
        %v3051 = vpop.trf.xlu0
        %v3052 = vpop.trf.xlu0
        %v3053 = vpop.trf.xlu0
        %v3054 = vpop.trf.xlu0
        %v3055 = vpop.trf.xlu0
        %v3056 = vpop.trf.xlu0
        %v3057 = vpop.trf.xlu0
        %v3058 = vpop.trf.xlu0
        %v3059 = vpop.trf.xlu0
        %v3060 = vpop.trf.xlu0
        %v3061 = vpop.trf.xlu0
        %v3062 = vpack.c.bf16 %v3047, %v3046
        %v3063 = vpack.c.bf16 %v3049, %v3048
        %v3064 = vpack.c.bf16 %v3051, %v3050
        %v3065 = vpack.c.bf16 %v3053, %v3052
        %v3066 = vpack.c.bf16 %v3055, %v3054
        %v3067 = vpack.c.bf16 %v3057, %v3056
        %v3068 = vpack.c.bf16 %v3059, %v3058
        %v3069 = vpack.c.bf16 %v3061, %v3060
        %3070 = vmatprep.subr.bf16.mxu0 0
        %3071 = vmatpush1.bf16.msra.mxu0 %v3069
        %3072 = vmatprep.subr.bf16.mxu0 0
        %3073 = vmatpush1.bf16.msra.mxu0 %v3068
        %3074 = vmatprep.subr.bf16.mxu0 0
        %3075 = vmatpush1.bf16.msra.mxu0 %v3067
        %3076 = vmatprep.subr.bf16.mxu0 0
        %3077 = vmatpush1.bf16.msra.mxu0 %v3066
        %3078 = vmatprep.subr.bf16.mxu0 0
        %3079 = vmatpush1.bf16.msra.mxu0 %v3065
        %3080 = vmatprep.subr.bf16.mxu0 0
        %3081 = vmatpush1.bf16.msra.mxu0 %v3064
        %3082 = vmatprep.subr.bf16.mxu0 0
        %3083 = vmatpush1.bf16.msra.mxu0 %v3063
        %3084 = vmatprep.subr.bf16.mxu0 0
        %3085 = vmatpush1.bf16.msra.mxu0 %v3062
        %3086 = vmatprep.subr.bf16.mxu0 0
        %3087 = vmatpush2.bf16.msra.mxu0 0
        %3088 = vmatprep.subr.bf16.mxu0 0
        %3089 = vmatpush2.bf16.msra.mxu0 0
        %3090 = vmatprep.subr.bf16.mxu0 0
        %3091 = vmatpush2.bf16.msra.mxu0 0
        %3092 = vmatprep.subr.bf16.mxu0 0
        %3093 = vmatpush2.bf16.msra.mxu0 0
        %3094 = vmatprep.subr.bf16.mxu0 0
        %3095 = vmatpush2.bf16.msra.mxu0 0
        %3096 = vmatprep.subr.bf16.mxu0 0
        %3097 = vmatpush2.bf16.msra.mxu0 0
        %3098 = vmatprep.subr.bf16.mxu0 0
        %3099 = vmatpush2.bf16.msra.mxu0 0
        %3100 = vmatprep.subr.bf16.mxu0 0
        %3101 = vmatpush2.bf16.msra.mxu0 0
        %3102 = vmatprep.mubr.bf16.mxu0 0
        %3103 = vmatmul.mubr.bf16.gmra.mxu0 %v3028
        %v3104 = vpop.f32.mrf.mxu0
        %v3105 = vadd.f32 %v495, %v3104
        %v3106 = vpop.f32.mrf.mxu0
        %v3107 = vpop.f32.mrf.mxu0
        %v3108 = vadd.f32 %v496, %v3107
        %v3109 = vpop.f32.mrf.mxu0
        %3110 = vmatprep.mubr.bf16.mxu0 0
        %3111 = vmatmul.mubr.bf16.gmra.mxu0 %v3029
        %v3112 = vpop.f32.mrf.mxu0
        %v3113 = vadd.f32 %v497, %v3112
        %v3114 = vpop.f32.mrf.mxu0
        %v3115 = vpop.f32.mrf.mxu0
        %v3116 = vpop.f32.mrf.mxu0
        %3117 = vdwg.mxu0
        %v3118 = vsel %vm1729, %v3105, -inf
        %3119 = vmax.xlane.f32.xlu0 %v3118
        %v3120 = vpop.xlane.xlu0 %3119
        %v3121 = vsel %vm1729, %v3108, -inf
        %3122 = vmax.xlane.f32.xlu0 %v3121
        %v3123 = vpop.xlane.xlu0 %3122
        %v3124 = vsel %vm1729, %v3113, -inf
        %3125 = vmax.xlane.f32.xlu0 %v3124
        %v3126 = vpop.xlane.xlu0 %3125
        %v3127 = vsub.f32 %v3105, %v3120
        %v3128 = vsub.f32 %v3108, %v3123
        %v3129 = vsub.f32 %v3113, %v3126
        %v3130 = vmul.f32 %v3127, 1.442695
        %v3131 = vpow.pop %v3130
        %v3132 = vmul.f32 %v3128, 1.442695
        %v3133 = vpow.pop %v3132
        %v3134 = vmul.f32 %v3129, 1.442695
        %v3135 = vpow.pop %v3134
        %v3136 = vsel %vm1729, %v3131, 0.0
        %3137 = vadd.xlane.f32.xlu0 %v3136
        %v3138 = vpop.xlane.xlu0 %3137
        %v3139 = vsel %vm1729, %v3133, 0.0
        %3140 = vadd.xlane.f32.xlu0 %v3139
        %v3141 = vpop.xlane.xlu0 %3140
        %v3142 = vsel %vm1729, %v3135, 0.0
        %3143 = vadd.xlane.f32.xlu0 %v3142
        %v3144 = vpop.xlane.xlu0 %3143
        %v3145 = vrcp.pop %v3138
        %v3146 = vrcp.pop %v3141
        %v3147 = vrcp.pop %v3144
        %v3148 = vmul.f32 %v3131, %v3145
        %v3149 = vmul.f32 %v3133, %v3146
        %v3150 = vmul.f32 %v3135, %v3147
        %v3151 = vpack.c.bf16 %v3149, %v3148
        %v3152 = vpack.c.bf16 %v3150, %v3150
        %v3153 = vpack.c.bf16 %v1629, %v1626
        %v3154 = vpack.c.bf16 %v1634, %v1634
        %v3156 = vsel %vm1729, %v3151, 0
        %v3159 = vsel %vm1729, %v3152, 0
        %v3162 = vsel %vm1773, %v3154, 0
        %3164 = vmatprep.subr.bf16.mxu0 0
        %3165 = vmatpush1.bf16.msra.mxu0 0
        %3166 = vmatprep.subr.bf16.mxu0 0
        %3167 = vmatpush1.bf16.msra.mxu0 0
        %3168 = vmatprep.subr.bf16.mxu0 0
        %3169 = vmatpush1.bf16.msra.mxu0 0
        %3170 = vmatprep.subr.bf16.mxu0 0
        %3171 = vmatpush1.bf16.msra.mxu0 0
        %3172 = vmatprep.subr.bf16.mxu0 0
        %3173 = vmatpush1.bf16.msra.mxu0 0
        %3174 = vmatprep.subr.bf16.mxu0 0
        %3175 = vmatpush1.bf16.msra.mxu0 0
        %3176 = vmatprep.subr.bf16.mxu0 0
        %3177 = vmatpush1.bf16.msra.mxu0 %v3162
        %3178 = vmatprep.subr.bf16.mxu0 0
        %3179 = vmatpush1.bf16.msra.mxu0 %v3153
        %3180 = vmatprep.subr.bf16.mxu0 0
        %3181 = vmatpush2.bf16.msra.mxu0 0
        %3182 = vmatprep.subr.bf16.mxu0 0
        %3183 = vmatpush2.bf16.msra.mxu0 0
        %3184 = vmatprep.subr.bf16.mxu0 0
        %3185 = vmatpush2.bf16.msra.mxu0 0
        %3186 = vmatprep.subr.bf16.mxu0 0
        %3187 = vmatpush2.bf16.msra.mxu0 0
        %3188 = vmatprep.subr.bf16.mxu0 0
        %3189 = vmatpush2.bf16.msra.mxu0 0
        %3190 = vmatprep.subr.bf16.mxu0 0
        %3191 = vmatpush2.bf16.msra.mxu0 0
        %3192 = vmatprep.subr.bf16.mxu0 0
        %3193 = vmatpush2.bf16.msra.mxu0 0
        %3194 = vmatprep.subr.bf16.mxu0 0
        %3195 = vmatpush2.bf16.msra.mxu0 0
        %3196 = vmatprep.mubr.bf16.mxu0 0
        %3197 = vmatmul.mubr.bf16.gmra.mxu0 %v3156
        %v3198 = vpop.f32.mrf.mxu0
        %v3199 = vadd.f32 0.0, %v3198
        %v3200 = vpop.f32.mrf.mxu0
        %v3201 = vpop.f32.mrf.mxu0
        %v3202 = vadd.f32 0.0, %v3201
        %v3203 = vpop.f32.mrf.mxu0
        %3204 = vmatprep.mubr.bf16.mxu0 0
        %3205 = vmatmul.mubr.bf16.gmra.mxu0 %v3159
        %v3206 = vpop.f32.mrf.mxu0
        %v3207 = vadd.f32 0.0, %v3206
        %v3208 = vpop.f32.mrf.mxu0
        %v3209 = vpop.f32.mrf.mxu0
        %v3210 = vpop.f32.mrf.mxu0
        %3211 = vdwg.mxu0
        %v3212 = vadd.f32 %v2865, %v3199
        %v3213 = vadd.f32 %v2866, %v3202
        %v3214 = vadd.f32 %v2867, %v3207
        %v3215 = vpack.c.bf16 %v3202, %v3199
        %v3216 = vpack.c.bf16 %v3207, %v3207
        %s3217 = scalar_lea.vmem [#allocation8], 512
        %v3218 = vld [vmem:[%s3217] sm:$0xff]
        %v3219 = vld [vmem:[%s3217 + $0x8] sm:$0xff]
        %v3220 = vld [vmem:[%s3217 + $0x10] sm:$0xff]
        %v3221 = vld [vmem:[%s3217 + $0x18] sm:$0xff]
        %v3222 = vld [vmem:[%s3217 + $0x20] sm:$0xff]
        %v3223 = vld [vmem:[%s3217 + $0x28] sm:$0xff]
        %v3224 = vld [vmem:[%s3217 + $0x30] sm:$0xff]
        %v3225 = vld [vmem:[%s3217 + $0x38] sm:$0xff]
        %v3226 = vld [vmem:[%s3217 + $0x40] sm:$0xff]
        %v3227 = vld [vmem:[%s3217 + $0x48] sm:$0xff]
        %v3228 = vld [vmem:[%s3217 + $0x50] sm:$0xff]
        %v3229 = vld [vmem:[%s3217 + $0x58] sm:$0xff]
        %v3230 = vld [vmem:[%s3217 + $0x60] sm:$0xff]
        %v3231 = vld [vmem:[%s3217 + $0x68] sm:$0xff]
        %v3232 = vld [vmem:[%s3217 + $0x70] sm:$0xff]
        %v3233 = vld [vmem:[%s3217 + $0x78] sm:$0xff]
        %v3250 = vunpack.c.l.b16 %v3218
        %v3251 = vunpack.c.h.b16 %v3218
        %v3252 = vunpack.c.l.b16 %v3219
        %v3253 = vunpack.c.h.b16 %v3219
        %v3254 = vunpack.c.l.b16 %v3220
        %v3255 = vunpack.c.h.b16 %v3220
        %v3256 = vunpack.c.l.b16 %v3221
        %v3257 = vunpack.c.h.b16 %v3221
        %v3258 = vunpack.c.l.b16 %v3222
        %v3259 = vunpack.c.h.b16 %v3222
        %v3260 = vunpack.c.l.b16 %v3223
        %v3261 = vunpack.c.h.b16 %v3223
        %v3262 = vunpack.c.l.b16 %v3224
        %v3263 = vunpack.c.h.b16 %v3224
        %v3264 = vunpack.c.l.b16 %v3225
        %v3265 = vunpack.c.h.b16 %v3225
        %v3266 = vunpack.c.l.b16 %v3226
        %v3267 = vunpack.c.h.b16 %v3226
        %v3268 = vunpack.c.l.b16 %v3227
        %v3269 = vunpack.c.h.b16 %v3227
        %v3270 = vunpack.c.l.b16 %v3228
        %v3271 = vunpack.c.h.b16 %v3228
        %v3272 = vunpack.c.l.b16 %v3229
        %v3273 = vunpack.c.h.b16 %v3229
        %v3274 = vunpack.c.l.b16 %v3230
        %v3275 = vunpack.c.h.b16 %v3230
        %v3276 = vunpack.c.l.b16 %v3231
        %v3277 = vunpack.c.h.b16 %v3231
        %v3278 = vunpack.c.l.b16 %v3232
        %v3279 = vunpack.c.h.b16 %v3232
        %v3280 = vunpack.c.l.b16 %v3233
        %v3281 = vunpack.c.h.b16 %v3233
        %v3282 = vpack.c.b16 %v3252, %v3250
        %v3283 = vpack.c.b16 %v3253, %v3251
        %v3284 = vpack.c.b16 %v3256, %v3254
        %v3285 = vpack.c.b16 %v3257, %v3255
        %v3286 = vpack.c.b16 %v3260, %v3258
        %v3287 = vpack.c.b16 %v3261, %v3259
        %v3288 = vpack.c.b16 %v3264, %v3262
        %v3289 = vpack.c.b16 %v3265, %v3263
        %v3290 = vpack.c.b16 %v3268, %v3266
        %v3291 = vpack.c.b16 %v3269, %v3267
        %v3292 = vpack.c.b16 %v3272, %v3270
        %v3293 = vpack.c.b16 %v3273, %v3271
        %v3294 = vpack.c.b16 %v3276, %v3274
        %v3295 = vpack.c.b16 %v3277, %v3275
        %v3296 = vpack.c.b16 %v3280, %v3278
        %v3297 = vpack.c.b16 %v3281, %v3279
        %3314 = vmatprep.subr.bf16.mxu0 %v3297
        %3315 = vmatpush1.bf16.msra.mxu0 %v3296
        %3316 = vmatprep.subr.bf16.mxu0 %v3295
        %3317 = vmatpush1.bf16.msra.mxu0 %v3294
        %3318 = vmatprep.subr.bf16.mxu0 %v3293
        %3319 = vmatpush1.bf16.msra.mxu0 %v3292
        %3320 = vmatprep.subr.bf16.mxu0 %v3291
        %3321 = vmatpush1.bf16.msra.mxu0 %v3290
        %3322 = vmatprep.subr.bf16.mxu0 %v3289
        %3323 = vmatpush1.bf16.msra.mxu0 %v3288
        %3324 = vmatprep.subr.bf16.mxu0 %v3287
        %3325 = vmatpush1.bf16.msra.mxu0 %v3286
        %3326 = vmatprep.subr.bf16.mxu0 %v3285
        %3327 = vmatpush1.bf16.msra.mxu0 %v3284
        %3328 = vmatprep.subr.bf16.mxu0 %v3283
        %3329 = vmatpush1.bf16.msra.mxu0 %v3282
        %3330 = vmatprep.subr.bf16.mxu0 0
        %3331 = vmatpush2.bf16.msra.mxu0 0
        %3332 = vmatprep.subr.bf16.mxu0 0
        %3333 = vmatpush2.bf16.msra.mxu0 0
        %3334 = vmatprep.subr.bf16.mxu0 0
        %3335 = vmatpush2.bf16.msra.mxu0 0
        %3336 = vmatprep.subr.bf16.mxu0 0
        %3337 = vmatpush2.bf16.msra.mxu0 0
        %3338 = vmatprep.subr.bf16.mxu0 0
        %3339 = vmatpush2.bf16.msra.mxu0 0
        %3340 = vmatprep.subr.bf16.mxu0 0
        %3341 = vmatpush2.bf16.msra.mxu0 0
        %3342 = vmatprep.subr.bf16.mxu0 0
        %3343 = vmatpush2.bf16.msra.mxu0 0
        %3344 = vmatprep.subr.bf16.mxu0 0
        %3345 = vmatpush2.bf16.msra.mxu0 0
        %3346 = vmatprep.mubr.bf16.mxu0 0
        %3347 = vmatmul.mubr.bf16.gmra.mxu0 %v3215
        %v3348 = vpop.f32.mrf.mxu0
        %v3349 = vadd.f32 0.0, %v3348
        %v3350 = vpop.f32.mrf.mxu0
        %v3351 = vadd.f32 0.0, %v3350
        %v3352 = vpop.f32.mrf.mxu0
        %v3353 = vadd.f32 0.0, %v3352
        %v3354 = vpop.f32.mrf.mxu0
        %v3355 = vadd.f32 0.0, %v3354
        %3356 = vmatprep.mubr.bf16.mxu0 0
        %3357 = vmatmul.mubr.bf16.gmra.mxu0 %v3216
        %v3358 = vpop.f32.mrf.mxu0
        %v3359 = vadd.f32 0.0, %v3358
        %v3360 = vpop.f32.mrf.mxu0
        %v3361 = vadd.f32 0.0, %v3360
        %v3362 = vpop.f32.mrf.mxu0
        %v3363 = vpop.f32.mrf.mxu0
        %3364 = vdwg.mxu0
        %v3365 = vmax.f32 %v3349, 0.0
        %v3366 = vmax.f32 %v3351, 0.0
        %v3367 = vmax.f32 %v3353, 0.0
        %v3368 = vmax.f32 %v3355, 0.0
        %v3369 = vmax.f32 %v3359, 0.0
        %v3370 = vmax.f32 %v3361, 0.0
        %v3371 = vpack.c.bf16 %v3367, %v3365
        %v3372 = vpack.c.bf16 %v3368, %v3366
        %v3373 = vpack.c.bf16 %v3369, %v3369
        %v3374 = vpack.c.bf16 %v3370, %v3370
        %v3375 = vld [vmem:[#allocation10] sm:$0xf]
        %v3376 = vld [vmem:[#allocation10 + $0x4] sm:$0xf]
        %v3377 = vld [vmem:[#allocation10 + $0x8] sm:$0xf]
        %v3378 = vld [vmem:[#allocation10 + $0xc] sm:$0xf]
        %v3379 = vld [vmem:[#allocation10 + $0x10] sm:$0xf]
        %v3380 = vld [vmem:[#allocation10 + $0x14] sm:$0xf]
        %v3381 = vld [vmem:[#allocation10 + $0x18] sm:$0xf]
        %v3382 = vld [vmem:[#allocation10 + $0x1c] sm:$0xf]
        %v3383 = vld [vmem:[#allocation10 + $0x20] sm:$0xf]
        %v3384 = vld [vmem:[#allocation10 + $0x24] sm:$0xf]
        %v3385 = vld [vmem:[#allocation10 + $0x28] sm:$0xf]
        %v3386 = vld [vmem:[#allocation10 + $0x2c] sm:$0xf]
        %v3387 = vld [vmem:[#allocation10 + $0x30] sm:$0xf]
        %v3388 = vld [vmem:[#allocation10 + $0x34] sm:$0xf]
        %v3389 = vld [vmem:[#allocation10 + $0x38] sm:$0xf]
        %v3390 = vld [vmem:[#allocation10 + $0x3c] sm:$0xf]
        %v3391 = vld [vmem:[#allocation10 + $0x40] sm:$0xf]
        %v3392 = vld [vmem:[#allocation10 + $0x44] sm:$0xf]
        %v3393 = vld [vmem:[#allocation10 + $0x48] sm:$0xf]
        %v3394 = vld [vmem:[#allocation10 + $0x4c] sm:$0xf]
        %v3395 = vld [vmem:[#allocation10 + $0x50] sm:$0xf]
        %v3396 = vld [vmem:[#allocation10 + $0x54] sm:$0xf]
        %v3397 = vld [vmem:[#allocation10 + $0x58] sm:$0xf]
        %v3398 = vld [vmem:[#allocation10 + $0x5c] sm:$0xf]
        %v3399 = vld [vmem:[#allocation10 + $0x60] sm:$0xf]
        %v3400 = vld [vmem:[#allocation10 + $0x64] sm:$0xf]
        %v3401 = vld [vmem:[#allocation10 + $0x68] sm:$0xf]
        %v3402 = vld [vmem:[#allocation10 + $0x6c] sm:$0xf]
        %v3403 = vld [vmem:[#allocation10 + $0x70] sm:$0xf]
        %v3404 = vld [vmem:[#allocation10 + $0x74] sm:$0xf]
        %v3405 = vld [vmem:[#allocation10 + $0x78] sm:$0xf]
        %v3406 = vld [vmem:[#allocation10 + $0x7c] sm:$0xf]
        %v3407 = vld [vmem:[#allocation10 + $0x80] sm:$0xf]
        %v3408 = vld [vmem:[#allocation10 + $0x84] sm:$0xf]
        %v3409 = vld [vmem:[#allocation10 + $0x88] sm:$0xf]
        %v3410 = vld [vmem:[#allocation10 + $0x8c] sm:$0xf]
        %v3411 = vld [vmem:[#allocation10 + $0x90] sm:$0xf]
        %v3412 = vld [vmem:[#allocation10 + $0x94] sm:$0xf]
        %v3413 = vld [vmem:[#allocation10 + $0x98] sm:$0xf]
        %v3414 = vld [vmem:[#allocation10 + $0x9c] sm:$0xf]
        %v3415 = vld [vmem:[#allocation10 + $0xa0] sm:$0xf]
        %v3416 = vld [vmem:[#allocation10 + $0xa4] sm:$0xf]
        %v3417 = vld [vmem:[#allocation10 + $0xa8] sm:$0xf]
        %v3418 = vld [vmem:[#allocation10 + $0xac] sm:$0xf]
        %v3419 = vld [vmem:[#allocation10 + $0xb0] sm:$0xf]
        %v3420 = vld [vmem:[#allocation10 + $0xb4] sm:$0xf]
        %v3421 = vld [vmem:[#allocation10 + $0xb8] sm:$0xf]
        %v3422 = vld [vmem:[#allocation10 + $0xbc] sm:$0xf]
        %v3423 = vld [vmem:[#allocation10 + $0xc0] sm:$0xf]
        %v3424 = vld [vmem:[#allocation10 + $0xc4] sm:$0xf]
        %v3425 = vld [vmem:[#allocation10 + $0xc8] sm:$0xf]
        %v3426 = vld [vmem:[#allocation10 + $0xcc] sm:$0xf]
        %v3427 = vld [vmem:[#allocation10 + $0xd0] sm:$0xf]
        %v3428 = vld [vmem:[#allocation10 + $0xd4] sm:$0xf]
        %v3429 = vld [vmem:[#allocation10 + $0xd8] sm:$0xf]
        %v3430 = vld [vmem:[#allocation10 + $0xdc] sm:$0xf]
        %v3431 = vld [vmem:[#allocation10 + $0xe0] sm:$0xf]
        %v3432 = vld [vmem:[#allocation10 + $0xe4] sm:$0xf]
        %v3433 = vld [vmem:[#allocation10 + $0xe8] sm:$0xf]
        %v3434 = vld [vmem:[#allocation10 + $0xec] sm:$0xf]
        %v3435 = vld [vmem:[#allocation10 + $0xf0] sm:$0xf]
        %v3436 = vld [vmem:[#allocation10 + $0xf4] sm:$0xf]
        %v3437 = vld [vmem:[#allocation10 + $0xf8] sm:$0xf]
        %v3438 = vld [vmem:[#allocation10 + $0xfc] sm:$0xf]
        %v3439 = vld [vmem:[#allocation10 + $0x100] sm:$0xf]
        %v3440 = vld [vmem:[#allocation10 + $0x104] sm:$0xf]
        %v3441 = vld [vmem:[#allocation10 + $0x108] sm:$0xf]
        %v3442 = vld [vmem:[#allocation10 + $0x10c] sm:$0xf]
        %v3443 = vld [vmem:[#allocation10 + $0x110] sm:$0xf]
        %v3444 = vld [vmem:[#allocation10 + $0x114] sm:$0xf]
        %v3445 = vld [vmem:[#allocation10 + $0x118] sm:$0xf]
        %v3446 = vld [vmem:[#allocation10 + $0x11c] sm:$0xf]
        %v3447 = vld [vmem:[#allocation10 + $0x120] sm:$0xf]
        %v3448 = vld [vmem:[#allocation10 + $0x124] sm:$0xf]
        %v3449 = vld [vmem:[#allocation10 + $0x128] sm:$0xf]
        %v3450 = vld [vmem:[#allocation10 + $0x12c] sm:$0xf]
        %v3451 = vld [vmem:[#allocation10 + $0x130] sm:$0xf]
        %v3452 = vld [vmem:[#allocation10 + $0x134] sm:$0xf]
        %v3453 = vld [vmem:[#allocation10 + $0x138] sm:$0xf]
        %v3454 = vld [vmem:[#allocation10 + $0x13c] sm:$0xf]
        %v3455 = vld [vmem:[#allocation10 + $0x140] sm:$0xf]
        %v3456 = vld [vmem:[#allocation10 + $0x144] sm:$0xf]
        %v3457 = vld [vmem:[#allocation10 + $0x148] sm:$0xf]
        %v3458 = vld [vmem:[#allocation10 + $0x14c] sm:$0xf]
        %v3459 = vld [vmem:[#allocation10 + $0x150] sm:$0xf]
        %v3460 = vld [vmem:[#allocation10 + $0x154] sm:$0xf]
        %v3461 = vld [vmem:[#allocation10 + $0x158] sm:$0xf]
        %v3462 = vld [vmem:[#allocation10 + $0x15c] sm:$0xf]
        %v3463 = vld [vmem:[#allocation10 + $0x160] sm:$0xf]
        %v3464 = vld [vmem:[#allocation10 + $0x164] sm:$0xf]
        %v3465 = vld [vmem:[#allocation10 + $0x168] sm:$0xf]
        %v3466 = vld [vmem:[#allocation10 + $0x16c] sm:$0xf]
        %v3467 = vld [vmem:[#allocation10 + $0x170] sm:$0xf]
        %v3468 = vld [vmem:[#allocation10 + $0x174] sm:$0xf]
        %v3469 = vld [vmem:[#allocation10 + $0x178] sm:$0xf]
        %v3470 = vld [vmem:[#allocation10 + $0x17c] sm:$0xf]
        %v3471 = vld [vmem:[#allocation10 + $0x180] sm:$0xf]
        %v3472 = vld [vmem:[#allocation10 + $0x184] sm:$0xf]
        %v3473 = vld [vmem:[#allocation10 + $0x188] sm:$0xf]
        %v3474 = vld [vmem:[#allocation10 + $0x18c] sm:$0xf]
        %v3475 = vld [vmem:[#allocation10 + $0x190] sm:$0xf]
        %v3476 = vld [vmem:[#allocation10 + $0x194] sm:$0xf]
        %v3477 = vld [vmem:[#allocation10 + $0x198] sm:$0xf]
        %v3478 = vld [vmem:[#allocation10 + $0x19c] sm:$0xf]
        %v3479 = vld [vmem:[#allocation10 + $0x1a0] sm:$0xf]
        %v3480 = vld [vmem:[#allocation10 + $0x1a4] sm:$0xf]
        %v3481 = vld [vmem:[#allocation10 + $0x1a8] sm:$0xf]
        %v3482 = vld [vmem:[#allocation10 + $0x1ac] sm:$0xf]
        %v3483 = vld [vmem:[#allocation10 + $0x1b0] sm:$0xf]
        %v3484 = vld [vmem:[#allocation10 + $0x1b4] sm:$0xf]
        %v3485 = vld [vmem:[#allocation10 + $0x1b8] sm:$0xf]
        %v3486 = vld [vmem:[#allocation10 + $0x1bc] sm:$0xf]
        %v3487 = vld [vmem:[#allocation10 + $0x1c0] sm:$0xf]
        %v3488 = vld [vmem:[#allocation10 + $0x1c4] sm:$0xf]
        %v3489 = vld [vmem:[#allocation10 + $0x1c8] sm:$0xf]
        %v3490 = vld [vmem:[#allocation10 + $0x1cc] sm:$0xf]
        %v3491 = vld [vmem:[#allocation10 + $0x1d0] sm:$0xf]
        %v3492 = vld [vmem:[#allocation10 + $0x1d4] sm:$0xf]
        %v3493 = vld [vmem:[#allocation10 + $0x1d8] sm:$0xf]
        %v3494 = vld [vmem:[#allocation10 + $0x1dc] sm:$0xf]
        %v3495 = vld [vmem:[#allocation10 + $0x1e0] sm:$0xf]
        %v3496 = vld [vmem:[#allocation10 + $0x1e4] sm:$0xf]
        %v3497 = vld [vmem:[#allocation10 + $0x1e8] sm:$0xf]
        %v3498 = vld [vmem:[#allocation10 + $0x1ec] sm:$0xf]
        %v3499 = vld [vmem:[#allocation10 + $0x1f0] sm:$0xf]
        %v3500 = vld [vmem:[#allocation10 + $0x1f4] sm:$0xf]
        %v3501 = vld [vmem:[#allocation10 + $0x1f8] sm:$0xf]
        %v3502 = vld [vmem:[#allocation10 + $0x1fc] sm:$0xf]
        %v3503 = vld [vmem:[#allocation10 + $0x200] sm:$0xf]
        %v3504 = vld [vmem:[#allocation10 + $0x204] sm:$0xf]
        %v3505 = vld [vmem:[#allocation10 + $0x208] sm:$0xf]
        %v3506 = vld [vmem:[#allocation10 + $0x20c] sm:$0xf]
        %v3507 = vld [vmem:[#allocation10 + $0x210] sm:$0xf]
        %v3508 = vld [vmem:[#allocation10 + $0x214] sm:$0xf]
        %v3509 = vld [vmem:[#allocation10 + $0x218] sm:$0xf]
        %v3510 = vld [vmem:[#allocation10 + $0x21c] sm:$0xf]
        %v3511 = vld [vmem:[#allocation10 + $0x220] sm:$0xf]
        %v3512 = vld [vmem:[#allocation10 + $0x224] sm:$0xf]
        %v3513 = vld [vmem:[#allocation10 + $0x228] sm:$0xf]
        %v3514 = vld [vmem:[#allocation10 + $0x22c] sm:$0xf]
        %v3515 = vld [vmem:[#allocation10 + $0x230] sm:$0xf]
        %v3516 = vld [vmem:[#allocation10 + $0x234] sm:$0xf]
        %v3517 = vld [vmem:[#allocation10 + $0x238] sm:$0xf]
        %v3518 = vld [vmem:[#allocation10 + $0x23c] sm:$0xf]
        %v3519 = vld [vmem:[#allocation10 + $0x240] sm:$0xf]
        %v3520 = vld [vmem:[#allocation10 + $0x244] sm:$0xf]
        %v3521 = vld [vmem:[#allocation10 + $0x248] sm:$0xf]
        %v3522 = vld [vmem:[#allocation10 + $0x24c] sm:$0xf]
        %v3523 = vld [vmem:[#allocation10 + $0x250] sm:$0xf]
        %v3524 = vld [vmem:[#allocation10 + $0x254] sm:$0xf]
        %v3525 = vld [vmem:[#allocation10 + $0x258] sm:$0xf]
        %v3526 = vld [vmem:[#allocation10 + $0x25c] sm:$0xf]
        %v3527 = vld [vmem:[#allocation10 + $0x260] sm:$0xf]
        %v3528 = vld [vmem:[#allocation10 + $0x264] sm:$0xf]
        %v3529 = vld [vmem:[#allocation10 + $0x268] sm:$0xf]
        %v3530 = vld [vmem:[#allocation10 + $0x26c] sm:$0xf]
        %v3531 = vld [vmem:[#allocation10 + $0x270] sm:$0xf]
        %v3532 = vld [vmem:[#allocation10 + $0x274] sm:$0xf]
        %v3533 = vld [vmem:[#allocation10 + $0x278] sm:$0xf]
        %v3534 = vld [vmem:[#allocation10 + $0x27c] sm:$0xf]
        %v3695 = vunpack.c.l.b16 %v3375
        %v3696 = vunpack.c.l.b16 %v3376
        %v3697 = vunpack.c.l.b16 %v3377
        %v3698 = vunpack.c.l.b16 %v3378
        %v3699 = vunpack.c.l.b16 %v3379
        %v3700 = vunpack.c.l.b16 %v3380
        %v3701 = vunpack.c.l.b16 %v3381
        %v3702 = vunpack.c.l.b16 %v3382
        %v3703 = vunpack.c.l.b16 %v3383
        %v3704 = vunpack.c.l.b16 %v3384
        %v3705 = vunpack.c.l.b16 %v3385
        %v3706 = vunpack.c.l.b16 %v3386
        %v3707 = vunpack.c.l.b16 %v3387
        %v3708 = vunpack.c.l.b16 %v3388
        %v3709 = vunpack.c.l.b16 %v3389
        %v3710 = vunpack.c.l.b16 %v3390
        %v3711 = vunpack.c.l.b16 %v3391
        %v3712 = vunpack.c.l.b16 %v3392
        %v3713 = vunpack.c.l.b16 %v3393
        %v3714 = vunpack.c.l.b16 %v3394
        %v3715 = vunpack.c.l.b16 %v3395
        %v3716 = vunpack.c.l.b16 %v3396
        %v3717 = vunpack.c.l.b16 %v3397
        %v3718 = vunpack.c.l.b16 %v3398
        %v3719 = vunpack.c.l.b16 %v3399
        %v3720 = vunpack.c.l.b16 %v3400
        %v3721 = vunpack.c.l.b16 %v3401
        %v3722 = vunpack.c.l.b16 %v3402
        %v3723 = vunpack.c.l.b16 %v3403
        %v3724 = vunpack.c.l.b16 %v3404
        %v3725 = vunpack.c.l.b16 %v3405
        %v3726 = vunpack.c.l.b16 %v3406
        %v3727 = vunpack.c.l.b16 %v3407
        %v3728 = vunpack.c.l.b16 %v3408
        %v3729 = vunpack.c.l.b16 %v3409
        %v3730 = vunpack.c.l.b16 %v3410
        %v3731 = vunpack.c.l.b16 %v3411
        %v3732 = vunpack.c.l.b16 %v3412
        %v3733 = vunpack.c.l.b16 %v3413
        %v3734 = vunpack.c.l.b16 %v3414
        %v3735 = vunpack.c.l.b16 %v3415
        %v3736 = vunpack.c.l.b16 %v3416
        %v3737 = vunpack.c.l.b16 %v3417
        %v3738 = vunpack.c.l.b16 %v3418
        %v3739 = vunpack.c.l.b16 %v3419
        %v3740 = vunpack.c.l.b16 %v3420
        %v3741 = vunpack.c.l.b16 %v3421
        %v3742 = vunpack.c.l.b16 %v3422
        %v3743 = vunpack.c.l.b16 %v3423
        %v3744 = vunpack.c.l.b16 %v3424
        %v3745 = vunpack.c.l.b16 %v3425
        %v3746 = vunpack.c.l.b16 %v3426
        %v3747 = vunpack.c.l.b16 %v3427
        %v3748 = vunpack.c.l.b16 %v3428
        %v3749 = vunpack.c.l.b16 %v3429
        %v3750 = vunpack.c.l.b16 %v3430
        %v3751 = vunpack.c.l.b16 %v3431
        %v3752 = vunpack.c.l.b16 %v3432
        %v3753 = vunpack.c.l.b16 %v3433
        %v3754 = vunpack.c.l.b16 %v3434
        %v3755 = vunpack.c.l.b16 %v3435
        %v3756 = vunpack.c.l.b16 %v3436
        %v3757 = vunpack.c.l.b16 %v3437
        %v3758 = vunpack.c.l.b16 %v3438
        %v3759 = vunpack.c.l.b16 %v3439
        %v3760 = vunpack.c.l.b16 %v3440
        %v3761 = vunpack.c.l.b16 %v3441
        %v3762 = vunpack.c.l.b16 %v3442
        %v3763 = vunpack.c.l.b16 %v3443
        %v3764 = vunpack.c.l.b16 %v3444
        %v3765 = vunpack.c.l.b16 %v3445
        %v3766 = vunpack.c.l.b16 %v3446
        %v3767 = vunpack.c.l.b16 %v3447
        %v3768 = vunpack.c.l.b16 %v3448
        %v3769 = vunpack.c.l.b16 %v3449
        %v3770 = vunpack.c.l.b16 %v3450
        %v3771 = vunpack.c.l.b16 %v3451
        %v3772 = vunpack.c.l.b16 %v3452
        %v3773 = vunpack.c.l.b16 %v3453
        %v3774 = vunpack.c.l.b16 %v3454
        %v3775 = vunpack.c.l.b16 %v3455
        %v3776 = vunpack.c.l.b16 %v3456
        %v3777 = vunpack.c.l.b16 %v3457
        %v3778 = vunpack.c.l.b16 %v3458
        %v3779 = vunpack.c.l.b16 %v3459
        %v3780 = vunpack.c.l.b16 %v3460
        %v3781 = vunpack.c.l.b16 %v3461
        %v3782 = vunpack.c.l.b16 %v3462
        %v3783 = vunpack.c.l.b16 %v3463
        %v3784 = vunpack.c.l.b16 %v3464
        %v3785 = vunpack.c.l.b16 %v3465
        %v3786 = vunpack.c.l.b16 %v3466
        %v3787 = vunpack.c.l.b16 %v3467
        %v3788 = vunpack.c.l.b16 %v3468
        %v3789 = vunpack.c.l.b16 %v3469
        %v3790 = vunpack.c.l.b16 %v3470
        %v3791 = vunpack.c.l.b16 %v3471
        %v3792 = vunpack.c.l.b16 %v3472
        %v3793 = vunpack.c.l.b16 %v3473
        %v3794 = vunpack.c.l.b16 %v3474
        %v3795 = vunpack.c.l.b16 %v3475
        %v3796 = vunpack.c.l.b16 %v3476
        %v3797 = vunpack.c.l.b16 %v3477
        %v3798 = vunpack.c.l.b16 %v3478
        %v3799 = vunpack.c.l.b16 %v3479
        %v3800 = vunpack.c.l.b16 %v3480
        %v3801 = vunpack.c.l.b16 %v3481
        %v3802 = vunpack.c.l.b16 %v3482
        %v3803 = vunpack.c.l.b16 %v3483
        %v3804 = vunpack.c.l.b16 %v3484
        %v3805 = vunpack.c.l.b16 %v3485
        %v3806 = vunpack.c.l.b16 %v3486
        %v3807 = vunpack.c.l.b16 %v3487
        %v3808 = vunpack.c.l.b16 %v3488
        %v3809 = vunpack.c.l.b16 %v3489
        %v3810 = vunpack.c.l.b16 %v3490
        %v3811 = vunpack.c.l.b16 %v3491
        %v3812 = vunpack.c.l.b16 %v3492
        %v3813 = vunpack.c.l.b16 %v3493
        %v3814 = vunpack.c.l.b16 %v3494
        %v3815 = vunpack.c.l.b16 %v3495
        %v3816 = vunpack.c.l.b16 %v3496
        %v3817 = vunpack.c.l.b16 %v3497
        %v3818 = vunpack.c.l.b16 %v3498
        %v3819 = vunpack.c.l.b16 %v3499
        %v3820 = vunpack.c.l.b16 %v3500
        %v3821 = vunpack.c.l.b16 %v3501
        %v3822 = vunpack.c.l.b16 %v3502
        %v3823 = vunpack.c.l.b16 %v3503
        %v3824 = vunpack.c.l.b16 %v3504
        %v3825 = vunpack.c.l.b16 %v3505
        %v3826 = vunpack.c.l.b16 %v3506
        %v3827 = vunpack.c.l.b16 %v3507
        %v3828 = vunpack.c.l.b16 %v3508
        %v3829 = vunpack.c.l.b16 %v3509
        %v3830 = vunpack.c.l.b16 %v3510
        %v3831 = vunpack.c.l.b16 %v3511
        %v3832 = vunpack.c.l.b16 %v3512
        %v3833 = vunpack.c.l.b16 %v3513
        %v3834 = vunpack.c.l.b16 %v3514
        %v3835 = vunpack.c.l.b16 %v3515
        %v3836 = vunpack.c.l.b16 %v3516
        %v3837 = vunpack.c.l.b16 %v3517
        %v3838 = vunpack.c.l.b16 %v3518
        %v3839 = vunpack.c.l.b16 %v3519
        %v3840 = vunpack.c.l.b16 %v3520
        %v3841 = vunpack.c.l.b16 %v3521
        %v3842 = vunpack.c.l.b16 %v3522
        %v3843 = vunpack.c.l.b16 %v3523
        %v3844 = vunpack.c.l.b16 %v3524
        %v3845 = vunpack.c.l.b16 %v3525
        %v3846 = vunpack.c.l.b16 %v3526
        %v3847 = vunpack.c.l.b16 %v3527
        %v3848 = vunpack.c.l.b16 %v3528
        %v3849 = vunpack.c.l.b16 %v3529
        %v3850 = vunpack.c.l.b16 %v3530
        %v3851 = vunpack.c.l.b16 %v3531
        %v3852 = vunpack.c.l.b16 %v3532
        %v3853 = vunpack.c.l.b16 %v3533
        %v3854 = vunpack.c.l.b16 %v3534
        %v3855 = vpack.c.b16 %v3696, %v3695
        %v3856 = vpack.c.b16 %v3698, %v3697
        %v3857 = vpack.c.b16 %v3700, %v3699
        %v3858 = vpack.c.b16 %v3702, %v3701
        %v3859 = vpack.c.b16 %v3704, %v3703
        %v3860 = vpack.c.b16 %v3706, %v3705
        %v3861 = vpack.c.b16 %v3708, %v3707
        %v3862 = vpack.c.b16 %v3710, %v3709
        %v3863 = vpack.c.b16 %v3712, %v3711
        %v3864 = vpack.c.b16 %v3714, %v3713
        %v3865 = vpack.c.b16 %v3716, %v3715
        %v3866 = vpack.c.b16 %v3718, %v3717
        %v3867 = vpack.c.b16 %v3720, %v3719
        %v3868 = vpack.c.b16 %v3722, %v3721
        %v3869 = vpack.c.b16 %v3724, %v3723
        %v3870 = vpack.c.b16 %v3726, %v3725
        %v3871 = vpack.c.b16 %v3728, %v3727
        %v3872 = vpack.c.b16 %v3730, %v3729
        %v3873 = vpack.c.b16 %v3732, %v3731
        %v3874 = vpack.c.b16 %v3734, %v3733
        %v3875 = vpack.c.b16 %v3736, %v3735
        %v3876 = vpack.c.b16 %v3738, %v3737
        %v3877 = vpack.c.b16 %v3740, %v3739
        %v3878 = vpack.c.b16 %v3742, %v3741
        %v3879 = vpack.c.b16 %v3744, %v3743
        %v3880 = vpack.c.b16 %v3746, %v3745
        %v3881 = vpack.c.b16 %v3748, %v3747
        %v3882 = vpack.c.b16 %v3750, %v3749
        %v3883 = vpack.c.b16 %v3752, %v3751
        %v3884 = vpack.c.b16 %v3754, %v3753
        %v3885 = vpack.c.b16 %v3756, %v3755
        %v3886 = vpack.c.b16 %v3758, %v3757
        %v3887 = vpack.c.b16 %v3760, %v3759
        %v3888 = vpack.c.b16 %v3762, %v3761
        %v3889 = vpack.c.b16 %v3764, %v3763
        %v3890 = vpack.c.b16 %v3766, %v3765
        %v3891 = vpack.c.b16 %v3768, %v3767
        %v3892 = vpack.c.b16 %v3770, %v3769
        %v3893 = vpack.c.b16 %v3772, %v3771
        %v3894 = vpack.c.b16 %v3774, %v3773
        %v3895 = vpack.c.b16 %v3776, %v3775
        %v3896 = vpack.c.b16 %v3778, %v3777
        %v3897 = vpack.c.b16 %v3780, %v3779
        %v3898 = vpack.c.b16 %v3782, %v3781
        %v3899 = vpack.c.b16 %v3784, %v3783
        %v3900 = vpack.c.b16 %v3786, %v3785
        %v3901 = vpack.c.b16 %v3788, %v3787
        %v3902 = vpack.c.b16 %v3790, %v3789
        %v3903 = vpack.c.b16 %v3792, %v3791
        %v3904 = vpack.c.b16 %v3794, %v3793
        %v3905 = vpack.c.b16 %v3796, %v3795
        %v3906 = vpack.c.b16 %v3798, %v3797
        %v3907 = vpack.c.b16 %v3800, %v3799
        %v3908 = vpack.c.b16 %v3802, %v3801
        %v3909 = vpack.c.b16 %v3804, %v3803
        %v3910 = vpack.c.b16 %v3806, %v3805
        %v3911 = vpack.c.b16 %v3808, %v3807
        %v3912 = vpack.c.b16 %v3810, %v3809
        %v3913 = vpack.c.b16 %v3812, %v3811
        %v3914 = vpack.c.b16 %v3814, %v3813
        %v3915 = vpack.c.b16 %v3816, %v3815
        %v3916 = vpack.c.b16 %v3818, %v3817
        %v3917 = vpack.c.b16 %v3820, %v3819
        %v3918 = vpack.c.b16 %v3822, %v3821
        %v3919 = vpack.c.b16 %v3824, %v3823
        %v3920 = vpack.c.b16 %v3826, %v3825
        %v3921 = vpack.c.b16 %v3828, %v3827
        %v3922 = vpack.c.b16 %v3830, %v3829
        %v3923 = vpack.c.b16 %v3832, %v3831
        %v3924 = vpack.c.b16 %v3834, %v3833
        %v3925 = vpack.c.b16 %v3836, %v3835
        %v3926 = vpack.c.b16 %v3838, %v3837
        %v3927 = vpack.c.b16 %v3840, %v3839
        %v3928 = vpack.c.b16 %v3842, %v3841
        %v3929 = vpack.c.b16 %v3844, %v3843
        %v3930 = vpack.c.b16 %v3846, %v3845
        %v3931 = vpack.c.b16 %v3848, %v3847
        %v3932 = vpack.c.b16 %v3850, %v3849
        %v3933 = vpack.c.b16 %v3852, %v3851
        %v3934 = vpack.c.b16 %v3854, %v3853
        %4015 = vmatprep.subr.bf16.mxu0 0
        %4016 = vmatpush1.bf16.msra.mxu0 %v3862
        %4017 = vmatprep.subr.bf16.mxu0 0
        %4018 = vmatpush1.bf16.msra.mxu0 %v3861
        %4019 = vmatprep.subr.bf16.mxu0 0
        %4020 = vmatpush1.bf16.msra.mxu0 %v3860
        %4021 = vmatprep.subr.bf16.mxu0 0
        %4022 = vmatpush1.bf16.msra.mxu0 %v3859
        %4023 = vmatprep.subr.bf16.mxu0 0
        %4024 = vmatpush1.bf16.msra.mxu0 %v3858
        %4025 = vmatprep.subr.bf16.mxu0 0
        %4026 = vmatpush1.bf16.msra.mxu0 %v3857
        %4027 = vmatprep.subr.bf16.mxu0 0
        %4028 = vmatpush1.bf16.msra.mxu0 %v3856
        %4029 = vmatprep.subr.bf16.mxu0 0
        %4030 = vmatpush1.bf16.msra.mxu0 %v3855
        %4031 = vmatprep.subr.bf16.mxu0 0
        %4032 = vmatpush2.bf16.msra.mxu0 %v3870
        %4033 = vmatprep.subr.bf16.mxu0 0
        %4034 = vmatpush2.bf16.msra.mxu0 %v3869
        %4035 = vmatprep.subr.bf16.mxu0 0
        %4036 = vmatpush2.bf16.msra.mxu0 %v3868
        %4037 = vmatprep.subr.bf16.mxu0 0
        %4038 = vmatpush2.bf16.msra.mxu0 %v3867
        %4039 = vmatprep.subr.bf16.mxu0 0
        %4040 = vmatpush2.bf16.msra.mxu0 %v3866
        %4041 = vmatprep.subr.bf16.mxu0 0
        %4042 = vmatpush2.bf16.msra.mxu0 %v3865
        %4043 = vmatprep.subr.bf16.mxu0 0
        %4044 = vmatpush2.bf16.msra.mxu0 %v3864
        %4045 = vmatprep.subr.bf16.mxu0 0
        %4046 = vmatpush2.bf16.msra.mxu0 %v3863
        %4047 = vmatprep.mubr.bf16.mxu0 %v1984
        %4048 = vmatmul.mubr.bf16.gmra.mxu0 %v1983
        %v4049 = vpop.f32.mrf.mxu0
        %v4050 = vadd.f32 0.0, %v4049
        %v4051 = vpop.f32.mrf.mxu0
        %v4052 = vpop.f32.mrf.mxu0
        %v4053 = vadd.f32 0.0, %v4052
        %v4054 = vpop.f32.mrf.mxu0
        %4055 = vmatprep.mubr.bf16.mxu0 %v1986
        %4056 = vmatmul.mubr.bf16.gmra.mxu0 %v1985
        %v4057 = vpop.f32.mrf.mxu0
        %v4058 = vadd.f32 0.0, %v4057
        %v4059 = vpop.f32.mrf.mxu0
        %v4060 = vpop.f32.mrf.mxu0
        %v4061 = vpop.f32.mrf.mxu0
        %4062 = vdwg.mxu0
        %4063 = vmatprep.subr.bf16.mxu0 0
        %4064 = vmatpush1.bf16.msra.mxu0 %v3878
        %4065 = vmatprep.subr.bf16.mxu0 0
        %4066 = vmatpush1.bf16.msra.mxu0 %v3877
        %4067 = vmatprep.subr.bf16.mxu0 0
        %4068 = vmatpush1.bf16.msra.mxu0 %v3876
        %4069 = vmatprep.subr.bf16.mxu0 0
        %4070 = vmatpush1.bf16.msra.mxu0 %v3875
        %4071 = vmatprep.subr.bf16.mxu0 0
        %4072 = vmatpush1.bf16.msra.mxu0 %v3874
        %4073 = vmatprep.subr.bf16.mxu0 0
        %4074 = vmatpush1.bf16.msra.mxu0 %v3873
        %4075 = vmatprep.subr.bf16.mxu0 0
        %4076 = vmatpush1.bf16.msra.mxu0 %v3872
        %4077 = vmatprep.subr.bf16.mxu0 0
        %4078 = vmatpush1.bf16.msra.mxu0 %v3871
        %4079 = vmatprep.subr.bf16.mxu0 0
        %4080 = vmatpush2.bf16.msra.mxu0 %v3886
        %4081 = vmatprep.subr.bf16.mxu0 0
        %4082 = vmatpush2.bf16.msra.mxu0 %v3885
        %4083 = vmatprep.subr.bf16.mxu0 0
        %4084 = vmatpush2.bf16.msra.mxu0 %v3884
        %4085 = vmatprep.subr.bf16.mxu0 0
        %4086 = vmatpush2.bf16.msra.mxu0 %v3883
        %4087 = vmatprep.subr.bf16.mxu0 0
        %4088 = vmatpush2.bf16.msra.mxu0 %v3882
        %4089 = vmatprep.subr.bf16.mxu0 0
        %4090 = vmatpush2.bf16.msra.mxu0 %v3881
        %4091 = vmatprep.subr.bf16.mxu0 0
        %4092 = vmatpush2.bf16.msra.mxu0 %v3880
        %4093 = vmatprep.subr.bf16.mxu0 0
        %4094 = vmatpush2.bf16.msra.mxu0 %v3879
        %4095 = vmatprep.mubr.bf16.mxu0 %v2331
        %4096 = vmatmul.mubr.bf16.gmra.mxu0 %v2330
        %v4097 = vpop.f32.mrf.mxu0
        %v4098 = vadd.f32 %v4050, %v4097
        %v4099 = vpop.f32.mrf.mxu0
        %v4100 = vpop.f32.mrf.mxu0
        %v4101 = vadd.f32 %v4053, %v4100
        %v4102 = vpop.f32.mrf.mxu0
        %4103 = vmatprep.mubr.bf16.mxu0 %v2333
        %4104 = vmatmul.mubr.bf16.gmra.mxu0 %v2332
        %v4105 = vpop.f32.mrf.mxu0
        %v4106 = vadd.f32 %v4058, %v4105
        %v4107 = vpop.f32.mrf.mxu0
        %v4108 = vpop.f32.mrf.mxu0
        %v4109 = vpop.f32.mrf.mxu0
        %4110 = vdwg.mxu0
        %4111 = vmatprep.subr.bf16.mxu0 0
        %4112 = vmatpush1.bf16.msra.mxu0 %v3894
        %4113 = vmatprep.subr.bf16.mxu0 0
        %4114 = vmatpush1.bf16.msra.mxu0 %v3893
        %4115 = vmatprep.subr.bf16.mxu0 0
        %4116 = vmatpush1.bf16.msra.mxu0 %v3892
        %4117 = vmatprep.subr.bf16.mxu0 0
        %4118 = vmatpush1.bf16.msra.mxu0 %v3891
        %4119 = vmatprep.subr.bf16.mxu0 0
        %4120 = vmatpush1.bf16.msra.mxu0 %v3890
        %4121 = vmatprep.subr.bf16.mxu0 0
        %4122 = vmatpush1.bf16.msra.mxu0 %v3889
        %4123 = vmatprep.subr.bf16.mxu0 0
        %4124 = vmatpush1.bf16.msra.mxu0 %v3888
        %4125 = vmatprep.subr.bf16.mxu0 0
        %4126 = vmatpush1.bf16.msra.mxu0 %v3887
        %4127 = vmatprep.subr.bf16.mxu0 0
        %4128 = vmatpush2.bf16.msra.mxu0 %v3902
        %4129 = vmatprep.subr.bf16.mxu0 0
        %4130 = vmatpush2.bf16.msra.mxu0 %v3901
        %4131 = vmatprep.subr.bf16.mxu0 0
        %4132 = vmatpush2.bf16.msra.mxu0 %v3900
        %4133 = vmatprep.subr.bf16.mxu0 0
        %4134 = vmatpush2.bf16.msra.mxu0 %v3899
        %4135 = vmatprep.subr.bf16.mxu0 0
        %4136 = vmatpush2.bf16.msra.mxu0 %v3898
        %4137 = vmatprep.subr.bf16.mxu0 0
        %4138 = vmatpush2.bf16.msra.mxu0 %v3897
        %4139 = vmatprep.subr.bf16.mxu0 0
        %4140 = vmatpush2.bf16.msra.mxu0 %v3896
        %4141 = vmatprep.subr.bf16.mxu0 0
        %4142 = vmatpush2.bf16.msra.mxu0 %v3895
        %4143 = vmatprep.mubr.bf16.mxu0 %v2678
        %4144 = vmatmul.mubr.bf16.gmra.mxu0 %v2677
        %v4145 = vpop.f32.mrf.mxu0
        %v4146 = vadd.f32 %v4098, %v4145
        %v4147 = vpop.f32.mrf.mxu0
        %v4148 = vpop.f32.mrf.mxu0
        %v4149 = vadd.f32 %v4101, %v4148
        %v4150 = vpop.f32.mrf.mxu0
        %4151 = vmatprep.mubr.bf16.mxu0 %v2680
        %4152 = vmatmul.mubr.bf16.gmra.mxu0 %v2679
        %v4153 = vpop.f32.mrf.mxu0
        %v4154 = vadd.f32 %v4106, %v4153
        %v4155 = vpop.f32.mrf.mxu0
        %v4156 = vpop.f32.mrf.mxu0
        %v4157 = vpop.f32.mrf.mxu0
        %4158 = vdwg.mxu0
        %4159 = vmatprep.subr.bf16.mxu0 0
        %4160 = vmatpush1.bf16.msra.mxu0 %v3910
        %4161 = vmatprep.subr.bf16.mxu0 0
        %4162 = vmatpush1.bf16.msra.mxu0 %v3909
        %4163 = vmatprep.subr.bf16.mxu0 0
        %4164 = vmatpush1.bf16.msra.mxu0 %v3908
        %4165 = vmatprep.subr.bf16.mxu0 0
        %4166 = vmatpush1.bf16.msra.mxu0 %v3907
        %4167 = vmatprep.subr.bf16.mxu0 0
        %4168 = vmatpush1.bf16.msra.mxu0 %v3906
        %4169 = vmatprep.subr.bf16.mxu0 0
        %4170 = vmatpush1.bf16.msra.mxu0 %v3905
        %4171 = vmatprep.subr.bf16.mxu0 0
        %4172 = vmatpush1.bf16.msra.mxu0 %v3904
        %4173 = vmatprep.subr.bf16.mxu0 0
        %4174 = vmatpush1.bf16.msra.mxu0 %v3903
        %4175 = vmatprep.subr.bf16.mxu0 0
        %4176 = vmatpush2.bf16.msra.mxu0 %v3918
        %4177 = vmatprep.subr.bf16.mxu0 0
        %4178 = vmatpush2.bf16.msra.mxu0 %v3917
        %4179 = vmatprep.subr.bf16.mxu0 0
        %4180 = vmatpush2.bf16.msra.mxu0 %v3916
        %4181 = vmatprep.subr.bf16.mxu0 0
        %4182 = vmatpush2.bf16.msra.mxu0 %v3915
        %4183 = vmatprep.subr.bf16.mxu0 0
        %4184 = vmatpush2.bf16.msra.mxu0 %v3914
        %4185 = vmatprep.subr.bf16.mxu0 0
        %4186 = vmatpush2.bf16.msra.mxu0 %v3913
        %4187 = vmatprep.subr.bf16.mxu0 0
        %4188 = vmatpush2.bf16.msra.mxu0 %v3912
        %4189 = vmatprep.subr.bf16.mxu0 0
        %4190 = vmatpush2.bf16.msra.mxu0 %v3911
        %4191 = vmatprep.mubr.bf16.mxu0 %v3025
        %4192 = vmatmul.mubr.bf16.gmra.mxu0 %v3024
        %v4193 = vpop.f32.mrf.mxu0
        %v4194 = vadd.f32 %v4146, %v4193
        %v4195 = vpop.f32.mrf.mxu0
        %v4196 = vpop.f32.mrf.mxu0
        %v4197 = vadd.f32 %v4149, %v4196
        %v4198 = vpop.f32.mrf.mxu0
        %4199 = vmatprep.mubr.bf16.mxu0 %v3027
        %4200 = vmatmul.mubr.bf16.gmra.mxu0 %v3026
        %v4201 = vpop.f32.mrf.mxu0
        %v4202 = vadd.f32 %v4154, %v4201
        %v4203 = vpop.f32.mrf.mxu0
        %v4204 = vpop.f32.mrf.mxu0
        %v4205 = vpop.f32.mrf.mxu0
        %4206 = vdwg.mxu0
        %4207 = vmatprep.subr.bf16.mxu0 0
        %4208 = vmatpush1.bf16.msra.mxu0 %v3926
        %4209 = vmatprep.subr.bf16.mxu0 0
        %4210 = vmatpush1.bf16.msra.mxu0 %v3925
        %4211 = vmatprep.subr.bf16.mxu0 0
        %4212 = vmatpush1.bf16.msra.mxu0 %v3924
        %4213 = vmatprep.subr.bf16.mxu0 0
        %4214 = vmatpush1.bf16.msra.mxu0 %v3923
        %4215 = vmatprep.subr.bf16.mxu0 0
        %4216 = vmatpush1.bf16.msra.mxu0 %v3922
        %4217 = vmatprep.subr.bf16.mxu0 0
        %4218 = vmatpush1.bf16.msra.mxu0 %v3921
        %4219 = vmatprep.subr.bf16.mxu0 0
        %4220 = vmatpush1.bf16.msra.mxu0 %v3920
        %4221 = vmatprep.subr.bf16.mxu0 0
        %4222 = vmatpush1.bf16.msra.mxu0 %v3919
        %4223 = vmatprep.subr.bf16.mxu0 0
        %4224 = vmatpush2.bf16.msra.mxu0 %v3934
        %4225 = vmatprep.subr.bf16.mxu0 0
        %4226 = vmatpush2.bf16.msra.mxu0 %v3933
        %4227 = vmatprep.subr.bf16.mxu0 0
        %4228 = vmatpush2.bf16.msra.mxu0 %v3932
        %4229 = vmatprep.subr.bf16.mxu0 0
        %4230 = vmatpush2.bf16.msra.mxu0 %v3931
        %4231 = vmatprep.subr.bf16.mxu0 0
        %4232 = vmatpush2.bf16.msra.mxu0 %v3930
        %4233 = vmatprep.subr.bf16.mxu0 0
        %4234 = vmatpush2.bf16.msra.mxu0 %v3929
        %4235 = vmatprep.subr.bf16.mxu0 0
        %4236 = vmatpush2.bf16.msra.mxu0 %v3928
        %4237 = vmatprep.subr.bf16.mxu0 0
        %4238 = vmatpush2.bf16.msra.mxu0 %v3927
        %4239 = vmatprep.mubr.bf16.mxu0 %v3372
        %4240 = vmatmul.mubr.bf16.gmra.mxu0 %v3371
        %v4241 = vpop.f32.mrf.mxu0
        %v4242 = vadd.f32 %v4194, %v4241
        %v4243 = vpop.f32.mrf.mxu0
        %v4244 = vpop.f32.mrf.mxu0
        %v4245 = vadd.f32 %v4197, %v4244
        %v4246 = vpop.f32.mrf.mxu0
        %4247 = vmatprep.mubr.bf16.mxu0 %v3374
        %4248 = vmatmul.mubr.bf16.gmra.mxu0 %v3373
        %v4249 = vpop.f32.mrf.mxu0
        %v4250 = vadd.f32 %v4202, %v4249
        %v4251 = vpop.f32.mrf.mxu0
        %v4252 = vpop.f32.mrf.mxu0
        %v4253 = vpop.f32.mrf.mxu0
        %4254 = vdwg.mxu0
        %v4255 = vadd.f32 %v3212, %v4242
        %v4256 = vadd.f32 %v3213, %v4245
        %v4257 = vadd.f32 %v3214, %v4250
        %v4258 = vmul.f32 %v4255, 0.2
        %v4259 = vmul.f32 %v4256, 0.2
        %v4260 = vmul.f32 %v4257, 0.2
        %v4261 = vpack.c.bf16 %v4259, %v4258
        %v4262 = vpack.c.bf16 %v4260, %v4260
        %v4263 = vld [vmem:[#allocation11] sm:$0xff]
        %v4264 = vld [vmem:[#allocation11 + $0x8] sm:$0xf]
        %v4265 = vld [vmem:[#allocation11 + $0xc] sm:$0xff]
        %v4266 = vld [vmem:[#allocation11 + $0x14] sm:$0xf]
        %v4267 = vld [vmem:[#allocation11 + $0x18] sm:$0xff]
        %v4268 = vld [vmem:[#allocation11 + $0x20] sm:$0xf]
        %v4269 = vld [vmem:[#allocation11 + $0x24] sm:$0xff]
        %v4270 = vld [vmem:[#allocation11 + $0x2c] sm:$0xf]
        %v4271 = vld [vmem:[#allocation11 + $0x30] sm:$0xff]
        %v4272 = vld [vmem:[#allocation11 + $0x38] sm:$0xf]
        %v4273 = vld [vmem:[#allocation11 + $0x3c] sm:$0xff]
        %v4274 = vld [vmem:[#allocation11 + $0x44] sm:$0xf]
        %v4275 = vld [vmem:[#allocation11 + $0x48] sm:$0xff]
        %v4276 = vld [vmem:[#allocation11 + $0x50] sm:$0xf]
        %v4277 = vld [vmem:[#allocation11 + $0x54] sm:$0xff]
        %v4278 = vld [vmem:[#allocation11 + $0x5c] sm:$0xf]
        %v4279 = vld [vmem:[#allocation11 + $0x60] sm:$0xff]
        %v4280 = vld [vmem:[#allocation11 + $0x68] sm:$0xf]
        %v4281 = vld [vmem:[#allocation11 + $0x6c] sm:$0xff]
        %v4282 = vld [vmem:[#allocation11 + $0x74] sm:$0xf]
        %v4283 = vld [vmem:[#allocation11 + $0x78] sm:$0xff]
        %v4284 = vld [vmem:[#allocation11 + $0x80] sm:$0xf]
        %v4285 = vld [vmem:[#allocation11 + $0x84] sm:$0xff]
        %v4286 = vld [vmem:[#allocation11 + $0x8c] sm:$0xf]
        %v4287 = vld [vmem:[#allocation11 + $0x90] sm:$0xff]
        %v4288 = vld [vmem:[#allocation11 + $0x98] sm:$0xf]
        %v4289 = vld [vmem:[#allocation11 + $0x9c] sm:$0xff]
        %v4290 = vld [vmem:[#allocation11 + $0xa4] sm:$0xf]
        %v4291 = vld [vmem:[#allocation11 + $0xa8] sm:$0xff]
        %v4292 = vld [vmem:[#allocation11 + $0xb0] sm:$0xf]
        %v4293 = vld [vmem:[#allocation11 + $0xb4] sm:$0xff]
        %v4294 = vld [vmem:[#allocation11 + $0xbc] sm:$0xf]
        %v4295 = vld [vmem:[#allocation13] sm:$0xff]
        %v4296 = vld [vmem:[#allocation13 + $0x8] sm:$0xff]
        %v4297 = vld [vmem:[#allocation13 + $0x10] sm:$0xff]
        %v4298 = vld [vmem:[#allocation13 + $0x18] sm:$0xff]
        %v4299 = vld [vmem:[#allocation13 + $0x20] sm:$0xff]
        %v4300 = vld [vmem:[#allocation13 + $0x28] sm:$0xff]
        %v4301 = vld [vmem:[#allocation13 + $0x30] sm:$0xff]
        %v4302 = vld [vmem:[#allocation13 + $0x38] sm:$0xff]
        %v4303 = vld [vmem:[#allocation13 + $0x40] sm:$0xff]
        %v4304 = vld [vmem:[#allocation13 + $0x48] sm:$0xff]
        %v4305 = vld [vmem:[#allocation13 + $0x50] sm:$0xff]
        %v4306 = vld [vmem:[#allocation13 + $0x58] sm:$0xff]
        %v4307 = vld [vmem:[#allocation13 + $0x60] sm:$0xff]
        %v4308 = vld [vmem:[#allocation13 + $0x68] sm:$0xff]
        %v4309 = vld [vmem:[#allocation13 + $0x70] sm:$0xff]
        %v4310 = vld [vmem:[#allocation13 + $0x78] sm:$0xff]
        %v4311 = vld [vmem:[#allocation14] sm:$0xf]
        %v4312 = vld [vmem:[#allocation14 + $0x4] sm:$0xf]
        %v4313 = vld [vmem:[#allocation14 + $0x8] sm:$0xf]
        %v4314 = vld [vmem:[#allocation14 + $0xc] sm:$0xf]
        %v4315 = vld [vmem:[#allocation14 + $0x10] sm:$0xf]
        %v4316 = vld [vmem:[#allocation14 + $0x14] sm:$0xf]
        %v4317 = vld [vmem:[#allocation14 + $0x18] sm:$0xf]
        %v4318 = vld [vmem:[#allocation14 + $0x1c] sm:$0xf]
        %v4319 = vld [vmem:[#allocation14 + $0x20] sm:$0xf]
        %v4320 = vld [vmem:[#allocation14 + $0x24] sm:$0xf]
        %v4321 = vld [vmem:[#allocation14 + $0x28] sm:$0xf]
        %v4322 = vld [vmem:[#allocation14 + $0x2c] sm:$0xf]
        %v4323 = vld [vmem:[#allocation14 + $0x30] sm:$0xf]
        %v4324 = vld [vmem:[#allocation14 + $0x34] sm:$0xf]
        %v4325 = vld [vmem:[#allocation14 + $0x38] sm:$0xf]
        %v4326 = vld [vmem:[#allocation14 + $0x3c] sm:$0xf]
        %v4327 = vld [vmem:[#allocation14 + $0x40] sm:$0xf]
        %v4328 = vld [vmem:[#allocation14 + $0x44] sm:$0xf]
        %v4329 = vld [vmem:[#allocation14 + $0x48] sm:$0xf]
        %v4330 = vld [vmem:[#allocation14 + $0x4c] sm:$0xf]
        %v4331 = vld [vmem:[#allocation14 + $0x50] sm:$0xf]
        %v4332 = vld [vmem:[#allocation14 + $0x54] sm:$0xf]
        %v4333 = vld [vmem:[#allocation14 + $0x58] sm:$0xf]
        %v4334 = vld [vmem:[#allocation14 + $0x5c] sm:$0xf]
        %v4335 = vld [vmem:[#allocation14 + $0x60] sm:$0xf]
        %v4336 = vld [vmem:[#allocation14 + $0x64] sm:$0xf]
        %v4337 = vld [vmem:[#allocation14 + $0x68] sm:$0xf]
        %v4338 = vld [vmem:[#allocation14 + $0x6c] sm:$0xf]
        %v4339 = vld [vmem:[#allocation14 + $0x70] sm:$0xf]
        %v4340 = vld [vmem:[#allocation14 + $0x74] sm:$0xf]
        %v4341 = vld [vmem:[#allocation14 + $0x78] sm:$0xf]
        %v4342 = vld [vmem:[#allocation14 + $0x7c] sm:$0xf]
        %v4375 = vunpack.c.l.b16 %v4263
        %v4376 = vunpack.c.h.b16 %v4263
        %v4377 = vunpack.c.l.b16 %v4264
        %v4378 = vunpack.c.l.b16 %v4265
        %v4379 = vunpack.c.h.b16 %v4265
        %v4380 = vunpack.c.l.b16 %v4266
        %v4381 = vunpack.c.l.b16 %v4267
        %v4382 = vunpack.c.h.b16 %v4267
        %v4383 = vunpack.c.l.b16 %v4268
        %v4384 = vunpack.c.l.b16 %v4269
        %v4385 = vunpack.c.h.b16 %v4269
        %v4386 = vunpack.c.l.b16 %v4270
        %v4387 = vunpack.c.l.b16 %v4271
        %v4388 = vunpack.c.h.b16 %v4271
        %v4389 = vunpack.c.l.b16 %v4272
        %v4390 = vunpack.c.l.b16 %v4273
        %v4391 = vunpack.c.h.b16 %v4273
        %v4392 = vunpack.c.l.b16 %v4274
        %v4393 = vunpack.c.l.b16 %v4275
        %v4394 = vunpack.c.h.b16 %v4275
        %v4395 = vunpack.c.l.b16 %v4276
        %v4396 = vunpack.c.l.b16 %v4277
        %v4397 = vunpack.c.h.b16 %v4277
        %v4398 = vunpack.c.l.b16 %v4278
        %v4399 = vunpack.c.l.b16 %v4279
        %v4400 = vunpack.c.h.b16 %v4279
        %v4401 = vunpack.c.l.b16 %v4280
        %v4402 = vunpack.c.l.b16 %v4281
        %v4403 = vunpack.c.h.b16 %v4281
        %v4404 = vunpack.c.l.b16 %v4282
        %v4405 = vunpack.c.l.b16 %v4283
        %v4406 = vunpack.c.h.b16 %v4283
        %v4407 = vunpack.c.l.b16 %v4284
        %v4408 = vunpack.c.l.b16 %v4285
        %v4409 = vunpack.c.h.b16 %v4285
        %v4410 = vunpack.c.l.b16 %v4286
        %v4411 = vunpack.c.l.b16 %v4287
        %v4412 = vunpack.c.h.b16 %v4287
        %v4413 = vunpack.c.l.b16 %v4288
        %v4414 = vunpack.c.l.b16 %v4289
        %v4415 = vunpack.c.h.b16 %v4289
        %v4416 = vunpack.c.l.b16 %v4290
        %v4417 = vunpack.c.l.b16 %v4291
        %v4418 = vunpack.c.h.b16 %v4291
        %v4419 = vunpack.c.l.b16 %v4292
        %v4420 = vunpack.c.l.b16 %v4293
        %v4421 = vunpack.c.h.b16 %v4293
        %v4422 = vunpack.c.l.b16 %v4294
        %v4423 = vpack.c.b16 %v4378, %v4375
        %v4424 = vpack.c.b16 %v4379, %v4376
        %v4425 = vpack.c.b16 %v4380, %v4377
        %v4426 = vpack.c.b16 %v4384, %v4381
        %v4427 = vpack.c.b16 %v4385, %v4382
        %v4428 = vpack.c.b16 %v4386, %v4383
        %v4429 = vpack.c.b16 %v4390, %v4387
        %v4430 = vpack.c.b16 %v4391, %v4388
        %v4431 = vpack.c.b16 %v4392, %v4389
        %v4432 = vpack.c.b16 %v4396, %v4393
        %v4433 = vpack.c.b16 %v4397, %v4394
        %v4434 = vpack.c.b16 %v4398, %v4395
        %v4435 = vpack.c.b16 %v4402, %v4399
        %v4436 = vpack.c.b16 %v4403, %v4400
        %v4437 = vpack.c.b16 %v4404, %v4401
        %v4438 = vpack.c.b16 %v4408, %v4405
        %v4439 = vpack.c.b16 %v4409, %v4406
        %v4440 = vpack.c.b16 %v4410, %v4407
        %v4441 = vpack.c.b16 %v4414, %v4411
        %v4442 = vpack.c.b16 %v4415, %v4412
        %v4443 = vpack.c.b16 %v4416, %v4413
        %v4444 = vpack.c.b16 %v4420, %v4417
        %v4445 = vpack.c.b16 %v4421, %v4418
        %v4446 = vpack.c.b16 %v4422, %v4419
        %4471 = vmatprep.subr.bf16.mxu0 %v4445
        %4472 = vmatpush1.bf16.msra.mxu0 %v4444
        %4473 = vmatprep.subr.bf16.mxu0 %v4442
        %4474 = vmatpush1.bf16.msra.mxu0 %v4441
        %4475 = vmatprep.subr.bf16.mxu0 %v4439
        %4476 = vmatpush1.bf16.msra.mxu0 %v4438
        %4477 = vmatprep.subr.bf16.mxu0 %v4436
        %4478 = vmatpush1.bf16.msra.mxu0 %v4435
        %4479 = vmatprep.subr.bf16.mxu0 %v4433
        %4480 = vmatpush1.bf16.msra.mxu0 %v4432
        %4481 = vmatprep.subr.bf16.mxu0 %v4430
        %4482 = vmatpush1.bf16.msra.mxu0 %v4429
        %4483 = vmatprep.subr.bf16.mxu0 %v4427
        %4484 = vmatpush1.bf16.msra.mxu0 %v4426
        %4485 = vmatprep.subr.bf16.mxu0 %v4424
        %4486 = vmatpush1.bf16.msra.mxu0 %v4423
        %4487 = vmatprep.subr.bf16.mxu0 0
        %4488 = vmatpush2.bf16.msra.mxu0 0
        %4489 = vmatprep.subr.bf16.mxu0 0
        %4490 = vmatpush2.bf16.msra.mxu0 0
        %4491 = vmatprep.subr.bf16.mxu0 0
        %4492 = vmatpush2.bf16.msra.mxu0 0
        %4493 = vmatprep.subr.bf16.mxu0 0
        %4494 = vmatpush2.bf16.msra.mxu0 0
        %4495 = vmatprep.subr.bf16.mxu0 0
        %4496 = vmatpush2.bf16.msra.mxu0 0
        %4497 = vmatprep.subr.bf16.mxu0 0
        %4498 = vmatpush2.bf16.msra.mxu0 0
        %4499 = vmatprep.subr.bf16.mxu0 0
        %4500 = vmatpush2.bf16.msra.mxu0 0
        %4501 = vmatprep.subr.bf16.mxu0 0
        %4502 = vmatpush2.bf16.msra.mxu0 0
        %4503 = vmatprep.mubr.bf16.mxu0 0
        %4504 = vmatmul.mubr.bf16.gmra.mxu0 %v4261
        %v4505 = vpop.f32.mrf.mxu0
        %v4506 = vadd.f32 0.0, %v4505
        %v4507 = vpop.f32.mrf.mxu0
        %v4508 = vadd.f32 0.0, %v4507
        %v4509 = vpop.f32.mrf.mxu0
        %v4510 = vadd.f32 0.0, %v4509
        %v4511 = vpop.f32.mrf.mxu0
        %v4512 = vadd.f32 0.0, %v4511
        %4513 = vmatprep.mubr.bf16.mxu0 0
        %4514 = vmatmul.mubr.bf16.gmra.mxu0 %v4262
        %v4515 = vpop.f32.mrf.mxu0
        %v4516 = vadd.f32 0.0, %v4515
        %v4517 = vpop.f32.mrf.mxu0
        %v4518 = vadd.f32 0.0, %v4517
        %v4519 = vpop.f32.mrf.mxu0
        %v4520 = vpop.f32.mrf.mxu0
        %4521 = vdwg.mxu0
        %4522 = vmatprep.subr.bf16.mxu0 0
        %4523 = vmatpush1.bf16.msra.mxu0 %v4446
        %4524 = vmatprep.subr.bf16.mxu0 0
        %4525 = vmatpush1.bf16.msra.mxu0 %v4443
        %4526 = vmatprep.subr.bf16.mxu0 0
        %4527 = vmatpush1.bf16.msra.mxu0 %v4440
        %4528 = vmatprep.subr.bf16.mxu0 0
        %4529 = vmatpush1.bf16.msra.mxu0 %v4437
        %4530 = vmatprep.subr.bf16.mxu0 0
        %4531 = vmatpush1.bf16.msra.mxu0 %v4434
        %4532 = vmatprep.subr.bf16.mxu0 0
        %4533 = vmatpush1.bf16.msra.mxu0 %v4431
        %4534 = vmatprep.subr.bf16.mxu0 0
        %4535 = vmatpush1.bf16.msra.mxu0 %v4428
        %4536 = vmatprep.subr.bf16.mxu0 0
        %4537 = vmatpush1.bf16.msra.mxu0 %v4425
        %4538 = vmatprep.subr.bf16.mxu0 0
        %4539 = vmatpush2.bf16.msra.mxu0 0
        %4540 = vmatprep.subr.bf16.mxu0 0
        %4541 = vmatpush2.bf16.msra.mxu0 0
        %4542 = vmatprep.subr.bf16.mxu0 0
        %4543 = vmatpush2.bf16.msra.mxu0 0
        %4544 = vmatprep.subr.bf16.mxu0 0
        %4545 = vmatpush2.bf16.msra.mxu0 0
        %4546 = vmatprep.subr.bf16.mxu0 0
        %4547 = vmatpush2.bf16.msra.mxu0 0
        %4548 = vmatprep.subr.bf16.mxu0 0
        %4549 = vmatpush2.bf16.msra.mxu0 0
        %4550 = vmatprep.subr.bf16.mxu0 0
        %4551 = vmatpush2.bf16.msra.mxu0 0
        %4552 = vmatprep.subr.bf16.mxu0 0
        %4553 = vmatpush2.bf16.msra.mxu0 0
        %4554 = vmatprep.mubr.bf16.mxu0 0
        %4555 = vmatmul.mubr.bf16.gmra.mxu0 %v4261
        %v4556 = vpop.f32.mrf.mxu0
        %v4557 = vadd.f32 0.0, %v4556
        %v4558 = vpop.f32.mrf.mxu0
        %v4559 = vpop.f32.mrf.mxu0
        %v4560 = vadd.f32 0.0, %v4559
        %v4561 = vpop.f32.mrf.mxu0
        %4562 = vmatprep.mubr.bf16.mxu0 0
        %4563 = vmatmul.mubr.bf16.gmra.mxu0 %v4262
        %v4564 = vpop.f32.mrf.mxu0
        %v4565 = vadd.f32 0.0, %v4564
        %v4566 = vpop.f32.mrf.mxu0
        %v4567 = vpop.f32.mrf.mxu0
        %v4568 = vpop.f32.mrf.mxu0
        %4569 = vdwg.mxu0
        %v4570 = vpack.c.bf16 %v4510, %v4506
        %v4571 = vpack.c.bf16 %v4516, %v4516
        %4572 = vxpose.xlu0.b32.start [1/16] %v4508, 128
        %4573 = vxpose.xlu0.b32.cont [2/16] %v4512, 128
        %4574 = vxpose.xlu0.b32.cont [3/16] %v4518, 128
        %4575 = vxpose.xlu0.b32.cont [4/16] 0.0, 128
        %4576 = vxpose.xlu0.b32.cont [5/16] 0.0, 128
        %4577 = vxpose.xlu0.b32.cont [6/16] 0.0, 128
        %4578 = vxpose.xlu0.b32.cont [7/16] 0.0, 128
        %4579 = vxpose.xlu0.b32.cont [8/16] 0.0, 128
        %4580 = vxpose.xlu0.b32.cont [9/16] 0.0, 128
        %4581 = vxpose.xlu0.b32.cont [10/16] 0.0, 128
        %4582 = vxpose.xlu0.b32.cont [11/16] 0.0, 128
        %4583 = vxpose.xlu0.b32.cont [12/16] 0.0, 128
        %4584 = vxpose.xlu0.b32.cont [13/16] 0.0, 128
        %4585 = vxpose.xlu0.b32.cont [14/16] 0.0, 128
        %4586 = vxpose.xlu0.b32.cont [15/16] 0.0, 128
        %4587 = vxpose.xlu0.b32.end [16/16] 0.0, 128
        %v4588 = vpop.trf.xlu0
        %v4589 = vpop.trf.xlu0
        %v4590 = vpop.trf.xlu0
        %v4591 = vpop.trf.xlu0
        %v4592 = vpop.trf.xlu0
        %v4593 = vpop.trf.xlu0
        %v4594 = vpop.trf.xlu0
        %v4595 = vpop.trf.xlu0
        %v4596 = vpop.trf.xlu0
        %v4597 = vpop.trf.xlu0
        %v4598 = vpop.trf.xlu0
        %v4599 = vpop.trf.xlu0
        %v4600 = vpop.trf.xlu0
        %v4601 = vpop.trf.xlu0
        %v4602 = vpop.trf.xlu0
        %v4603 = vpop.trf.xlu0
        %v4604 = vpack.c.bf16 %v4589, %v4588
        %v4605 = vpack.c.bf16 %v4591, %v4590
        %v4606 = vpack.c.bf16 %v4593, %v4592
        %v4607 = vpack.c.bf16 %v4595, %v4594
        %v4608 = vpack.c.bf16 %v4597, %v4596
        %v4609 = vpack.c.bf16 %v4599, %v4598
        %v4610 = vpack.c.bf16 %v4601, %v4600
        %v4611 = vpack.c.bf16 %v4603, %v4602
        %4612 = vmatprep.subr.bf16.mxu0 0
        %4613 = vmatpush1.bf16.msra.mxu0 %v4611
        %4614 = vmatprep.subr.bf16.mxu0 0
        %4615 = vmatpush1.bf16.msra.mxu0 %v4610
        %4616 = vmatprep.subr.bf16.mxu0 0
        %4617 = vmatpush1.bf16.msra.mxu0 %v4609
        %4618 = vmatprep.subr.bf16.mxu0 0
        %4619 = vmatpush1.bf16.msra.mxu0 %v4608
        %4620 = vmatprep.subr.bf16.mxu0 0
        %4621 = vmatpush1.bf16.msra.mxu0 %v4607
        %4622 = vmatprep.subr.bf16.mxu0 0
        %4623 = vmatpush1.bf16.msra.mxu0 %v4606
        %4624 = vmatprep.subr.bf16.mxu0 0
        %4625 = vmatpush1.bf16.msra.mxu0 %v4605
        %4626 = vmatprep.subr.bf16.mxu0 0
        %4627 = vmatpush1.bf16.msra.mxu0 %v4604
        %4628 = vmatprep.subr.bf16.mxu0 0
        %4629 = vmatpush2.bf16.msra.mxu0 0
        %4630 = vmatprep.subr.bf16.mxu0 0
        %4631 = vmatpush2.bf16.msra.mxu0 0
        %4632 = vmatprep.subr.bf16.mxu0 0
        %4633 = vmatpush2.bf16.msra.mxu0 0
        %4634 = vmatprep.subr.bf16.mxu0 0
        %4635 = vmatpush2.bf16.msra.mxu0 0
        %4636 = vmatprep.subr.bf16.mxu0 0
        %4637 = vmatpush2.bf16.msra.mxu0 0
        %4638 = vmatprep.subr.bf16.mxu0 0
        %4639 = vmatpush2.bf16.msra.mxu0 0
        %4640 = vmatprep.subr.bf16.mxu0 0
        %4641 = vmatpush2.bf16.msra.mxu0 0
        %4642 = vmatprep.subr.bf16.mxu0 0
        %4643 = vmatpush2.bf16.msra.mxu0 0
        %4644 = vmatprep.mubr.bf16.mxu0 0
        %4645 = vmatmul.mubr.bf16.gmra.mxu0 %v4570
        %v4646 = vpop.f32.mrf.mxu0
        %v4647 = vadd.f32 %v495, %v4646
        %v4648 = vpop.f32.mrf.mxu0
        %v4649 = vpop.f32.mrf.mxu0
        %v4650 = vadd.f32 %v496, %v4649
        %v4651 = vpop.f32.mrf.mxu0
        %4652 = vmatprep.mubr.bf16.mxu0 0
        %4653 = vmatmul.mubr.bf16.gmra.mxu0 %v4571
        %v4654 = vpop.f32.mrf.mxu0
        %v4655 = vadd.f32 %v497, %v4654
        %v4656 = vpop.f32.mrf.mxu0
        %v4657 = vpop.f32.mrf.mxu0
        %v4658 = vpop.f32.mrf.mxu0
        %4659 = vdwg.mxu0
        %v4660 = vsel %vm1729, %v4647, -inf
        %4661 = vmax.xlane.f32.xlu0 %v4660
        %v4662 = vpop.xlane.xlu0 %4661
        %v4663 = vsel %vm1729, %v4650, -inf
        %4664 = vmax.xlane.f32.xlu0 %v4663
        %v4665 = vpop.xlane.xlu0 %4664
        %v4666 = vsel %vm1729, %v4655, -inf
        %4667 = vmax.xlane.f32.xlu0 %v4666
        %v4668 = vpop.xlane.xlu0 %4667
        %v4669 = vsub.f32 %v4647, %v4662
        %v4670 = vsub.f32 %v4650, %v4665
        %v4671 = vsub.f32 %v4655, %v4668
        %v4672 = vmul.f32 %v4669, 1.442695
        %v4673 = vpow.pop %v4672
        %v4674 = vmul.f32 %v4670, 1.442695
        %v4675 = vpow.pop %v4674
        %v4676 = vmul.f32 %v4671, 1.442695
        %v4677 = vpow.pop %v4676
        %v4678 = vsel %vm1729, %v4673, 0.0
        %4679 = vadd.xlane.f32.xlu0 %v4678
        %v4680 = vpop.xlane.xlu0 %4679
        %v4681 = vsel %vm1729, %v4675, 0.0
        %4682 = vadd.xlane.f32.xlu0 %v4681
        %v4683 = vpop.xlane.xlu0 %4682
        %v4684 = vsel %vm1729, %v4677, 0.0
        %4685 = vadd.xlane.f32.xlu0 %v4684
        %v4686 = vpop.xlane.xlu0 %4685
        %v4687 = vrcp.pop %v4680
        %v4688 = vrcp.pop %v4683
        %v4689 = vrcp.pop %v4686
        %v4690 = vmul.f32 %v4673, %v4687
        %v4691 = vmul.f32 %v4675, %v4688
        %v4692 = vmul.f32 %v4677, %v4689
        %v4693 = vpack.c.bf16 %v4691, %v4690
        %v4694 = vpack.c.bf16 %v4692, %v4692
        %v4695 = vpack.c.bf16 %v4560, %v4557
        %v4696 = vpack.c.bf16 %v4565, %v4565
        %v4698 = vsel %vm1729, %v4693, 0
        %v4701 = vsel %vm1729, %v4694, 0
        %v4704 = vsel %vm1773, %v4696, 0
        %4706 = vmatprep.subr.bf16.mxu0 0
        %4707 = vmatpush1.bf16.msra.mxu0 0
        %4708 = vmatprep.subr.bf16.mxu0 0
        %4709 = vmatpush1.bf16.msra.mxu0 0
        %4710 = vmatprep.subr.bf16.mxu0 0
        %4711 = vmatpush1.bf16.msra.mxu0 0
        %4712 = vmatprep.subr.bf16.mxu0 0
        %4713 = vmatpush1.bf16.msra.mxu0 0
        %4714 = vmatprep.subr.bf16.mxu0 0
        %4715 = vmatpush1.bf16.msra.mxu0 0
        %4716 = vmatprep.subr.bf16.mxu0 0
        %4717 = vmatpush1.bf16.msra.mxu0 0
        %4718 = vmatprep.subr.bf16.mxu0 0
        %4719 = vmatpush1.bf16.msra.mxu0 %v4704
        %4720 = vmatprep.subr.bf16.mxu0 0
        %4721 = vmatpush1.bf16.msra.mxu0 %v4695
        %4722 = vmatprep.subr.bf16.mxu0 0
        %4723 = vmatpush2.bf16.msra.mxu0 0
        %4724 = vmatprep.subr.bf16.mxu0 0
        %4725 = vmatpush2.bf16.msra.mxu0 0
        %4726 = vmatprep.subr.bf16.mxu0 0
        %4727 = vmatpush2.bf16.msra.mxu0 0
        %4728 = vmatprep.subr.bf16.mxu0 0
        %4729 = vmatpush2.bf16.msra.mxu0 0
        %4730 = vmatprep.subr.bf16.mxu0 0
        %4731 = vmatpush2.bf16.msra.mxu0 0
        %4732 = vmatprep.subr.bf16.mxu0 0
        %4733 = vmatpush2.bf16.msra.mxu0 0
        %4734 = vmatprep.subr.bf16.mxu0 0
        %4735 = vmatpush2.bf16.msra.mxu0 0
        %4736 = vmatprep.subr.bf16.mxu0 0
        %4737 = vmatpush2.bf16.msra.mxu0 0
        %4738 = vmatprep.mubr.bf16.mxu0 0
        %4739 = vmatmul.mubr.bf16.gmra.mxu0 %v4698
        %v4740 = vpop.f32.mrf.mxu0
        %v4741 = vadd.f32 0.0, %v4740
        %v4742 = vpop.f32.mrf.mxu0
        %v4743 = vpop.f32.mrf.mxu0
        %v4744 = vadd.f32 0.0, %v4743
        %v4745 = vpop.f32.mrf.mxu0
        %4746 = vmatprep.mubr.bf16.mxu0 0
        %4747 = vmatmul.mubr.bf16.gmra.mxu0 %v4701
        %v4748 = vpop.f32.mrf.mxu0
        %v4749 = vadd.f32 0.0, %v4748
        %v4750 = vpop.f32.mrf.mxu0
        %v4751 = vpop.f32.mrf.mxu0
        %v4752 = vpop.f32.mrf.mxu0
        %4753 = vdwg.mxu0
        %v4754 = vpack.c.bf16 %v4744, %v4741
        %v4755 = vpack.c.bf16 %v4749, %v4749
        %v4772 = vunpack.c.l.b16 %v4295
        %v4773 = vunpack.c.h.b16 %v4295
        %v4774 = vunpack.c.l.b16 %v4296
        %v4775 = vunpack.c.h.b16 %v4296
        %v4776 = vunpack.c.l.b16 %v4297
        %v4777 = vunpack.c.h.b16 %v4297
        %v4778 = vunpack.c.l.b16 %v4298
        %v4779 = vunpack.c.h.b16 %v4298
        %v4780 = vunpack.c.l.b16 %v4299
        %v4781 = vunpack.c.h.b16 %v4299
        %v4782 = vunpack.c.l.b16 %v4300
        %v4783 = vunpack.c.h.b16 %v4300
        %v4784 = vunpack.c.l.b16 %v4301
        %v4785 = vunpack.c.h.b16 %v4301
        %v4786 = vunpack.c.l.b16 %v4302
        %v4787 = vunpack.c.h.b16 %v4302
        %v4788 = vunpack.c.l.b16 %v4303
        %v4789 = vunpack.c.h.b16 %v4303
        %v4790 = vunpack.c.l.b16 %v4304
        %v4791 = vunpack.c.h.b16 %v4304
        %v4792 = vunpack.c.l.b16 %v4305
        %v4793 = vunpack.c.h.b16 %v4305
        %v4794 = vunpack.c.l.b16 %v4306
        %v4795 = vunpack.c.h.b16 %v4306
        %v4796 = vunpack.c.l.b16 %v4307
        %v4797 = vunpack.c.h.b16 %v4307
        %v4798 = vunpack.c.l.b16 %v4308
        %v4799 = vunpack.c.h.b16 %v4308
        %v4800 = vunpack.c.l.b16 %v4309
        %v4801 = vunpack.c.h.b16 %v4309
        %v4802 = vunpack.c.l.b16 %v4310
        %v4803 = vunpack.c.h.b16 %v4310
        %v4804 = vpack.c.b16 %v4774, %v4772
        %v4805 = vpack.c.b16 %v4775, %v4773
        %v4806 = vpack.c.b16 %v4778, %v4776
        %v4807 = vpack.c.b16 %v4779, %v4777
        %v4808 = vpack.c.b16 %v4782, %v4780
        %v4809 = vpack.c.b16 %v4783, %v4781
        %v4810 = vpack.c.b16 %v4786, %v4784
        %v4811 = vpack.c.b16 %v4787, %v4785
        %v4812 = vpack.c.b16 %v4790, %v4788
        %v4813 = vpack.c.b16 %v4791, %v4789
        %v4814 = vpack.c.b16 %v4794, %v4792
        %v4815 = vpack.c.b16 %v4795, %v4793
        %v4816 = vpack.c.b16 %v4798, %v4796
        %v4817 = vpack.c.b16 %v4799, %v4797
        %v4818 = vpack.c.b16 %v4802, %v4800
        %v4819 = vpack.c.b16 %v4803, %v4801
        %4836 = vmatprep.subr.bf16.mxu0 %v4819
        %4837 = vmatpush1.bf16.msra.mxu0 %v4818
        %4838 = vmatprep.subr.bf16.mxu0 %v4817
        %4839 = vmatpush1.bf16.msra.mxu0 %v4816
        %4840 = vmatprep.subr.bf16.mxu0 %v4815
        %4841 = vmatpush1.bf16.msra.mxu0 %v4814
        %4842 = vmatprep.subr.bf16.mxu0 %v4813
        %4843 = vmatpush1.bf16.msra.mxu0 %v4812
        %4844 = vmatprep.subr.bf16.mxu0 %v4811
        %4845 = vmatpush1.bf16.msra.mxu0 %v4810
        %4846 = vmatprep.subr.bf16.mxu0 %v4809
        %4847 = vmatpush1.bf16.msra.mxu0 %v4808
        %4848 = vmatprep.subr.bf16.mxu0 %v4807
        %4849 = vmatpush1.bf16.msra.mxu0 %v4806
        %4850 = vmatprep.subr.bf16.mxu0 %v4805
        %4851 = vmatpush1.bf16.msra.mxu0 %v4804
        %4852 = vmatprep.subr.bf16.mxu0 0
        %4853 = vmatpush2.bf16.msra.mxu0 0
        %4854 = vmatprep.subr.bf16.mxu0 0
        %4855 = vmatpush2.bf16.msra.mxu0 0
        %4856 = vmatprep.subr.bf16.mxu0 0
        %4857 = vmatpush2.bf16.msra.mxu0 0
        %4858 = vmatprep.subr.bf16.mxu0 0
        %4859 = vmatpush2.bf16.msra.mxu0 0
        %4860 = vmatprep.subr.bf16.mxu0 0
        %4861 = vmatpush2.bf16.msra.mxu0 0
        %4862 = vmatprep.subr.bf16.mxu0 0
        %4863 = vmatpush2.bf16.msra.mxu0 0
        %4864 = vmatprep.subr.bf16.mxu0 0
        %4865 = vmatpush2.bf16.msra.mxu0 0
        %4866 = vmatprep.subr.bf16.mxu0 0
        %4867 = vmatpush2.bf16.msra.mxu0 0
        %4868 = vmatprep.mubr.bf16.mxu0 0
        %4869 = vmatmul.mubr.bf16.gmra.mxu0 %v4754
        %v4870 = vpop.f32.mrf.mxu0
        %v4871 = vadd.f32 0.0, %v4870
        %v4872 = vpop.f32.mrf.mxu0
        %v4873 = vadd.f32 0.0, %v4872
        %v4874 = vpop.f32.mrf.mxu0
        %v4875 = vadd.f32 0.0, %v4874
        %v4876 = vpop.f32.mrf.mxu0
        %v4877 = vadd.f32 0.0, %v4876
        %4878 = vmatprep.mubr.bf16.mxu0 0
        %4879 = vmatmul.mubr.bf16.gmra.mxu0 %v4755
        %v4880 = vpop.f32.mrf.mxu0
        %v4881 = vadd.f32 0.0, %v4880
        %v4882 = vpop.f32.mrf.mxu0
        %v4883 = vadd.f32 0.0, %v4882
        %v4884 = vpop.f32.mrf.mxu0
        %v4885 = vpop.f32.mrf.mxu0
        %4886 = vdwg.mxu0
        %v4887 = vmax.f32 %v4871, 0.0
        %v4888 = vmax.f32 %v4873, 0.0
        %v4889 = vmax.f32 %v4875, 0.0
        %v4890 = vmax.f32 %v4877, 0.0
        %v4891 = vmax.f32 %v4881, 0.0
        %v4892 = vmax.f32 %v4883, 0.0
        %v4893 = vpack.c.bf16 %v4889, %v4887
        %v4894 = vpack.c.bf16 %v4890, %v4888
        %v4895 = vpack.c.bf16 %v4891, %v4891
        %v4896 = vpack.c.bf16 %v4892, %v4892
        %v4929 = vunpack.c.l.b16 %v4311
        %v4930 = vunpack.c.l.b16 %v4312
        %v4931 = vunpack.c.l.b16 %v4313
        %v4932 = vunpack.c.l.b16 %v4314
        %v4933 = vunpack.c.l.b16 %v4315
        %v4934 = vunpack.c.l.b16 %v4316
        %v4935 = vunpack.c.l.b16 %v4317
        %v4936 = vunpack.c.l.b16 %v4318
        %v4937 = vunpack.c.l.b16 %v4319
        %v4938 = vunpack.c.l.b16 %v4320
        %v4939 = vunpack.c.l.b16 %v4321
        %v4940 = vunpack.c.l.b16 %v4322
        %v4941 = vunpack.c.l.b16 %v4323
        %v4942 = vunpack.c.l.b16 %v4324
        %v4943 = vunpack.c.l.b16 %v4325
        %v4944 = vunpack.c.l.b16 %v4326
        %v4945 = vunpack.c.l.b16 %v4327
        %v4946 = vunpack.c.l.b16 %v4328
        %v4947 = vunpack.c.l.b16 %v4329
        %v4948 = vunpack.c.l.b16 %v4330
        %v4949 = vunpack.c.l.b16 %v4331
        %v4950 = vunpack.c.l.b16 %v4332
        %v4951 = vunpack.c.l.b16 %v4333
        %v4952 = vunpack.c.l.b16 %v4334
        %v4953 = vunpack.c.l.b16 %v4335
        %v4954 = vunpack.c.l.b16 %v4336
        %v4955 = vunpack.c.l.b16 %v4337
        %v4956 = vunpack.c.l.b16 %v4338
        %v4957 = vunpack.c.l.b16 %v4339
        %v4958 = vunpack.c.l.b16 %v4340
        %v4959 = vunpack.c.l.b16 %v4341
        %v4960 = vunpack.c.l.b16 %v4342
        %v4961 = vpack.c.b16 %v4930, %v4929
        %v4962 = vpack.c.b16 %v4932, %v4931
        %v4963 = vpack.c.b16 %v4934, %v4933
        %v4964 = vpack.c.b16 %v4936, %v4935
        %v4965 = vpack.c.b16 %v4938, %v4937
        %v4966 = vpack.c.b16 %v4940, %v4939
        %v4967 = vpack.c.b16 %v4942, %v4941
        %v4968 = vpack.c.b16 %v4944, %v4943
        %v4969 = vpack.c.b16 %v4946, %v4945
        %v4970 = vpack.c.b16 %v4948, %v4947
        %v4971 = vpack.c.b16 %v4950, %v4949
        %v4972 = vpack.c.b16 %v4952, %v4951
        %v4973 = vpack.c.b16 %v4954, %v4953
        %v4974 = vpack.c.b16 %v4956, %v4955
        %v4975 = vpack.c.b16 %v4958, %v4957
        %v4976 = vpack.c.b16 %v4960, %v4959
        %4993 = vmatprep.subr.bf16.mxu0 0
        %4994 = vmatpush1.bf16.msra.mxu0 %v4968
        %4995 = vmatprep.subr.bf16.mxu0 0
        %4996 = vmatpush1.bf16.msra.mxu0 %v4967
        %4997 = vmatprep.subr.bf16.mxu0 0
        %4998 = vmatpush1.bf16.msra.mxu0 %v4966
        %4999 = vmatprep.subr.bf16.mxu0 0
        %5000 = vmatpush1.bf16.msra.mxu0 %v4965
        %5001 = vmatprep.subr.bf16.mxu0 0
        %5002 = vmatpush1.bf16.msra.mxu0 %v4964
        %5003 = vmatprep.subr.bf16.mxu0 0
        %5004 = vmatpush1.bf16.msra.mxu0 %v4963
        %5005 = vmatprep.subr.bf16.mxu0 0
        %5006 = vmatpush1.bf16.msra.mxu0 %v4962
        %5007 = vmatprep.subr.bf16.mxu0 0
        %5008 = vmatpush1.bf16.msra.mxu0 %v4961
        %5009 = vmatprep.subr.bf16.mxu0 0
        %5010 = vmatpush2.bf16.msra.mxu0 %v4976
        %5011 = vmatprep.subr.bf16.mxu0 0
        %5012 = vmatpush2.bf16.msra.mxu0 %v4975
        %5013 = vmatprep.subr.bf16.mxu0 0
        %5014 = vmatpush2.bf16.msra.mxu0 %v4974
        %5015 = vmatprep.subr.bf16.mxu0 0
        %5016 = vmatpush2.bf16.msra.mxu0 %v4973
        %5017 = vmatprep.subr.bf16.mxu0 0
        %5018 = vmatpush2.bf16.msra.mxu0 %v4972
        %5019 = vmatprep.subr.bf16.mxu0 0
        %5020 = vmatpush2.bf16.msra.mxu0 %v4971
        %5021 = vmatprep.subr.bf16.mxu0 0
        %5022 = vmatpush2.bf16.msra.mxu0 %v4970
        %5023 = vmatprep.subr.bf16.mxu0 0
        %5024 = vmatpush2.bf16.msra.mxu0 %v4969
        %5025 = vmatprep.mubr.bf16.mxu0 %v4894
        %5026 = vmatmul.mubr.bf16.gmra.mxu0 %v4893
        %v5027 = vpop.f32.mrf.mxu0
        %v5028 = vadd.f32 %v4741, %v5027
        %v5029 = vpop.f32.mrf.mxu0
        %v5030 = vpop.f32.mrf.mxu0
        %v5031 = vadd.f32 %v4744, %v5030
        %v5032 = vpop.f32.mrf.mxu0
        %5033 = vmatprep.mubr.bf16.mxu0 %v4896
        %5034 = vmatmul.mubr.bf16.gmra.mxu0 %v4895
        %v5035 = vpop.f32.mrf.mxu0
        %v5036 = vadd.f32 %v4749, %v5035
        %v5037 = vpop.f32.mrf.mxu0
        %v5038 = vpop.f32.mrf.mxu0
        %v5039 = vpop.f32.mrf.mxu0
        %5040 = vdwg.mxu0
        %5041 = vst [vmem:[%s481] sm:$0xff] %v4258
        %5042 = vst [vmem:[%s481 + $0x8] sm:$0xff] %v5028
        %5043 = vst [vmem:[%s481 + $0x10] sm:$0xff] %v4259
        %5044 = vst [vmem:[%s481 + $0x18] sm:$0xff] %v5031
        %5045 = vst [vmem:[%s481 + $0x20] sm:$0xff] %v4260
        %5046 = vst [vmem:[%s481 + $0x28] sm:$0xff] %v5036
        %v5047 = vpack.c.bf16 %v5031, %v5028
        %v5048 = vpack.c.bf16 %v5036, %v5036
        %5049 = vxpose.xlu0.b32.start [1/16] %v5031, 128
        %5050 = vxpose.xlu0.b32.cont [2/16] %v5036, 128
        %5051 = vxpose.xlu0.b32.cont [3/16] 0.0, 128
        %5052 = vxpose.xlu0.b32.cont [4/16] 0.0, 128
        %5053 = vxpose.xlu0.b32.cont [5/16] 0.0, 128
        %5054 = vxpose.xlu0.b32.cont [6/16] 0.0, 128
        %5055 = vxpose.xlu0.b32.cont [7/16] 0.0, 128
        %5056 = vxpose.xlu0.b32.cont [8/16] 0.0, 128
        %5057 = vxpose.xlu0.b32.cont [9/16] 0.0, 128
        %5058 = vxpose.xlu0.b32.cont [10/16] 0.0, 128
        %5059 = vxpose.xlu0.b32.cont [11/16] 0.0, 128
        %5060 = vxpose.xlu0.b32.cont [12/16] 0.0, 128
        %5061 = vxpose.xlu0.b32.cont [13/16] 0.0, 128
        %5062 = vxpose.xlu0.b32.cont [14/16] 0.0, 128
        %5063 = vxpose.xlu0.b32.cont [15/16] 0.0, 128
        %5064 = vxpose.xlu0.b32.end [16/16] 0.0, 128
        %v5065 = vpop.trf.xlu0
        %v5066 = vpop.trf.xlu0
        %v5067 = vpop.trf.xlu0
        %v5068 = vpop.trf.xlu0
        %v5069 = vpop.trf.xlu0
        %v5070 = vpop.trf.xlu0
        %v5071 = vpop.trf.xlu0
        %v5072 = vpop.trf.xlu0
        %v5073 = vpop.trf.xlu0
        %v5074 = vpop.trf.xlu0
        %v5075 = vpop.trf.xlu0
        %v5076 = vpop.trf.xlu0
        %v5077 = vpop.trf.xlu0
        %v5078 = vpop.trf.xlu0
        %v5079 = vpop.trf.xlu0
        %v5080 = vpop.trf.xlu0
        %v5081 = vpack.c.bf16 %v5066, %v5065
        %v5082 = vpack.c.bf16 %v5068, %v5067
        %v5083 = vpack.c.bf16 %v5070, %v5069
        %v5084 = vpack.c.bf16 %v5072, %v5071
        %v5085 = vpack.c.bf16 %v5074, %v5073
        %v5086 = vpack.c.bf16 %v5076, %v5075
        %v5087 = vpack.c.bf16 %v5078, %v5077
        %v5088 = vpack.c.bf16 %v5080, %v5079
        %5089 = vmatprep.subr.bf16.mxu0 0
        %5090 = vmatpush1.bf16.msra.mxu0 %v5088
        %5091 = vmatprep.subr.bf16.mxu0 0
        %5092 = vmatpush1.bf16.msra.mxu0 %v5087
        %5093 = vmatprep.subr.bf16.mxu0 0
        %5094 = vmatpush1.bf16.msra.mxu0 %v5086
        %5095 = vmatprep.subr.bf16.mxu0 0
        %5096 = vmatpush1.bf16.msra.mxu0 %v5085
        %5097 = vmatprep.subr.bf16.mxu0 0
        %5098 = vmatpush1.bf16.msra.mxu0 %v5084
        %5099 = vmatprep.subr.bf16.mxu0 0
        %5100 = vmatpush1.bf16.msra.mxu0 %v5083
        %5101 = vmatprep.subr.bf16.mxu0 0
        %5102 = vmatpush1.bf16.msra.mxu0 %v5082
        %5103 = vmatprep.subr.bf16.mxu0 0
        %5104 = vmatpush1.bf16.msra.mxu0 %v5081
        %5105 = vmatprep.subr.bf16.mxu0 0
        %5106 = vmatpush2.bf16.msra.mxu0 0
        %5107 = vmatprep.subr.bf16.mxu0 0
        %5108 = vmatpush2.bf16.msra.mxu0 0
        %5109 = vmatprep.subr.bf16.mxu0 0
        %5110 = vmatpush2.bf16.msra.mxu0 0
        %5111 = vmatprep.subr.bf16.mxu0 0
        %5112 = vmatpush2.bf16.msra.mxu0 0
        %5113 = vmatprep.subr.bf16.mxu0 0
        %5114 = vmatpush2.bf16.msra.mxu0 0
        %5115 = vmatprep.subr.bf16.mxu0 0
        %5116 = vmatpush2.bf16.msra.mxu0 0
        %5117 = vmatprep.subr.bf16.mxu0 0
        %5118 = vmatpush2.bf16.msra.mxu0 0
        %5119 = vmatprep.subr.bf16.mxu0 0
        %5120 = vmatpush2.bf16.msra.mxu0 0
        %5121 = vmatprep.mubr.bf16.mxu0 0
        %5122 = vmatmul.mubr.bf16.gmra.mxu0 %v5047
        %v5123 = vpop.f32.mrf.mxu0
        %v5124 = vadd.f32 0.0, %v5123
        %v5125 = vpop.f32.mrf.mxu0
        %v5126 = vpop.f32.mrf.mxu0
        %v5127 = vadd.f32 0.0, %v5126
        %v5128 = vpop.f32.mrf.mxu0
        %5129 = vmatprep.mubr.bf16.mxu0 0
        %5130 = vmatmul.mubr.bf16.gmra.mxu0 %v5048
        %v5131 = vpop.f32.mrf.mxu0
        %v5132 = vadd.f32 0.0, %v5131
        %v5133 = vpop.f32.mrf.mxu0
        %v5134 = vpop.f32.mrf.mxu0
        %v5135 = vpop.f32.mrf.mxu0
        %5136 = vdwg.mxu0
        %vm5137 = vcmask 64512
        %v5138 = vsel %vm5137, %v5124, -inf
        %5139 = vmax.xlane.f32.xlu0 %v5138
        %v5140 = vpop.xlane.xlu0 %5139
        %v5141 = vsel %vm5137, %v5127, -inf
        %5142 = vmax.xlane.f32.xlu0 %v5141
        %v5143 = vpop.xlane.xlu0 %5142
        %v5144 = vsel %vm5137, %v5132, -inf
        %5145 = vmax.xlane.f32.xlu0 %v5144
        %v5146 = vpop.xlane.xlu0 %5145
        %v5147 = vsub.f32 %v5124, %v5140
        %v5148 = vsub.f32 %v5127, %v5143
        %v5149 = vsub.f32 %v5132, %v5146
        %v5150 = vmul.f32 %v5147, 1.442695
        %v5151 = vpow.pop %v5150
        %v5152 = vmul.f32 %v5148, 1.442695
        %v5153 = vpow.pop %v5152
        %v5154 = vmul.f32 %v5149, 1.442695
        %v5155 = vpow.pop %v5154
        %v5156 = vsel %vm5137, %v5151, 0.0
        %5157 = vadd.xlane.f32.xlu0 %v5156
        %v5158 = vpop.xlane.xlu0 %5157
        %v5159 = vsel %vm5137, %v5153, 0.0
        %5160 = vadd.xlane.f32.xlu0 %v5159
        %v5161 = vpop.xlane.xlu0 %5160
        %v5162 = vsel %vm5137, %v5155, 0.0
        %5163 = vadd.xlane.f32.xlu0 %v5162
        %v5164 = vpop.xlane.xlu0 %5163
        %v5165 = vrcp.pop %v5158
        %v5166 = vrcp.pop %v5161
        %v5167 = vrcp.pop %v5164
        %v5168 = vmul.f32 %v5151, %v5165
        %v5169 = vmul.f32 %v5153, %v5166
        %v5170 = vmul.f32 %v5155, %v5167
        %vm5171 = vcmask 130112
        %v5172 = vsel %vm5171, %v5124, -inf
        %5173 = vmax.xlane.f32.xlu0 %v5172
        %v5174 = vpop.xlane.xlu0 %5173
        %v5175 = vsel %vm5171, %v5127, -inf
        %5176 = vmax.xlane.f32.xlu0 %v5175
        %v5177 = vpop.xlane.xlu0 %5176
        %v5178 = vsel %vm5171, %v5132, -inf
        %5179 = vmax.xlane.f32.xlu0 %v5178
        %v5180 = vpop.xlane.xlu0 %5179
        %v5181 = vsub.f32 %v5124, %v5174
        %v5182 = vsub.f32 %v5127, %v5177
        %v5183 = vsub.f32 %v5132, %v5180
        %v5184 = vmul.f32 %v5181, 1.442695
        %v5185 = vpow.pop %v5184
        %v5186 = vmul.f32 %v5182, 1.442695
        %v5187 = vpow.pop %v5186
        %v5188 = vmul.f32 %v5183, 1.442695
        %v5189 = vpow.pop %v5188
        %5193 = vrot.lane.b32.xlu0 %v5185, 120
        %v5194 = vpop.permute.xlu0 %5193
        %5195 = vrot.lane.b32.xlu0 %v5187, 120
        %v5196 = vpop.permute.xlu0 %5195
        %5197 = vrot.lane.b32.xlu0 %v5189, 120
        %v5198 = vpop.permute.xlu0 %5197
        %v5202 = vsel %vm5137, %v5194, 0.0
        %5203 = vadd.xlane.f32.xlu0 %v5202
        %v5204 = vpop.xlane.xlu0 %5203
        %v5205 = vsel %vm5137, %v5196, 0.0
        %5206 = vadd.xlane.f32.xlu0 %v5205
        %v5207 = vpop.xlane.xlu0 %5206
        %v5208 = vsel %vm5137, %v5198, 0.0
        %5209 = vadd.xlane.f32.xlu0 %v5208
        %v5210 = vpop.xlane.xlu0 %5209
        %v5211 = vrcp.pop %v5204
        %v5212 = vrcp.pop %v5207
        %v5213 = vrcp.pop %v5210
        %v5214 = vmul.f32 %v5185, %v5211
        %v5215 = vmul.f32 %v5187, %v5212
        %v5216 = vmul.f32 %v5189, %v5213
        %v5217 = vsel %vm5137, %v5168, %v5214
        %v5218 = vsel %vm5137, %v5169, %v5215
        %v5219 = vsel %vm5137, %v5170, %v5216
        %vm5220 = vcmask 130048
        %v5221 = vsel %vm5220, %v5217, 0.0
        %v5222 = vsel %vm5220, %v5218, 0.0
        %v5223 = vsel %vm5220, %v5219, 0.0
        %5224 = vst [vmem:[%s488] sm:$0xff] %v5221
        %5225 = vst [vmem:[%s488 + $0x8] sm:$0xff] %v5222
        %5226 = vst [vmem:[%s488 + $0x10] sm:$0xff] %v5223
        %s5227 = sand.u32 %s222, 1
        %s5228 = scalar_lea.sflag [#allocation4], %s5227
        %s5229 = sand.u32 %s222, 1
        %s5230 = smul.addr %s5229, 48
        %s5231 = scalar_lea.vmem [#allocation16], %s5230
        %s5232 = sand.u32 %s248, 1
        %s5233 = scalar_lea.sflag [#allocation18], %s5232
        %s5234 = sand.u32 %s248, 1
        %s5235 = smul.addr %s5234, 24
        %s5236 = scalar_lea.vmem [#allocation17], %s5235
        // Predicated region
        $region85: #{tpu_custom_call.1} parent=51 // pred_check
          %p5237 = pneg %p232
        $region86: #{tpu_custom_call.1} parent=51 // pred_check_branch
          %5239 = sbr.rel (%p5237) target = $region88
        $region87: #{tpu_custom_call.1} parent=51 // pred_region
          %s5241 = ssub.s32 768, 768
          %5242 = vsyncadd %s5228, %s5241
          %s5243 = smul.addr %s36, 6
          %s5244 = smul.addr %s5243, 128
          %s5245 = scalar_lea.hbm %s8, %s5244
          %s5246 = sshll.u32 %s5231, 4
          %s5247 = int_to_ptr.vmem [resolvable:$true] %s5246
          %5252 = dma.vmem_to_hbm [thread:$0]  %s5247, 768, %s5245, %s5228, 256, 256, 16
        $region88: #{tpu_custom_call.1} parent=51 // pred_fallthru
          _
        // Predicated region
        $region89: #{tpu_custom_call.1} parent=51 // pred_check
          %p5253 = pneg %p258
        $region90: #{tpu_custom_call.1} parent=51 // pred_check_branch
          %5255 = sbr.rel (%p5253) target = $region92
        $region91: #{tpu_custom_call.1} parent=51 // pred_region
          %s5257 = ssub.s32 384, 384
          %5258 = vsyncadd %s5233, %s5257
          %s5259 = smul.addr %s36, 3
          %s5260 = smul.addr %s5259, 128
          %s5261 = scalar_lea.hbm %s9, %s5260
          %s5262 = sshll.u32 %s5236, 4
          %s5263 = int_to_ptr.vmem [resolvable:$true] %s5262
          %5268 = dma.vmem_to_hbm [thread:$0]  %s5263, 384, %s5261, %s5233, 128, 128, 8
        $region92: #{tpu_custom_call.1} parent=51 // pred_fallthru
          _
      $region52: #{tpu_custom_call.1} parent=5 // pred_fallthru
        _
      %p5269 = scmp.le.s32.totalorder 2, %s31
      // Predicated region
      $region93: #{tpu_custom_call.1} parent=5 // pred_check
        %p5270 = pneg %p5269
      $region94: #{tpu_custom_call.1} parent=5 // pred_check_branch
        %5272 = sbr.rel (%p5270) target = $region96
      $region95: #{tpu_custom_call.1} parent=5 // pred_region
        %s5273 = ssub.s32 %s31, 2
        // Predicated region
        $region97: #{tpu_custom_call.1} parent=95 // pred_check
          %p5274 = pneg %p238
        $region98: #{tpu_custom_call.1} parent=95 // pred_check_branch
          %5276 = sbr.rel (%p5274) target = $region100
        $region99: #{tpu_custom_call.1} parent=95 // pred_region
          %s5277 = sand.u32 %s223, 1
          %s5278 = scalar_lea.sflag [#allocation4], %s5277
          %s5279 = sand.u32 %s223, 1
          %s5280 = smul.addr %s5279, 48
          %s5281 = scalar_lea.vmem [#allocation16], %s5280
          %5282 = dma.done %s5278, 768
        $region100: #{tpu_custom_call.1} parent=95 // pred_fallthru
          _
        // Predicated region
        $region101: #{tpu_custom_call.1} parent=95 // pred_check
          %p5283 = pneg %p264
        $region102: #{tpu_custom_call.1} parent=95 // pred_check_branch
          %5285 = sbr.rel (%p5283) target = $region104
        $region103: #{tpu_custom_call.1} parent=95 // pred_region
          %s5286 = sand.u32 %s249, 1
          %s5287 = scalar_lea.sflag [#allocation18], %s5286
          %s5288 = sand.u32 %s249, 1
          %s5289 = smul.addr %s5288, 24
          %s5290 = scalar_lea.vmem [#allocation17], %s5289
          %5291 = dma.done %s5287, 384
        $region104: #{tpu_custom_call.1} parent=95 // pred_fallthru
          _
      $region96: #{tpu_custom_call.1} parent=5 // pred_fallthru
        _
    $region6: #{tpu_custom_call.1} parent=1 // loop_footer
      %s35 = sadd.s32 1, %s31
    $region7: #{tpu_custom_call.1} parent=1 // loop_footer_branch
      %30 = sbr.rel target = $region3
    $region8: #{tpu_custom_call.1} parent=1 // loop_exit
      _
    %5292 = vsyncpa [#allocation3], 1
    %s5293 = scalar_lea.sflag [#allocation3], 1
    %5294 = vsyncpa %s5293, 1
    %5295 = vsyncpa [#allocation6], 1
    %s5296 = scalar_lea.sflag [#allocation6], 1
    %5297 = vsyncpa %s5296, 1
    %5298 = vsyncpa [#allocation9], 1
    %5299 = vsyncpa [#allocation12], 1
    %5300 = vsyncpa [#allocation15], 1
    %5301 = vsyncpa [#allocation4], 1
    %s5302 = scalar_lea.sflag [#allocation4], 1
    %5303 = vsyncpa %s5302, 1
    %5304 = vsyncpa [#allocation18], 1
    %s5305 = scalar_lea.sflag [#allocation18], 1
    %5306 = vsyncpa %s5305, 1

</llo_original>
